<compile_context>
chip_gen: v7x
topology: tpu7x:2x2x1
jax: 0.10.0
libtpu: 0.0.40
codegen_flags: <defaults>
</compile_context>

<pallas_src>
import functools

import jax
import jax.numpy as jnp
from jax import lax
from jax.experimental import pallas as pl
from jax.experimental.pallas import tpu as pltpu


# ----------------------------------------------------------------------------
# Pallas kernel: fused conv taps (implicit im2col) + BN shift + SiLU
# ----------------------------------------------------------------------------
def _focus_conv_bn_silu_kernel(x_ref, w_ref, shift_ref, o_ref, *,
                               k, stride, th, Wo, Cout):
    # x_ref:     (1, Hp, Wp, C4)   zero-padded space-to-depth input (bf16)
    # w_ref:     (k*k, C4, Cp)     BN-scale-folded conv weight, tap-major (bf16)
    # shift_ref: (1, Cp)           folded BN shift (f32)
    # o_ref:     (1, Cout, th*Wo)  output tile, channels-major (f32)
    h0 = pl.program_id(1) * th           # first output row of this tile
    cp = w_ref.shape[-1]
    p = th * Wo
    acc = jnp.zeros((p, cp), jnp.float32)
    for kh in range(k):                  # k*k = 9 taps, fully unrolled
        for kw in range(k):
            if stride == 1:
                rows = pl.ds(h0 + kh, th)
                cols = pl.ds(kw, Wo)
            else:
                rows = pl.ds(h0 * stride + kh, th, stride)
                cols = pl.ds(kw, Wo, stride)
            x_tap = x_ref[0, rows, cols, :]                 # (th, Wo, C4)
            x2d = x_tap.reshape(p, x_tap.shape[-1])         # (P, C4) bf16
            acc = acc + jnp.dot(x2d, w_ref[kh * k + kw],
                                preferred_element_type=jnp.float32)
    y = acc + shift_ref[...]                                # BN (scale in w)
    y = y * pl.reciprocal(1.0 + jnp.exp(-y), approx=True)   # SiLU (EUP)
    # Channels-major tile: pixel dim goes to lanes (lane-dense at real sizes).
    o_ref[0] = y.T[:Cout, :].astype(o_ref.dtype)


def _pick_h_tile(Ho, Wo, max_pixels=4096):
    """Largest H-tile th (a divisor of Ho) such that the (Cout, th*Wo) output
    block is lane-legal (th*Wo multiple of 128, or th == Ho i.e. full extent)
    and th*Wo <= max_pixels.  Falls back to th = Ho (always correct)."""
    best = Ho
    for th in range(1, Ho):
        if Ho % th == 0 and th * Wo <= max_pixels and (th * Wo) % 128 == 0:
            best = th
    if Ho * Wo <= max_pixels:
        best = Ho
    return best


# ----------------------------------------------------------------------------
# Wrapper: space-to-depth, BN folding, weight packing, pallas_call
# ----------------------------------------------------------------------------
@functools.partial(jax.jit, static_argnames=("k", "stride", "padding"))
def focus_forward(x, conv_w, gamma, beta, run_mean, run_var, *, k, stride,
                  padding, eps=1e-3):
    """Focus.forward: space-to-depth -> Conv2d(no bias) -> BN(eval) -> SiLU.

    x:       (N, Cin, H, W)   NCHW (PyTorch layout)
    conv_w:  (Cout, 4*Cin, k, k)
    returns: (N, Cout, Ho, Wo) NCHW
    """
    N, Cin, H, W = x.shape
    Cout = conv_w.shape[0]
    C4 = 4 * Cin
    assert conv_w.shape == (Cout, C4, k, k)

    # Space-to-depth directly into NHWC; channel order matches torch.cat order.
    xh = jnp.transpose(x, (0, 2, 3, 1))                          # (N, H, W, Cin)
    x4 = jnp.concatenate(
        [xh[:, ::2, ::2, :], xh[:, 1::2, ::2, :],
         xh[:, ::2, 1::2, :], xh[:, 1::2, 1::2, :]], axis=-1)    # (N, H2, W2, 4Cin)
    H2, W2 = x4.shape[1], x4.shape[2]

    Ho = (H2 + 2 * padding - k) // stride + 1
    Wo = (W2 + 2 * padding - k) // stride + 1
    assert Wo % 8 == 0, "kernel assumes Wo % 8 == 0 (layout-trivial in-kernel reshape)"
    # TODO(synk): support Wo not a multiple of 8 (needs W padding or a relayout).

    xp = jnp.pad(x4, ((0, 0), (padding, padding), (padding, padding), (0, 0)))
    xp = xp.astype(jnp.bfloat16)                                 # (N, Hp, Wp, C4)
    Hp, Wp = xp.shape[1], xp.shape[2]
    # TODO(synk): for very large feature maps, tile the input over H with a
    # halo instead of staging the full padded image per batch element in VMEM.

    # Fold BN (eval mode, running stats) into the conv weight; keep the shift.
    inv = gamma / jnp.sqrt(run_var + eps)                        # (Cout,)
    w_fold = conv_w * inv[:, None, None, None]                   # (Cout, C4, k, k)
    shift = beta - run_mean * inv                                # (Cout,)

    Cp = ((Cout + 127) // 128) * 128                             # lane-dense channels
    w_taps = jnp.transpose(w_fold, (2, 3, 1, 0)).reshape(k * k, C4, Cout)
    w_taps = jnp.pad(w_taps, ((0, 0), (0, 0), (0, Cp - Cout))).astype(jnp.bfloat16)
    shift_p = jnp.pad(shift, (0, Cp - Cout)).reshape(1, Cp).astype(jnp.float32)

    th = _pick_h_tile(Ho, Wo)
    P = th * Wo
    grid = (N, Ho // th)

    kernel = functools.partial(_focus_conv_bn_silu_kernel, k=k, stride=stride,
                               th=th, Wo=Wo, Cout=Cout)

    out = pl.pallas_call(
        kernel,
        out_shape=jax.ShapeDtypeStruct((N, Cout, Ho * Wo), jnp.float32),
        grid_spec=pltpu.PrefetchScalarGridSpec(
            num_scalar_prefetch=0,
            grid=grid,
            in_specs=[
                # Full padded image per batch element; re-used across H tiles
                # (same block index -> fetched once per n).
                pl.BlockSpec((1, Hp, Wp, C4), lambda n, h: (n, 0, 0, 0)),
                pl.BlockSpec((k * k, C4, Cp), lambda n, h: (0, 0, 0)),
                pl.BlockSpec((1, Cp), lambda n, h: (0, 0)),
            ],
            out_specs=pl.BlockSpec((1, Cout, P), lambda n, h: (n, 0, h)),
        ),
        compiler_params=pltpu.CompilerParams(
            dimension_semantics=("parallel", "parallel"),
            vmem_limit_bytes=32 * 1024 * 1024,
        ),
    )(xp, w_taps, shift_p)

    # Channels-major flat output -> NCHW with a free reshape (no transpose).
    return out.reshape(N, Cout, Ho, Wo)


# ----------------------------------------------------------------------------
# Pure-JAX reference for correctness check
# ----------------------------------------------------------------------------
def focus_space_to_depth_nchw(x):
    return jnp.concatenate(
        [x[:, :, ::2, ::2], x[:, :, 1::2, ::2],
         x[:, :, ::2, 1::2], x[:, :, 1::2, 1::2]], axis=1)


def focus_forward_ref(x, conv_w, gamma, beta, run_mean, run_var, *, k, stride,
                      padding, eps=1e-3):
    x4 = focus_space_to_depth_nchw(x)
    y = lax.conv_general_dilated(
        x4, conv_w,
        window_strides=(stride, stride),
        padding=((padding, padding), (padding, padding)),
        dimension_numbers=("NCHW", "OIHW", "NCHW"),
    )
    inv = gamma / jnp.sqrt(run_var + eps)
    y = y * inv[None, :, None, None] + (beta - run_mean * inv)[None, :, None, None]
    return y * jax.nn.sigmoid(y)


# ----------------------------------------------------------------------------
if __name__ == "__main__":
    # Focus(in_channels=4, out_channels=32, kernel_size=3, stride=1, padding=1)
    in_channels, out_channels = 4, 32
    k, stride, padding = 3, 1, 1
    N, H, W = 2, 32, 32

    key = jax.random.PRNGKey(0)
    kx, kw, kg, kb, km, kv = jax.random.split(key, 6)

    x = jax.random.normal(kx, (N, in_channels, H, W), dtype=jnp.float32)

    # Deterministic synthetic parameters (shapes per module __init__).
    conv_w = 0.1 * jax.random.normal(
        kw, (out_channels, in_channels * 4, k, k), dtype=jnp.float32)
    gamma = 1.0 + 0.1 * jax.random.normal(kg, (out_channels,), dtype=jnp.float32)
    beta = 0.1 * jax.random.normal(kb, (out_channels,), dtype=jnp.float32)
    run_mean = 0.05 * jax.random.normal(km, (out_channels,), dtype=jnp.float32)
    run_var = 1.0 + 0.1 * jax.random.uniform(kv, (out_channels,), dtype=jnp.float32)

    out = focus_forward(x, conv_w, gamma, beta, run_mean, run_var,
                        k=k, stride=stride, padding=padding)
    out = jax.block_until_ready(out)

    ref = focus_forward_ref(x, conv_w, gamma, beta, run_mean, run_var,
                            k=k, stride=stride, padding=padding)
    assert out.shape == (N, out_channels, H // 2, W // 2), out.shape
    max_err = float(jnp.max(jnp.abs(out - ref)))
    # bf16 matmul path -> compare against f32 reference with a bf16 tolerance.
    assert jnp.allclose(out, ref, atol=5e-2, rtol=5e-2), max_err

    print("KERNEL_OK")
</pallas_src>

<mosaic_0001>
module attributes {stable_mosaic.version = 11 : i64} {
  func.func @_focus_conv_bn_silu_kernel(%arg0: i32, %arg1: i32, %arg2: memref<1x18x18x16xbf16, #tpu.memory_space<vmem>>, %arg3: memref<9x16x128xbf16, #tpu.memory_space<vmem>>, %arg4: memref<1x128xf32, #tpu.memory_space<vmem>>, %arg5: memref<1x32x256xf32, #tpu.memory_space<vmem>>) attributes {dimension_semantics = [#tpu.dimension_semantics<parallel>, #tpu.dimension_semantics<parallel>], iteration_bounds = array<i64: 2, 1>, scalar_prefetch = 0 : i64, scratch_operands = 0 : i64, tpu.core_type = #tpu.core_type<tc>, window_params = [{transform_indices = @transform_0, window_bounds = array<i64: 1, 18, 18, 16>}, {pipeline_mode = #tpu.pipeline_mode<synchronous>, transform_indices = @transform_1, window_bounds = array<i64: 9, 16, 128>}, {pipeline_mode = #tpu.pipeline_mode<synchronous>, transform_indices = @transform_2, window_bounds = array<i64: 1, 128>}, {transform_indices = @transform_3, window_bounds = array<i64: 1, 32, 256>}]} {
    %c16_i32 = arith.constant 16 : i32
    %0 = arith.muli %arg1, %c16_i32 : i32
    %cst = arith.constant 0.000000e+00 : f32
    %1 = vector.broadcast %cst : f32 to vector<256x128xf32>
    %c0_i32 = arith.constant 0 : i32
    %2 = arith.addi %0, %c0_i32 : i32
    %c0 = arith.constant 0 : index
    %3 = arith.index_cast %2 : i32 to index
    %c0_0 = arith.constant 0 : index
    %c0_1 = arith.constant 0 : index
    %4 = vector.load %arg2[%c0, %3, %c0_0, %c0_1] : memref<1x18x18x16xbf16, #tpu.memory_space<vmem>>, vector<1x16x16x16xbf16>
    %5 = vector.shape_cast %4 : vector<1x16x16x16xbf16> to vector<16x16x16xbf16>
    %6 = vector.shape_cast %5 : vector<16x16x16xbf16> to vector<256x16xbf16>
    %c0_2 = arith.constant 0 : index
    %c0_3 = arith.constant 0 : index
    %c0_4 = arith.constant 0 : index
    %7 = vector.load %arg3[%c0_2, %c0_3, %c0_4] : memref<9x16x128xbf16, #tpu.memory_space<vmem>>, vector<1x16x128xbf16>
    %8 = vector.shape_cast %7 : vector<1x16x128xbf16> to vector<16x128xbf16>
    %cst_5 = arith.constant dense<0.000000e+00> : vector<256x128xf32>
    %9 = tpu.matmul %6, %8, %cst_5 {dimension_numbers = #tpu.dot_dimension_numbers<[1], [0], [0], [1], [0, 0, 1, 1], [], []>} : vector<256x16xbf16>, vector<16x128xbf16>, vector<256x128xf32> -> vector<256x128xf32>
    %10 = arith.addf %1, %9 : vector<256x128xf32>
    %c0_i32_6 = arith.constant 0 : i32
    %11 = arith.addi %0, %c0_i32_6 : i32
    %c0_7 = arith.constant 0 : index
    %12 = arith.index_cast %11 : i32 to index
    %c1 = arith.constant 1 : index
    %c0_8 = arith.constant 0 : index
    %13 = vector.load %arg2[%c0_7, %12, %c1, %c0_8] : memref<1x18x18x16xbf16, #tpu.memory_space<vmem>>, vector<1x16x16x16xbf16>
    %14 = vector.shape_cast %13 : vector<1x16x16x16xbf16> to vector<16x16x16xbf16>
    %15 = vector.shape_cast %14 : vector<16x16x16xbf16> to vector<256x16xbf16>
    %c1_9 = arith.constant 1 : index
    %c0_10 = arith.constant 0 : index
    %c0_11 = arith.constant 0 : index
    %16 = vector.load %arg3[%c1_9, %c0_10, %c0_11] : memref<9x16x128xbf16, #tpu.memory_space<vmem>>, vector<1x16x128xbf16>
    %17 = vector.shape_cast %16 : vector<1x16x128xbf16> to vector<16x128xbf16>
    %cst_12 = arith.constant dense<0.000000e+00> : vector<256x128xf32>
    %18 = tpu.matmul %15, %17, %cst_12 {dimension_numbers = #tpu.dot_dimension_numbers<[1], [0], [0], [1], [0, 0, 1, 1], [], []>} : vector<256x16xbf16>, vector<16x128xbf16>, vector<256x128xf32> -> vector<256x128xf32>
    %19 = arith.addf %10, %18 : vector<256x128xf32>
    %c0_i32_13 = arith.constant 0 : i32
    %20 = arith.addi %0, %c0_i32_13 : i32
    %c0_14 = arith.constant 0 : index
    %21 = arith.index_cast %20 : i32 to index
    %c2 = arith.constant 2 : index
    %c0_15 = arith.constant 0 : index
    %22 = vector.load %arg2[%c0_14, %21, %c2, %c0_15] : memref<1x18x18x16xbf16, #tpu.memory_space<vmem>>, vector<1x16x16x16xbf16>
    %23 = vector.shape_cast %22 : vector<1x16x16x16xbf16> to vector<16x16x16xbf16>
    %24 = vector.shape_cast %23 : vector<16x16x16xbf16> to vector<256x16xbf16>
    %c2_16 = arith.constant 2 : index
    %c0_17 = arith.constant 0 : index
    %c0_18 = arith.constant 0 : index
    %25 = vector.load %arg3[%c2_16, %c0_17, %c0_18] : memref<9x16x128xbf16, #tpu.memory_space<vmem>>, vector<1x16x128xbf16>
    %26 = vector.shape_cast %25 : vector<1x16x128xbf16> to vector<16x128xbf16>
    %cst_19 = arith.constant dense<0.000000e+00> : vector<256x128xf32>
    %27 = tpu.matmul %24, %26, %cst_19 {dimension_numbers = #tpu.dot_dimension_numbers<[1], [0], [0], [1], [0, 0, 1, 1], [], []>} : vector<256x16xbf16>, vector<16x128xbf16>, vector<256x128xf32> -> vector<256x128xf32>
    %28 = arith.addf %19, %27 : vector<256x128xf32>
    %c1_i32 = arith.constant 1 : i32
    %29 = arith.addi %0, %c1_i32 : i32
    %c0_20 = arith.constant 0 : index
    %30 = arith.index_cast %29 : i32 to index
    %c0_21 = arith.constant 0 : index
    %c0_22 = arith.constant 0 : index
    %31 = vector.load %arg2[%c0_20, %30, %c0_21, %c0_22] : memref<1x18x18x16xbf16, #tpu.memory_space<vmem>>, vector<1x16x16x16xbf16>
    %32 = vector.shape_cast %31 : vector<1x16x16x16xbf16> to vector<16x16x16xbf16>
    %33 = vector.shape_cast %32 : vector<16x16x16xbf16> to vector<256x16xbf16>
    %c3 = arith.constant 3 : index
    %c0_23 = arith.constant 0 : index
    %c0_24 = arith.constant 0 : index
    %34 = vector.load %arg3[%c3, %c0_23, %c0_24] : memref<9x16x128xbf16, #tpu.memory_space<vmem>>, vector<1x16x128xbf16>
    %35 = vector.shape_cast %34 : vector<1x16x128xbf16> to vector<16x128xbf16>
    %cst_25 = arith.constant dense<0.000000e+00> : vector<256x128xf32>
    %36 = tpu.matmul %33, %35, %cst_25 {dimension_numbers = #tpu.dot_dimension_numbers<[1], [0], [0], [1], [0, 0, 1, 1], [], []>} : vector<256x16xbf16>, vector<16x128xbf16>, vector<256x128xf32> -> vector<256x128xf32>
    %37 = arith.addf %28, %36 : vector<256x128xf32>
    %c1_i32_26 = arith.constant 1 : i32
    %38 = arith.addi %0, %c1_i32_26 : i32
    %c0_27 = arith.constant 0 : index
    %39 = arith.index_cast %38 : i32 to index
    %c1_28 = arith.constant 1 : index
    %c0_29 = arith.constant 0 : index
    %40 = vector.load %arg2[%c0_27, %39, %c1_28, %c0_29] : memref<1x18x18x16xbf16, #tpu.memory_space<vmem>>, vector<1x16x16x16xbf16>
    %41 = vector.shape_cast %40 : vector<1x16x16x16xbf16> to vector<16x16x16xbf16>
    %42 = vector.shape_cast %41 : vector<16x16x16xbf16> to vector<256x16xbf16>
    %c4 = arith.constant 4 : index
    %c0_30 = arith.constant 0 : index
    %c0_31 = arith.constant 0 : index
    %43 = vector.load %arg3[%c4, %c0_30, %c0_31] : memref<9x16x128xbf16, #tpu.memory_space<vmem>>, vector<1x16x128xbf16>
    %44 = vector.shape_cast %43 : vector<1x16x128xbf16> to vector<16x128xbf16>
    %cst_32 = arith.constant dense<0.000000e+00> : vector<256x128xf32>
    %45 = tpu.matmul %42, %44, %cst_32 {dimension_numbers = #tpu.dot_dimension_numbers<[1], [0], [0], [1], [0, 0, 1, 1], [], []>} : vector<256x16xbf16>, vector<16x128xbf16>, vector<256x128xf32> -> vector<256x128xf32>
    %46 = arith.addf %37, %45 : vector<256x128xf32>
    %c1_i32_33 = arith.constant 1 : i32
    %47 = arith.addi %0, %c1_i32_33 : i32
    %c0_34 = arith.constant 0 : index
    %48 = arith.index_cast %47 : i32 to index
    %c2_35 = arith.constant 2 : index
    %c0_36 = arith.constant 0 : index
    %49 = vector.load %arg2[%c0_34, %48, %c2_35, %c0_36] : memref<1x18x18x16xbf16, #tpu.memory_space<vmem>>, vector<1x16x16x16xbf16>
    %50 = vector.shape_cast %49 : vector<1x16x16x16xbf16> to vector<16x16x16xbf16>
    %51 = vector.shape_cast %50 : vector<16x16x16xbf16> to vector<256x16xbf16>
    %c5 = arith.constant 5 : index
    %c0_37 = arith.constant 0 : index
    %c0_38 = arith.constant 0 : index
    %52 = vector.load %arg3[%c5, %c0_37, %c0_38] : memref<9x16x128xbf16, #tpu.memory_space<vmem>>, vector<1x16x128xbf16>
    %53 = vector.shape_cast %52 : vector<1x16x128xbf16> to vector<16x128xbf16>
    %cst_39 = arith.constant dense<0.000000e+00> : vector<256x128xf32>
    %54 = tpu.matmul %51, %53, %cst_39 {dimension_numbers = #tpu.dot_dimension_numbers<[1], [0], [0], [1], [0, 0, 1, 1], [], []>} : vector<256x16xbf16>, vector<16x128xbf16>, vector<256x128xf32> -> vector<256x128xf32>
    %55 = arith.addf %46, %54 : vector<256x128xf32>
    %c2_i32 = arith.constant 2 : i32
    %56 = arith.addi %0, %c2_i32 : i32
    %c0_40 = arith.constant 0 : index
    %57 = arith.index_cast %56 : i32 to index
    %c0_41 = arith.constant 0 : index
    %c0_42 = arith.constant 0 : index
    %58 = vector.load %arg2[%c0_40, %57, %c0_41, %c0_42] : memref<1x18x18x16xbf16, #tpu.memory_space<vmem>>, vector<1x16x16x16xbf16>
    %59 = vector.shape_cast %58 : vector<1x16x16x16xbf16> to vector<16x16x16xbf16>
    %60 = vector.shape_cast %59 : vector<16x16x16xbf16> to vector<256x16xbf16>
    %c6 = arith.constant 6 : index
    %c0_43 = arith.constant 0 : index
    %c0_44 = arith.constant 0 : index
    %61 = vector.load %arg3[%c6, %c0_43, %c0_44] : memref<9x16x128xbf16, #tpu.memory_space<vmem>>, vector<1x16x128xbf16>
    %62 = vector.shape_cast %61 : vector<1x16x128xbf16> to vector<16x128xbf16>
    %cst_45 = arith.constant dense<0.000000e+00> : vector<256x128xf32>
    %63 = tpu.matmul %60, %62, %cst_45 {dimension_numbers = #tpu.dot_dimension_numbers<[1], [0], [0], [1], [0, 0, 1, 1], [], []>} : vector<256x16xbf16>, vector<16x128xbf16>, vector<256x128xf32> -> vector<256x128xf32>
    %64 = arith.addf %55, %63 : vector<256x128xf32>
    %c2_i32_46 = arith.constant 2 : i32
    %65 = arith.addi %0, %c2_i32_46 : i32
    %c0_47 = arith.constant 0 : index
    %66 = arith.index_cast %65 : i32 to index
    %c1_48 = arith.constant 1 : index
    %c0_49 = arith.constant 0 : index
    %67 = vector.load %arg2[%c0_47, %66, %c1_48, %c0_49] : memref<1x18x18x16xbf16, #tpu.memory_space<vmem>>, vector<1x16x16x16xbf16>
    %68 = vector.shape_cast %67 : vector<1x16x16x16xbf16> to vector<16x16x16xbf16>
    %69 = vector.shape_cast %68 : vector<16x16x16xbf16> to vector<256x16xbf16>
    %c7 = arith.constant 7 : index
    %c0_50 = arith.constant 0 : index
    %c0_51 = arith.constant 0 : index
    %70 = vector.load %arg3[%c7, %c0_50, %c0_51] : memref<9x16x128xbf16, #tpu.memory_space<vmem>>, vector<1x16x128xbf16>
    %71 = vector.shape_cast %70 : vector<1x16x128xbf16> to vector<16x128xbf16>
    %cst_52 = arith.constant dense<0.000000e+00> : vector<256x128xf32>
    %72 = tpu.matmul %69, %71, %cst_52 {dimension_numbers = #tpu.dot_dimension_numbers<[1], [0], [0], [1], [0, 0, 1, 1], [], []>} : vector<256x16xbf16>, vector<16x128xbf16>, vector<256x128xf32> -> vector<256x128xf32>
    %73 = arith.addf %64, %72 : vector<256x128xf32>
    %c2_i32_53 = arith.constant 2 : i32
    %74 = arith.addi %0, %c2_i32_53 : i32
    %c0_54 = arith.constant 0 : index
    %75 = arith.index_cast %74 : i32 to index
    %c2_55 = arith.constant 2 : index
    %c0_56 = arith.constant 0 : index
    %76 = vector.load %arg2[%c0_54, %75, %c2_55, %c0_56] : memref<1x18x18x16xbf16, #tpu.memory_space<vmem>>, vector<1x16x16x16xbf16>
    %77 = vector.shape_cast %76 : vector<1x16x16x16xbf16> to vector<16x16x16xbf16>
    %78 = vector.shape_cast %77 : vector<16x16x16xbf16> to vector<256x16xbf16>
    %c8 = arith.constant 8 : index
    %c0_57 = arith.constant 0 : index
    %c0_58 = arith.constant 0 : index
    %79 = vector.load %arg3[%c8, %c0_57, %c0_58] : memref<9x16x128xbf16, #tpu.memory_space<vmem>>, vector<1x16x128xbf16>
    %80 = vector.shape_cast %79 : vector<1x16x128xbf16> to vector<16x128xbf16>
    %cst_59 = arith.constant dense<0.000000e+00> : vector<256x128xf32>
    %81 = tpu.matmul %78, %80, %cst_59 {dimension_numbers = #tpu.dot_dimension_numbers<[1], [0], [0], [1], [0, 0, 1, 1], [], []>} : vector<256x16xbf16>, vector<16x128xbf16>, vector<256x128xf32> -> vector<256x128xf32>
    %82 = arith.addf %73, %81 : vector<256x128xf32>
    %c0_60 = arith.constant 0 : index
    %c0_61 = arith.constant 0 : index
    %83 = vector.load %arg4[%c0_60, %c0_61] : memref<1x128xf32, #tpu.memory_space<vmem>>, vector<1x128xf32>
    %84 = vector.broadcast %83 : vector<1x128xf32> to vector<256x128xf32>
    %85 = arith.addf %82, %84 : vector<256x128xf32>
    %cst_62 = arith.constant 0.000000e+00 : f32
    %86 = vector.broadcast %cst_62 : f32 to vector<256x128xf32>
    %87 = arith.subf %86, %85 : vector<256x128xf32>
    %88 = math.exp %87 : vector<256x128xf32>
    %cst_63 = arith.constant 1.000000e+00 : f32
    %89 = vector.broadcast %cst_63 : f32 to vector<256x128xf32>
    %90 = arith.addf %89, %88 : vector<256x128xf32>
    %91 = tpu.reciprocal %90 {approx = true} : vector<256x128xf32> -> vector<256x128xf32>
    %92 = arith.mulf %85, %91 : vector<256x128xf32>
    %93 = tpu.transpose %92, [1, 0] : vector<256x128xf32> -> vector<128x256xf32>
    %94 = vector.extract_strided_slice %93 {offsets = [0, 0], sizes = [32, 256], strides = [1, 1]} : vector<128x256xf32> to vector<32x256xf32>
    %c0_64 = arith.constant 0 : index
    %c0_65 = arith.constant 0 : index
    %c0_66 = arith.constant 0 : index
    %95 = vector.load %arg5[%c0_64, %c0_65, %c0_66] : memref<1x32x256xf32, #tpu.memory_space<vmem>>, vector<1x32x256xf32>
    %96 = vector.shape_cast %95 : vector<1x32x256xf32> to vector<32x256xf32>
    %97 = vector.shape_cast %94 : vector<32x256xf32> to vector<1x32x256xf32>
    tpu.vector_store %arg5[%c0_64, %c0_65, %c0_66], %97 {strides = array<i32>} : memref<1x32x256xf32, #tpu.memory_space<vmem>>, vector<1x32x256xf32>,
    return
  }
  func.func @transform_0(%arg0: i32, %arg1: i32) -> (i32, i32, i32, i32) {
    %c0_i32 = arith.constant 0 : i32
    %c0_i32_0 = arith.constant 0 : i32
    %c0_i32_1 = arith.constant 0 : i32
    %c0_i32_2 = arith.constant 0 : i32
    return %arg0, %c0_i32, %c0_i32_0, %c0_i32_1 : i32, i32, i32, i32
  }
  func.func @transform_1(%arg0: i32, %arg1: i32) -> (i32, i32, i32) {
    %c0_i32 = arith.constant 0 : i32
    %c0_i32_0 = arith.constant 0 : i32
    %c0_i32_1 = arith.constant 0 : i32
    %c0_i32_2 = arith.constant 0 : i32
    return %c0_i32, %c0_i32_0, %c0_i32_1 : i32, i32, i32
  }
  func.func @transform_2(%arg0: i32, %arg1: i32) -> (i32, i32) {
    %c0_i32 = arith.constant 0 : i32
    %c0_i32_0 = arith.constant 0 : i32
    %c0_i32_1 = arith.constant 0 : i32
    return %c0_i32, %c0_i32_0 : i32, i32
  }
  func.func @transform_3(%arg0: i32, %arg1: i32) -> (i32, i32, i32) {
    %c0_i32 = arith.constant 0 : i32
    %c0_i32_0 = arith.constant 0 : i32
    return %arg0, %c0_i32, %arg1 : i32, i32, i32
  }
}

</mosaic_0001>

<llo_original>
// kernel: focus_forward.1
$region0: #{focus_forward.1}
  #allocation0 [shape = 'u32[]', space=smem, size = 0x4, offset = 0x4, fixed_abs, tag = 'smem constant byte address 0x4 - core index']
  #allocation1 [shape = 'u32[144,128]{1,0:T(1,128)}', space=vmem, size = 0x12000, scoped, tag = 'internal scratch']
  %s0 = inlined_call_operand.vmem [shape: bf16[2,18,18,16], index: 0, kind: input, shape index: {}]
  %s1 = inlined_call_operand.vmem [shape: bf16[9,16,128], index: 1, kind: input, shape index: {}]
  %s2 = inlined_call_operand.vmem [shape: f32[1,128], index: 2, kind: input, shape index: {}]
  %s3 = inlined_call_operand.vmem [shape: f32[2,32,256], index: 3, kind: output, shape index: {}]
  %s4 = sld [smem:[#allocation0]]
  $region45: #{focus_forward.1} parent=0
    _
  %s6 = ssub.s32 1, %s4
  %s7 = scalar_select 0, %s6, %s4
  loop: start=0, step=1, limit=4
  $region2: #{focus_forward.1} parent=0 // loop_pre_header
    _
  $region3: #{focus_forward.1} parent=0 // loop_header
    %s9 = sphi 0, %s13
    %p10 = scmp.ge.s32.totalorder %s9, 4
    %s16 = sphi 0, %s28
    %s17 = sphi 0, %s24
    %s18 = sphi 0, %s16
    %s19 = sphi 0, %s17
    %s20 = sphi 0, %s18
    %s21 = sphi 0, %s19
    %s31 = sphi 0, %s33
    %s34 = sphi 0, %s31
    %s35 = sphi 0, %s34
    %s51 = sphi 0, %s35
    %s55 = sphi 0, %s55
    %s57 = sphi 0, %s55
    %s58 = sphi 0, %s57
    %s72 = sphi 0, %s58
    %s76 = sphi 0, %s76
    %s78 = sphi 0, %s76
    %s79 = sphi 0, %s78
    %s93 = sphi 0, %s79
    %s101 = sphi 0, %s103
    %s104 = sphi 0, %s101
    %s105 = sphi 0, %s104
    %s121 = sphi 0, %s105
  $region4: #{focus_forward.1} parent=0 // loop_header_branch
    %12 = sbr.rel (%p10) target = $region8
  $region5: #{focus_forward.1} parent=0 // loop_body
    %s14 = ssub.s32 %s9, 1
    %s15 = ssub.s32 %s9, 2
    %s22 = sadd.s32 1, %s17
    %p23 = scmp.ge.s32.totalorder %s22, 1
    %s24 = scalar_select %p23, 0, %s22
    %s25 = sadd.s32 1, %s16
    %s26 = scalar_select %p23, %s25, %s16
    %p27 = scmp.ge.s32.totalorder %s26, 2
    %s28 = scalar_select %p27, 0, %s26
    %s29 = ssub.s32 %s16, %s28
    %p30 = scmp.eq.s32.totalorder %s29, 0
    %s32 = sadd.s32 %s31, 1
    %s33 = scalar_select %p30, %s31, %s32
    %p36 = pneg %p30
    %p37 = scmp.eq.s32.totalorder %s9, 1
    %p38 = por %p36, %p37
    %p39 = scmp.ne.s32.totalorder %s31, %s34
    %p40 = scmp.eq.s32.totalorder %s9, 0
    %p41 = por %p39, %p40
    %p42 = scmp.ne.s32.totalorder %s31, %s34
    %p43 = scmp.eq.s32.totalorder %s14, 1
    %p44 = por %p42, %p43
    %p45 = scmp.ne.s32.totalorder %s34, %s35
    %p46 = scmp.eq.s32.totalorder %s14, 0
    %p47 = por %p45, %p46
    %p48 = scmp.ne.s32.totalorder %s34, %s35
    %p49 = scmp.eq.s32.totalorder %s15, 1
    %p50 = por %p48, %p49
    %p52 = scmp.ne.s32.totalorder %s35, %s51
    %p53 = scmp.eq.s32.totalorder %s15, 0
    %p54 = por %p52, %p53
    %s56 = sadd.s32 %s55, 1
    %p59 = scmp.eq.s32.totalorder %s9, 1
    %p60 = scmp.ne.s32.totalorder %s55, %s57
    %p61 = scmp.eq.s32.totalorder %s9, 0
    %p62 = por %p60, %p61
    %p63 = scmp.ne.s32.totalorder %s55, %s57
    %p64 = scmp.eq.s32.totalorder %s14, 1
    %p65 = por %p63, %p64
    %p66 = scmp.ne.s32.totalorder %s57, %s58
    %p67 = scmp.eq.s32.totalorder %s14, 0
    %p68 = por %p66, %p67
    %p69 = scmp.ne.s32.totalorder %s57, %s58
    %p70 = scmp.eq.s32.totalorder %s15, 1
    %p71 = por %p69, %p70
    %p73 = scmp.ne.s32.totalorder %s58, %s72
    %p74 = scmp.eq.s32.totalorder %s15, 0
    %p75 = por %p73, %p74
    %s77 = sadd.s32 %s76, 1
    %p80 = scmp.eq.s32.totalorder %s9, 1
    %p81 = scmp.ne.s32.totalorder %s76, %s78
    %p82 = scmp.eq.s32.totalorder %s9, 0
    %p83 = por %p81, %p82
    %p84 = scmp.ne.s32.totalorder %s76, %s78
    %p85 = scmp.eq.s32.totalorder %s14, 1
    %p86 = por %p84, %p85
    %p87 = scmp.ne.s32.totalorder %s78, %s79
    %p88 = scmp.eq.s32.totalorder %s14, 0
    %p89 = por %p87, %p88
    %p90 = scmp.ne.s32.totalorder %s78, %s79
    %p91 = scmp.eq.s32.totalorder %s15, 1
    %p92 = por %p90, %p91
    %p94 = scmp.ne.s32.totalorder %s79, %s93
    %p95 = scmp.eq.s32.totalorder %s15, 0
    %p96 = por %p94, %p95
    %s97 = ssub.s32 %s16, %s28
    %s98 = ssub.s32 %s17, %s24
    %s99 = sor.u32 %s97, %s98
    %p100 = scmp.eq.s32.totalorder %s99, 0
    %s102 = sadd.s32 %s101, 1
    %s103 = scalar_select %p100, %s101, %s102
    %p106 = pneg %p100
    %p107 = scmp.eq.s32.totalorder %s9, 1
    %p108 = por %p106, %p107
    %p109 = scmp.ne.s32.totalorder %s101, %s104
    %p110 = scmp.eq.s32.totalorder %s9, 0
    %p111 = por %p109, %p110
    %p112 = scmp.ne.s32.totalorder %s101, %s104
    %p113 = scmp.eq.s32.totalorder %s14, 1
    %p114 = por %p112, %p113
    %p115 = scmp.ne.s32.totalorder %s104, %s105
    %p116 = scmp.eq.s32.totalorder %s14, 0
    %p117 = por %p115, %p116
    %p118 = scmp.ne.s32.totalorder %s104, %s105
    %p119 = scmp.eq.s32.totalorder %s15, 1
    %p120 = por %p118, %p119
    %p122 = scmp.ne.s32.totalorder %s105, %s121
    %p123 = scmp.eq.s32.totalorder %s15, 0
    %p124 = por %p122, %p123
    %p125 = scmp.le.s32.totalorder 1, %s9
    %p126 = scmp.lt.s32.totalorder %s9, 3
    %p127 = pnand %p125, %p126
    %p128 = pneg %p127
    // Predicated region
    $region9: #{focus_forward.1} parent=5 // pred_check
      _
    $region10: #{focus_forward.1} parent=5 // pred_check_branch
      %130 = sbr.rel (%p127) target = $region12
    $region11: #{focus_forward.1} parent=5 // pred_region
      %s131 = ssub.s32 %s9, 1
      // Predicated region
      $region13: #{focus_forward.1} parent=11 // pred_check
        %p132 = pneg %p68
      $region14: #{focus_forward.1} parent=11 // pred_check_branch
        %134 = sbr.rel (%p132) target = $region16
      $region15: #{focus_forward.1} parent=11 // pred_region
        _
      $region16: #{focus_forward.1} parent=11 // pred_fallthru
        _
      // Predicated region
      $region17: #{focus_forward.1} parent=11 // pred_check
        %p135 = pneg %p89
      $region18: #{focus_forward.1} parent=11 // pred_check_branch
        %137 = sbr.rel (%p135) target = $region20
      $region19: #{focus_forward.1} parent=11 // pred_region
        _
      $region20: #{focus_forward.1} parent=11 // pred_fallthru
        _
    $region12: #{focus_forward.1} parent=5 // pred_fallthru
      _
    %p138 = scmp.lt.s32.totalorder %s9, 2
    // Predicated region
    $region21: #{focus_forward.1} parent=5 // pred_check
      %p139 = pneg %p138
    $region22: #{focus_forward.1} parent=5 // pred_check_branch
      %141 = sbr.rel (%p139) target = $region24
    $region23: #{focus_forward.1} parent=5 // pred_region
      // Predicated region
      $region25: #{focus_forward.1} parent=23 // pred_check
        %p142 = pneg %p41
      $region26: #{focus_forward.1} parent=23 // pred_check_branch
        %144 = sbr.rel (%p142) target = $region28
      $region27: #{focus_forward.1} parent=23 // pred_region
        %p145 = scmp.lt.s32.totalorder %s16, 1
        %s146 = scalar_select %p145, %s16, 1
        %s147 = smul.addr %s146, 54
        %s148 = smul.addr %s147, 4
        %s149 = scalar_lea.vmem %s0, %s148
      $region28: #{focus_forward.1} parent=23 // pred_fallthru
        _
    $region24: #{focus_forward.1} parent=5 // pred_fallthru
      _
    %p150 = scmp.le.s32.totalorder 1, %s9
    %p151 = scmp.lt.s32.totalorder %s9, 3
    %p152 = pnand %p150, %p151
    %p153 = pneg %p152
    // Predicated region
    $region29: #{focus_forward.1} parent=5 // pred_check
      _
    $region30: #{focus_forward.1} parent=5 // pred_check_branch
      %155 = sbr.rel (%p152) target = $region32
    $region31: #{focus_forward.1} parent=5 // pred_region
      %s156 = ssub.s32 %s9, 1
      %p157 = scmp.lt.s32.totalorder %s18, 1
      %s158 = scalar_select %p157, %s18, 1
      %s159 = smul.addr %s158, 54
      %s160 = smul.addr %s159, 4
      %s161 = scalar_lea.vmem %s0, %s160
      %p162 = pneg %p47
      %p163 = pneg %p44
      %p164 = pneg %p68
      %p165 = pneg %p65
      %p166 = pneg %p89
      %p167 = pneg %p86
      %p168 = pneg %p117
      %p169 = pneg %p114
      %s170 = smul.u32 2, %s19
      %p171 = scmp.lt.s32.totalorder %s18, 1
      %s172 = scalar_select %p171, %s18, 1
      %p173 = scmp.lt.s32.totalorder %s170, 1
      %s174 = scalar_select %p173, %s170, 1
      %s175 = smul.addr %s172, 8
      %s176 = sadd.s32 %s174, %s175
      %s177 = smul.addr %s176, 8
      %s178 = scalar_lea.vmem %s3, %s177
      %p179 = scmp.lt.s32.totalorder %s18, 1
      %s180 = scalar_select %p179, %s18, 1
      %s181 = smul.addr %s180, 54
      %s182 = smul.addr %s181, 4
      %s183 = scalar_lea.vmem %s0, %s182
      %s184 = smul.u32 2, %s19
      %p185 = scmp.lt.s32.totalorder %s18, 1
      %s186 = scalar_select %p185, %s18, 1
      %p187 = scmp.lt.s32.totalorder %s184, 1
      %s188 = scalar_select %p187, %s184, 1
      %s189 = smul.addr %s186, 8
      %s190 = sadd.s32 %s188, %s189
      %s191 = smul.addr %s190, 8
      %s192 = scalar_lea.vmem %s3, %s191
      %s193 = smul.u32 2, %s19
      %s195 = smul.u32 %s19, 16
      %s196 = smul.u32 %s195, 3
      %s197 = smul.addr %s196, 4
      %s198 = scalar_lea.vmem %s183, %s197
      %v199 = vld [vmem:[%s198] sm:$0xf]
      %v200 = vld [vmem:[%s198 + $0x4] sm:$0xf]
      %v201 = vld [vmem:[%s198 + $0xc] sm:$0xf]
      %v202 = vld [vmem:[%s198 + $0x10] sm:$0xf]
      %v203 = vld [vmem:[%s198 + $0x18] sm:$0xf]
      %v204 = vld [vmem:[%s198 + $0x1c] sm:$0xf]
      %v205 = vld [vmem:[%s198 + $0x24] sm:$0xf]
      %v206 = vld [vmem:[%s198 + $0x28] sm:$0xf]
      %v207 = vld [vmem:[%s198 + $0x30] sm:$0xf]
      %v208 = vld [vmem:[%s198 + $0x34] sm:$0xf]
      %v209 = vld [vmem:[%s198 + $0x3c] sm:$0xf]
      %v210 = vld [vmem:[%s198 + $0x40] sm:$0xf]
      %v211 = vld [vmem:[%s198 + $0x48] sm:$0xf]
      %v212 = vld [vmem:[%s198 + $0x4c] sm:$0xf]
      %v213 = vld [vmem:[%s198 + $0x54] sm:$0xf]
      %v214 = vld [vmem:[%s198 + $0x58] sm:$0xf]
      %v215 = vld [vmem:[%s198 + $0x60] sm:$0xf]
      %v216 = vld [vmem:[%s198 + $0x64] sm:$0xf]
      %v217 = vld [vmem:[%s198 + $0x6c] sm:$0xf]
      %v218 = vld [vmem:[%s198 + $0x70] sm:$0xf]
      %v219 = vld [vmem:[%s198 + $0x78] sm:$0xf]
      %v220 = vld [vmem:[%s198 + $0x7c] sm:$0xf]
      %v221 = vld [vmem:[%s198 + $0x84] sm:$0xf]
      %v222 = vld [vmem:[%s198 + $0x88] sm:$0xf]
      %v223 = vld [vmem:[%s198 + $0x90] sm:$0xf]
      %v224 = vld [vmem:[%s198 + $0x94] sm:$0xf]
      %v225 = vld [vmem:[%s198 + $0x9c] sm:$0xf]
      %v226 = vld [vmem:[%s198 + $0xa0] sm:$0xf]
      %v227 = vld [vmem:[%s198 + $0xa8] sm:$0xf]
      %v228 = vld [vmem:[%s198 + $0xac] sm:$0xf]
      %v229 = vld [vmem:[%s198 + $0xb4] sm:$0xf]
      %v230 = vld [vmem:[%s198 + $0xb8] sm:$0xf]
      %v231 = vld [vmem:[%s1] sm:$0xf]
      %v232 = vld [vmem:[%s1 + $0x4] sm:$0xf]
      %v233 = vld [vmem:[%s198 + $0x8] sm:$0x1]
      %v234 = vld [vmem:[%s198 + $0x14] sm:$0x1]
      %v235 = vld [vmem:[%s198 + $0x20] sm:$0x1]
      %v236 = vld [vmem:[%s198 + $0x2c] sm:$0x1]
      %v237 = vld [vmem:[%s198 + $0x38] sm:$0x1]
      %v238 = vld [vmem:[%s198 + $0x44] sm:$0x1]
      %v239 = vld [vmem:[%s198 + $0x50] sm:$0x1]
      %v240 = vld [vmem:[%s198 + $0x5c] sm:$0x1]
      %v241 = vld [vmem:[%s198 + $0x68] sm:$0x1]
      %v242 = vld [vmem:[%s198 + $0x74] sm:$0x1]
      %v243 = vld [vmem:[%s198 + $0x80] sm:$0x1]
      %v244 = vld [vmem:[%s198 + $0x8c] sm:$0x1]
      %v245 = vld [vmem:[%s198 + $0x98] sm:$0x1]
      %v246 = vld [vmem:[%s198 + $0xa4] sm:$0x1]
      %v247 = vld [vmem:[%s198 + $0xb0] sm:$0x1]
      %v248 = vld [vmem:[%s198 + $0xbc] sm:$0x1]
      %vm249 = vsmask.f32 3328
      %vm250 = vsmask.f32 7440
      %vm251 = vmor %vm249, %vm250
      %v253 = vshrl.u32 %v199, 16
      %v255 = vrot.slane %v253, 4
      %v256 = vshll.u32 %v199, 16
      %v258 = vrot.slane %v256, 5
      %v259 = vor.u32 %v255, %v258
      %v260 = vrot.slane %v259, 4
      %v262 = vshll.u32 %v200, 16
      %v264 = vrot.slane %v262, 5
      %v265 = vsel %vm251, %v260, %v264
      %v266 = vshrl.u32 %v200, 16
      %v268 = vrot.slane %v266, 4
      %v269 = vor.u32 %v268, %v264
      %v270 = vrot.slane %v269, 4
      %v272 = vshll.u32 %v233, 16
      %v274 = vrot.slane %v272, 5
      %v275 = vsel %vm251, %v270, %v274
      %v277 = vshrl.u32 %v201, 16
      %v279 = vrot.slane %v277, 4
      %v280 = vshll.u32 %v201, 16
      %v282 = vrot.slane %v280, 5
      %v283 = vor.u32 %v279, %v282
      %v284 = vrot.slane %v283, 4
      %v286 = vshll.u32 %v202, 16
      %v288 = vrot.slane %v286, 5
      %v289 = vsel %vm251, %v284, %v288
      %v290 = vshrl.u32 %v202, 16
      %v292 = vrot.slane %v290, 4
      %v293 = vor.u32 %v292, %v288
      %v294 = vrot.slane %v293, 4
      %v296 = vshll.u32 %v234, 16
      %v298 = vrot.slane %v296, 5
      %v299 = vsel %vm251, %v294, %v298
      %v301 = vshrl.u32 %v203, 16
      %v303 = vrot.slane %v301, 4
      %v304 = vshll.u32 %v203, 16
      %v306 = vrot.slane %v304, 5
      %v307 = vor.u32 %v303, %v306
      %v308 = vrot.slane %v307, 4
      %v310 = vshll.u32 %v204, 16
      %v312 = vrot.slane %v310, 5
      %v313 = vsel %vm251, %v308, %v312
      %v314 = vshrl.u32 %v204, 16
      %v316 = vrot.slane %v314, 4
      %v317 = vor.u32 %v316, %v312
      %v318 = vrot.slane %v317, 4
      %v320 = vshll.u32 %v235, 16
      %v322 = vrot.slane %v320, 5
      %v323 = vsel %vm251, %v318, %v322
      %v325 = vshrl.u32 %v205, 16
      %v327 = vrot.slane %v325, 4
      %v328 = vshll.u32 %v205, 16
      %v330 = vrot.slane %v328, 5
      %v331 = vor.u32 %v327, %v330
      %v332 = vrot.slane %v331, 4
      %v334 = vshll.u32 %v206, 16
      %v336 = vrot.slane %v334, 5
      %v337 = vsel %vm251, %v332, %v336
      %v338 = vshrl.u32 %v206, 16
      %v340 = vrot.slane %v338, 4
      %v341 = vor.u32 %v340, %v336
      %v342 = vrot.slane %v341, 4
      %v344 = vshll.u32 %v236, 16
      %v346 = vrot.slane %v344, 5
      %v347 = vsel %vm251, %v342, %v346
      %v349 = vshrl.u32 %v207, 16
      %v351 = vrot.slane %v349, 4
      %v352 = vshll.u32 %v207, 16
      %v354 = vrot.slane %v352, 5
      %v355 = vor.u32 %v351, %v354
      %v356 = vrot.slane %v355, 4
      %v358 = vshll.u32 %v208, 16
      %v360 = vrot.slane %v358, 5
      %v361 = vsel %vm251, %v356, %v360
      %v362 = vshrl.u32 %v208, 16
      %v364 = vrot.slane %v362, 4
      %v365 = vor.u32 %v364, %v360
      %v366 = vrot.slane %v365, 4
      %v368 = vshll.u32 %v237, 16
      %v370 = vrot.slane %v368, 5
      %v371 = vsel %vm251, %v366, %v370
      %v373 = vshrl.u32 %v209, 16
      %v375 = vrot.slane %v373, 4
      %v376 = vshll.u32 %v209, 16
      %v378 = vrot.slane %v376, 5
      %v379 = vor.u32 %v375, %v378
      %v380 = vrot.slane %v379, 4
      %v382 = vshll.u32 %v210, 16
      %v384 = vrot.slane %v382, 5
      %v385 = vsel %vm251, %v380, %v384
      %v386 = vshrl.u32 %v210, 16
      %v388 = vrot.slane %v386, 4
      %v389 = vor.u32 %v388, %v384
      %v390 = vrot.slane %v389, 4
      %v392 = vshll.u32 %v238, 16
      %v394 = vrot.slane %v392, 5
      %v395 = vsel %vm251, %v390, %v394
      %v397 = vshrl.u32 %v211, 16
      %v399 = vrot.slane %v397, 4
      %v400 = vshll.u32 %v211, 16
      %v402 = vrot.slane %v400, 5
      %v403 = vor.u32 %v399, %v402
      %v404 = vrot.slane %v403, 4
      %v406 = vshll.u32 %v212, 16
      %v408 = vrot.slane %v406, 5
      %v409 = vsel %vm251, %v404, %v408
      %v410 = vshrl.u32 %v212, 16
      %v412 = vrot.slane %v410, 4
      %v413 = vor.u32 %v412, %v408
      %v414 = vrot.slane %v413, 4
      %v416 = vshll.u32 %v239, 16
      %v418 = vrot.slane %v416, 5
      %v419 = vsel %vm251, %v414, %v418
      %v421 = vshrl.u32 %v213, 16
      %v423 = vrot.slane %v421, 4
      %v424 = vshll.u32 %v213, 16
      %v426 = vrot.slane %v424, 5
      %v427 = vor.u32 %v423, %v426
      %v428 = vrot.slane %v427, 4
      %v430 = vshll.u32 %v214, 16
      %v432 = vrot.slane %v430, 5
      %v433 = vsel %vm251, %v428, %v432
      %v434 = vshrl.u32 %v214, 16
      %v436 = vrot.slane %v434, 4
      %v437 = vor.u32 %v436, %v432
      %v438 = vrot.slane %v437, 4
      %v440 = vshll.u32 %v240, 16
      %v442 = vrot.slane %v440, 5
      %v443 = vsel %vm251, %v438, %v442
      %v445 = vshrl.u32 %v215, 16
      %v447 = vrot.slane %v445, 4
      %v448 = vshll.u32 %v215, 16
      %v450 = vrot.slane %v448, 5
      %v451 = vor.u32 %v447, %v450
      %v452 = vrot.slane %v451, 4
      %v454 = vshll.u32 %v216, 16
      %v456 = vrot.slane %v454, 5
      %v457 = vsel %vm251, %v452, %v456
      %v458 = vshrl.u32 %v216, 16
      %v460 = vrot.slane %v458, 4
      %v461 = vor.u32 %v460, %v456
      %v462 = vrot.slane %v461, 4
      %v464 = vshll.u32 %v241, 16
      %v466 = vrot.slane %v464, 5
      %v467 = vsel %vm251, %v462, %v466
      %v469 = vshrl.u32 %v217, 16
      %v471 = vrot.slane %v469, 4
      %v472 = vshll.u32 %v217, 16
      %v474 = vrot.slane %v472, 5
      %v475 = vor.u32 %v471, %v474
      %v476 = vrot.slane %v475, 4
      %v478 = vshll.u32 %v218, 16
      %v480 = vrot.slane %v478, 5
      %v481 = vsel %vm251, %v476, %v480
      %v482 = vshrl.u32 %v218, 16
      %v484 = vrot.slane %v482, 4
      %v485 = vor.u32 %v484, %v480
      %v486 = vrot.slane %v485, 4
      %v488 = vshll.u32 %v242, 16
      %v490 = vrot.slane %v488, 5
      %v491 = vsel %vm251, %v486, %v490
      %v493 = vshrl.u32 %v219, 16
      %v495 = vrot.slane %v493, 4
      %v496 = vshll.u32 %v219, 16
      %v498 = vrot.slane %v496, 5
      %v499 = vor.u32 %v495, %v498
      %v500 = vrot.slane %v499, 4
      %v502 = vshll.u32 %v220, 16
      %v504 = vrot.slane %v502, 5
      %v505 = vsel %vm251, %v500, %v504
      %v506 = vshrl.u32 %v220, 16
      %v508 = vrot.slane %v506, 4
      %v509 = vor.u32 %v508, %v504
      %v510 = vrot.slane %v509, 4
      %v512 = vshll.u32 %v243, 16
      %v514 = vrot.slane %v512, 5
      %v515 = vsel %vm251, %v510, %v514
      %v517 = vshrl.u32 %v221, 16
      %v519 = vrot.slane %v517, 4
      %v520 = vshll.u32 %v221, 16
      %v522 = vrot.slane %v520, 5
      %v523 = vor.u32 %v519, %v522
      %v524 = vrot.slane %v523, 4
      %v526 = vshll.u32 %v222, 16
      %v528 = vrot.slane %v526, 5
      %v529 = vsel %vm251, %v524, %v528
      %v530 = vshrl.u32 %v222, 16
      %v532 = vrot.slane %v530, 4
      %v533 = vor.u32 %v532, %v528
      %v534 = vrot.slane %v533, 4
      %v536 = vshll.u32 %v244, 16
      %v538 = vrot.slane %v536, 5
      %v539 = vsel %vm251, %v534, %v538
      %v541 = vshrl.u32 %v223, 16
      %v543 = vrot.slane %v541, 4
      %v544 = vshll.u32 %v223, 16
      %v546 = vrot.slane %v544, 5
      %v547 = vor.u32 %v543, %v546
      %v548 = vrot.slane %v547, 4
      %v550 = vshll.u32 %v224, 16
      %v552 = vrot.slane %v550, 5
      %v553 = vsel %vm251, %v548, %v552
      %v554 = vshrl.u32 %v224, 16
      %v556 = vrot.slane %v554, 4
      %v557 = vor.u32 %v556, %v552
      %v558 = vrot.slane %v557, 4
      %v560 = vshll.u32 %v245, 16
      %v562 = vrot.slane %v560, 5
      %v563 = vsel %vm251, %v558, %v562
      %v565 = vshrl.u32 %v225, 16
      %v567 = vrot.slane %v565, 4
      %v568 = vshll.u32 %v225, 16
      %v570 = vrot.slane %v568, 5
      %v571 = vor.u32 %v567, %v570
      %v572 = vrot.slane %v571, 4
      %v574 = vshll.u32 %v226, 16
      %v576 = vrot.slane %v574, 5
      %v577 = vsel %vm251, %v572, %v576
      %v578 = vshrl.u32 %v226, 16
      %v580 = vrot.slane %v578, 4
      %v581 = vor.u32 %v580, %v576
      %v582 = vrot.slane %v581, 4
      %v584 = vshll.u32 %v246, 16
      %v586 = vrot.slane %v584, 5
      %v587 = vsel %vm251, %v582, %v586
      %v589 = vshrl.u32 %v227, 16
      %v591 = vrot.slane %v589, 4
      %v592 = vshll.u32 %v227, 16
      %v594 = vrot.slane %v592, 5
      %v595 = vor.u32 %v591, %v594
      %v596 = vrot.slane %v595, 4
      %v598 = vshll.u32 %v228, 16
      %v600 = vrot.slane %v598, 5
      %v601 = vsel %vm251, %v596, %v600
      %v602 = vshrl.u32 %v228, 16
      %v604 = vrot.slane %v602, 4
      %v605 = vor.u32 %v604, %v600
      %v606 = vrot.slane %v605, 4
      %v608 = vshll.u32 %v247, 16
      %v610 = vrot.slane %v608, 5
      %v611 = vsel %vm251, %v606, %v610
      %v613 = vshrl.u32 %v229, 16
      %v615 = vrot.slane %v613, 4
      %v616 = vshll.u32 %v229, 16
      %v618 = vrot.slane %v616, 5
      %v619 = vor.u32 %v615, %v618
      %v620 = vrot.slane %v619, 4
      %v622 = vshll.u32 %v230, 16
      %v624 = vrot.slane %v622, 5
      %v625 = vsel %vm251, %v620, %v624
      %v626 = vshrl.u32 %v230, 16
      %v628 = vrot.slane %v626, 4
      %v629 = vor.u32 %v628, %v624
      %v630 = vrot.slane %v629, 4
      %v632 = vshll.u32 %v248, 16
      %v634 = vrot.slane %v632, 5
      %v635 = vsel %vm251, %v630, %v634
      %s636 = scalar_lea.vmem %s1, 8
      %v637 = vld [vmem:[%s636] sm:$0xf]
      %v638 = vld [vmem:[%s636 + $0x4] sm:$0xf]
      %v639 = vunpack.c.l.b16 %v265
      %v640 = vunpack.c.l.b16 %v275
      %v641 = vunpack.c.l.b16 %v289
      %v642 = vunpack.c.l.b16 %v299
      %v643 = vunpack.c.l.b16 %v313
      %v644 = vunpack.c.l.b16 %v323
      %v645 = vunpack.c.l.b16 %v337
      %v646 = vunpack.c.l.b16 %v347
      %v647 = vunpack.c.l.b16 %v361
      %v648 = vunpack.c.l.b16 %v371
      %v649 = vunpack.c.l.b16 %v385
      %v650 = vunpack.c.l.b16 %v395
      %v651 = vunpack.c.l.b16 %v409
      %v652 = vunpack.c.l.b16 %v419
      %v653 = vunpack.c.l.b16 %v433
      %v654 = vunpack.c.l.b16 %v443
      %v655 = vunpack.c.l.b16 %v457
      %v656 = vunpack.c.l.b16 %v467
      %v657 = vunpack.c.l.b16 %v481
      %v658 = vunpack.c.l.b16 %v491
      %v659 = vunpack.c.l.b16 %v505
      %v660 = vunpack.c.l.b16 %v515
      %v661 = vunpack.c.l.b16 %v529
      %v662 = vunpack.c.l.b16 %v539
      %v663 = vunpack.c.l.b16 %v553
      %v664 = vunpack.c.l.b16 %v563
      %v665 = vunpack.c.l.b16 %v577
      %v666 = vunpack.c.l.b16 %v587
      %v667 = vunpack.c.l.b16 %v601
      %v668 = vunpack.c.l.b16 %v611
      %v669 = vunpack.c.l.b16 %v625
      %v670 = vunpack.c.l.b16 %v635
      %v671 = vpack.c.b16 %v640, %v639
      %v672 = vpack.c.b16 %v642, %v641
      %v673 = vpack.c.b16 %v644, %v643
      %v674 = vpack.c.b16 %v646, %v645
      %v675 = vpack.c.b16 %v648, %v647
      %v676 = vpack.c.b16 %v650, %v649
      %v677 = vpack.c.b16 %v652, %v651
      %v678 = vpack.c.b16 %v654, %v653
      %v679 = vpack.c.b16 %v656, %v655
      %v680 = vpack.c.b16 %v658, %v657
      %v681 = vpack.c.b16 %v660, %v659
      %v682 = vpack.c.b16 %v662, %v661
      %v683 = vpack.c.b16 %v664, %v663
      %v684 = vpack.c.b16 %v666, %v665
      %v685 = vpack.c.b16 %v668, %v667
      %v686 = vpack.c.b16 %v670, %v669
      %v689 = vunpack.c.l.b16 %v637
      %v690 = vunpack.c.l.b16 %v638
      %v691 = vpack.c.b16 %v690, %v689
      %vm693 = vcmask 130048
      %v695 = vsel %vm693, %v671, 0
      %v698 = vsel %vm693, %v672, 0
      %v701 = vsel %vm693, %v673, 0
      %v704 = vsel %vm693, %v674, 0
      %v707 = vsel %vm693, %v675, 0
      %v710 = vsel %vm693, %v676, 0
      %v713 = vsel %vm693, %v677, 0
      %v716 = vsel %vm693, %v678, 0
      %v719 = vsel %vm693, %v679, 0
      %v722 = vsel %vm693, %v680, 0
      %v725 = vsel %vm693, %v681, 0
      %v728 = vsel %vm693, %v682, 0
      %v731 = vsel %vm693, %v683, 0
      %v734 = vsel %vm693, %v684, 0
      %v737 = vsel %vm693, %v685, 0
      %v740 = vsel %vm693, %v686, 0
      %742 = vmatprep.subr.bf16.mxu0 0
      %743 = vmatpush1.bf16.msra.mxu0 %v691
      %744 = vmatprep.subr.bf16.mxu0 0
      %745 = vmatpush1.bf16.msra.mxu0 0
      %746 = vmatprep.subr.bf16.mxu0 0
      %747 = vmatpush1.bf16.msra.mxu0 0
      %748 = vmatprep.subr.bf16.mxu0 0
      %749 = vmatpush1.bf16.msra.mxu0 0
      %750 = vmatprep.subr.bf16.mxu0 0
      %751 = vmatpush1.bf16.msra.mxu0 0
      %752 = vmatprep.subr.bf16.mxu0 0
      %753 = vmatpush1.bf16.msra.mxu0 0
      %754 = vmatprep.subr.bf16.mxu0 0
      %755 = vmatpush1.bf16.msra.mxu0 0
      %756 = vmatprep.subr.bf16.mxu0 0
      %757 = vmatpush1.bf16.msra.mxu0 0
      %758 = vmatprep.subr.bf16.mxu0 0
      %759 = vmatpush1.bf16.msra.mxu0 0
      %760 = vmatprep.subr.bf16.mxu0 0
      %761 = vmatpush1.bf16.msra.mxu0 0
      %762 = vmatprep.subr.bf16.mxu0 0
      %763 = vmatpush1.bf16.msra.mxu0 0
      %764 = vmatprep.subr.bf16.mxu0 0
      %765 = vmatpush1.bf16.msra.mxu0 0
      %766 = vmatprep.subr.bf16.mxu0 0
      %767 = vmatpush1.bf16.msra.mxu0 0
      %768 = vmatprep.subr.bf16.mxu0 0
      %769 = vmatpush1.bf16.msra.mxu0 0
      %770 = vmatprep.subr.bf16.mxu0 0
      %771 = vmatpush1.bf16.msra.mxu0 0
      %772 = vmatprep.subr.bf16.mxu0 0
      %773 = vmatpush1.bf16.msra.mxu0 0
      %774 = vmatprep.mubr.bf16.mxu0 0
      %775 = vmatmul.mubr.bf16.gmra.mrb[0].mxu0 %v695
      %v776 = vpop.f32.mrb[0].mxu0
      %v777 = vadd.f32 0.0, %v776
      %v778 = vpop.f32.mrb[0].mxu0
      %v779 = vpop.f32.mrb[0].mxu0
      %v780 = vadd.f32 0.0, %v779
      %v781 = vpop.f32.mrb[0].mxu0
      %782 = vmatprep.mubr.bf16.mxu0 0
      %783 = vmatmul.mubr.bf16.gmra.mrb[0].mxu0 %v698
      %v784 = vpop.f32.mrb[0].mxu0
      %v785 = vadd.f32 0.0, %v784
      %v786 = vpop.f32.mrb[0].mxu0
      %v787 = vpop.f32.mrb[0].mxu0
      %v788 = vadd.f32 0.0, %v787
      %v789 = vpop.f32.mrb[0].mxu0
      %790 = vmatprep.mubr.bf16.mxu0 0
      %791 = vmatmul.mubr.bf16.gmra.mrb[0].mxu0 %v701
      %v792 = vpop.f32.mrb[0].mxu0
      %v793 = vadd.f32 0.0, %v792
      %v794 = vpop.f32.mrb[0].mxu0
      %v795 = vpop.f32.mrb[0].mxu0
      %v796 = vadd.f32 0.0, %v795
      %v797 = vpop.f32.mrb[0].mxu0
      %798 = vmatprep.mubr.bf16.mxu0 0
      %799 = vmatmul.mubr.bf16.gmra.mrb[0].mxu0 %v704
      %v800 = vpop.f32.mrb[0].mxu0
      %v801 = vadd.f32 0.0, %v800
      %v802 = vpop.f32.mrb[0].mxu0
      %v803 = vpop.f32.mrb[0].mxu0
      %v804 = vadd.f32 0.0, %v803
      %v805 = vpop.f32.mrb[0].mxu0
      %806 = vmatprep.mubr.bf16.mxu0 0
      %807 = vmatmul.mubr.bf16.gmra.mrb[0].mxu0 %v707
      %v808 = vpop.f32.mrb[0].mxu0
      %v809 = vadd.f32 0.0, %v808
      %v810 = vpop.f32.mrb[0].mxu0
      %v811 = vpop.f32.mrb[0].mxu0
      %v812 = vadd.f32 0.0, %v811
      %v813 = vpop.f32.mrb[0].mxu0
      %814 = vmatprep.mubr.bf16.mxu0 0
      %815 = vmatmul.mubr.bf16.gmra.mrb[0].mxu0 %v710
      %v816 = vpop.f32.mrb[0].mxu0
      %v817 = vadd.f32 0.0, %v816
      %v818 = vpop.f32.mrb[0].mxu0
      %v819 = vpop.f32.mrb[0].mxu0
      %v820 = vadd.f32 0.0, %v819
      %v821 = vpop.f32.mrb[0].mxu0
      %822 = vmatprep.mubr.bf16.mxu0 0
      %823 = vmatmul.mubr.bf16.gmra.mrb[0].mxu0 %v713
      %v824 = vpop.f32.mrb[0].mxu0
      %v825 = vadd.f32 0.0, %v824
      %v826 = vpop.f32.mrb[0].mxu0
      %v827 = vpop.f32.mrb[0].mxu0
      %v828 = vadd.f32 0.0, %v827
      %v829 = vpop.f32.mrb[0].mxu0
      %830 = vmatprep.mubr.bf16.mxu0 0
      %831 = vmatmul.mubr.bf16.gmra.mrb[0].mxu0 %v716
      %v832 = vpop.f32.mrb[0].mxu0
      %v833 = vadd.f32 0.0, %v832
      %v834 = vpop.f32.mrb[0].mxu0
      %v835 = vpop.f32.mrb[0].mxu0
      %v836 = vadd.f32 0.0, %v835
      %v837 = vpop.f32.mrb[0].mxu0
      %838 = vmatprep.mubr.bf16.mxu0 0
      %839 = vmatmul.mubr.bf16.gmra.mrb[0].mxu0 %v719
      %v840 = vpop.f32.mrb[0].mxu0
      %v841 = vadd.f32 0.0, %v840
      %v842 = vpop.f32.mrb[0].mxu0
      %v843 = vpop.f32.mrb[0].mxu0
      %v844 = vadd.f32 0.0, %v843
      %v845 = vpop.f32.mrb[0].mxu0
      %846 = vmatprep.mubr.bf16.mxu0 0
      %847 = vmatmul.mubr.bf16.gmra.mrb[0].mxu0 %v722
      %v848 = vpop.f32.mrb[0].mxu0
      %v849 = vadd.f32 0.0, %v848
      %v850 = vpop.f32.mrb[0].mxu0
      %v851 = vpop.f32.mrb[0].mxu0
      %v852 = vadd.f32 0.0, %v851
      %v853 = vpop.f32.mrb[0].mxu0
      %854 = vmatprep.mubr.bf16.mxu0 0
      %855 = vmatmul.mubr.bf16.gmra.mrb[0].mxu0 %v725
      %v856 = vpop.f32.mrb[0].mxu0
      %v857 = vadd.f32 0.0, %v856
      %v858 = vpop.f32.mrb[0].mxu0
      %v859 = vpop.f32.mrb[0].mxu0
      %v860 = vadd.f32 0.0, %v859
      %v861 = vpop.f32.mrb[0].mxu0
      %862 = vmatprep.mubr.bf16.mxu0 0
      %863 = vmatmul.mubr.bf16.gmra.mrb[0].mxu0 %v728
      %v864 = vpop.f32.mrb[0].mxu0
      %v865 = vadd.f32 0.0, %v864
      %v866 = vpop.f32.mrb[0].mxu0
      %v867 = vpop.f32.mrb[0].mxu0
      %v868 = vadd.f32 0.0, %v867
      %v869 = vpop.f32.mrb[0].mxu0
      %870 = vmatprep.mubr.bf16.mxu0 0
      %871 = vmatmul.mubr.bf16.gmra.mrb[0].mxu0 %v731
      %v872 = vpop.f32.mrb[0].mxu0
      %v873 = vadd.f32 0.0, %v872
      %v874 = vpop.f32.mrb[0].mxu0
      %v875 = vpop.f32.mrb[0].mxu0
      %v876 = vadd.f32 0.0, %v875
      %v877 = vpop.f32.mrb[0].mxu0
      %878 = vmatprep.mubr.bf16.mxu0 0
      %879 = vmatmul.mubr.bf16.gmra.mrb[0].mxu0 %v734
      %v880 = vpop.f32.mrb[0].mxu0
      %v881 = vadd.f32 0.0, %v880
      %v882 = vpop.f32.mrb[0].mxu0
      %v883 = vpop.f32.mrb[0].mxu0
      %v884 = vadd.f32 0.0, %v883
      %v885 = vpop.f32.mrb[0].mxu0
      %886 = vmatprep.mubr.bf16.mxu0 0
      %887 = vmatmul.mubr.bf16.gmra.mrb[0].mxu0 %v737
      %v888 = vpop.f32.mrb[0].mxu0
      %v889 = vadd.f32 0.0, %v888
      %v890 = vpop.f32.mrb[0].mxu0
      %v891 = vpop.f32.mrb[0].mxu0
      %v892 = vadd.f32 0.0, %v891
      %v893 = vpop.f32.mrb[0].mxu0
      %894 = vmatprep.mubr.bf16.mxu0 0
      %895 = vmatmul.mubr.bf16.gmra.mrb[0].mxu0 %v740
      %v896 = vpop.f32.mrb[0].mxu0
      %v897 = vadd.f32 0.0, %v896
      %v898 = vpop.f32.mrb[0].mxu0
      %v899 = vpop.f32.mrb[0].mxu0
      %v900 = vadd.f32 0.0, %v899
      %v901 = vpop.f32.mrb[0].mxu0
      %902 = vdwg.mxu0
      %v935 = vunpack.c.l.b16 %v199
      %v936 = vunpack.c.l.b16 %v200
      %v937 = vunpack.c.l.b16 %v201
      %v938 = vunpack.c.l.b16 %v202
      %v939 = vunpack.c.l.b16 %v203
      %v940 = vunpack.c.l.b16 %v204
      %v941 = vunpack.c.l.b16 %v205
      %v942 = vunpack.c.l.b16 %v206
      %v943 = vunpack.c.l.b16 %v207
      %v944 = vunpack.c.l.b16 %v208
      %v945 = vunpack.c.l.b16 %v209
      %v946 = vunpack.c.l.b16 %v210
      %v947 = vunpack.c.l.b16 %v211
      %v948 = vunpack.c.l.b16 %v212
      %v949 = vunpack.c.l.b16 %v213
      %v950 = vunpack.c.l.b16 %v214
      %v951 = vunpack.c.l.b16 %v215
      %v952 = vunpack.c.l.b16 %v216
      %v953 = vunpack.c.l.b16 %v217
      %v954 = vunpack.c.l.b16 %v218
      %v955 = vunpack.c.l.b16 %v219
      %v956 = vunpack.c.l.b16 %v220
      %v957 = vunpack.c.l.b16 %v221
      %v958 = vunpack.c.l.b16 %v222
      %v959 = vunpack.c.l.b16 %v223
      %v960 = vunpack.c.l.b16 %v224
      %v961 = vunpack.c.l.b16 %v225
      %v962 = vunpack.c.l.b16 %v226
      %v963 = vunpack.c.l.b16 %v227
      %v964 = vunpack.c.l.b16 %v228
      %v965 = vunpack.c.l.b16 %v229
      %v966 = vunpack.c.l.b16 %v230
      %v967 = vpack.c.b16 %v936, %v935
      %v968 = vpack.c.b16 %v938, %v937
      %v969 = vpack.c.b16 %v940, %v939
      %v970 = vpack.c.b16 %v942, %v941
      %v971 = vpack.c.b16 %v944, %v943
      %v972 = vpack.c.b16 %v946, %v945
      %v973 = vpack.c.b16 %v948, %v947
      %v974 = vpack.c.b16 %v950, %v949
      %v975 = vpack.c.b16 %v952, %v951
      %v976 = vpack.c.b16 %v954, %v953
      %v977 = vpack.c.b16 %v956, %v955
      %v978 = vpack.c.b16 %v958, %v957
      %v979 = vpack.c.b16 %v960, %v959
      %v980 = vpack.c.b16 %v962, %v961
      %v981 = vpack.c.b16 %v964, %v963
      %v982 = vpack.c.b16 %v966, %v965
      %v985 = vunpack.c.l.b16 %v231
      %v986 = vunpack.c.l.b16 %v232
      %v987 = vpack.c.b16 %v986, %v985
      %v990 = vsel %vm693, %v967, 0
      %v993 = vsel %vm693, %v968, 0
      %v996 = vsel %vm693, %v969, 0
      %v999 = vsel %vm693, %v970, 0
      %v1002 = vsel %vm693, %v971, 0
      %v1005 = vsel %vm693, %v972, 0
      %v1008 = vsel %vm693, %v973, 0
      %v1011 = vsel %vm693, %v974, 0
      %v1014 = vsel %vm693, %v975, 0
      %v1017 = vsel %vm693, %v976, 0
      %v1020 = vsel %vm693, %v977, 0
      %v1023 = vsel %vm693, %v978, 0
      %v1026 = vsel %vm693, %v979, 0
      %v1029 = vsel %vm693, %v980, 0
      %v1032 = vsel %vm693, %v981, 0
      %v1035 = vsel %vm693, %v982, 0
      %1037 = vmatprep.subr.bf16.mxu0 0
      %1038 = vmatpush1.bf16.msra.mxu0 %v987
      %1039 = vmatprep.subr.bf16.mxu0 0
      %1040 = vmatpush1.bf16.msra.mxu0 0
      %1041 = vmatprep.subr.bf16.mxu0 0
      %1042 = vmatpush1.bf16.msra.mxu0 0
      %1043 = vmatprep.subr.bf16.mxu0 0
      %1044 = vmatpush1.bf16.msra.mxu0 0
      %1045 = vmatprep.subr.bf16.mxu0 0
      %1046 = vmatpush1.bf16.msra.mxu0 0
      %1047 = vmatprep.subr.bf16.mxu0 0
      %1048 = vmatpush1.bf16.msra.mxu0 0
      %1049 = vmatprep.subr.bf16.mxu0 0
      %1050 = vmatpush1.bf16.msra.mxu0 0
      %1051 = vmatprep.subr.bf16.mxu0 0
      %1052 = vmatpush1.bf16.msra.mxu0 0
      %1053 = vmatprep.subr.bf16.mxu0 0
      %1054 = vmatpush1.bf16.msra.mxu0 0
      %1055 = vmatprep.subr.bf16.mxu0 0
      %1056 = vmatpush1.bf16.msra.mxu0 0
      %1057 = vmatprep.subr.bf16.mxu0 0
      %1058 = vmatpush1.bf16.msra.mxu0 0
      %1059 = vmatprep.subr.bf16.mxu0 0
      %1060 = vmatpush1.bf16.msra.mxu0 0
      %1061 = vmatprep.subr.bf16.mxu0 0
      %1062 = vmatpush1.bf16.msra.mxu0 0
      %1063 = vmatprep.subr.bf16.mxu0 0
      %1064 = vmatpush1.bf16.msra.mxu0 0
      %1065 = vmatprep.subr.bf16.mxu0 0
      %1066 = vmatpush1.bf16.msra.mxu0 0
      %1067 = vmatprep.subr.bf16.mxu0 0
      %1068 = vmatpush1.bf16.msra.mxu0 0
      %1069 = vmatprep.mubr.bf16.mxu0 0
      %1070 = vmatmul.mubr.bf16.gmra.mrb[0].mxu0 %v990
      %v1071 = vpop.f32.mrb[0].mxu0
      %v1072 = vadd.f32 %v777, %v1071
      %v1073 = vpop.f32.mrb[0].mxu0
      %v1074 = vpop.f32.mrb[0].mxu0
      %v1075 = vadd.f32 %v780, %v1074
      %v1076 = vpop.f32.mrb[0].mxu0
      %1077 = vmatprep.mubr.bf16.mxu0 0
      %1078 = vmatmul.mubr.bf16.gmra.mrb[0].mxu0 %v993
      %v1079 = vpop.f32.mrb[0].mxu0
      %v1080 = vadd.f32 %v785, %v1079
      %v1081 = vpop.f32.mrb[0].mxu0
      %v1082 = vpop.f32.mrb[0].mxu0
      %v1083 = vadd.f32 %v788, %v1082
      %v1084 = vpop.f32.mrb[0].mxu0
      %1085 = vmatprep.mubr.bf16.mxu0 0
      %1086 = vmatmul.mubr.bf16.gmra.mrb[0].mxu0 %v996
      %v1087 = vpop.f32.mrb[0].mxu0
      %v1088 = vadd.f32 %v793, %v1087
      %v1089 = vpop.f32.mrb[0].mxu0
      %v1090 = vpop.f32.mrb[0].mxu0
      %v1091 = vadd.f32 %v796, %v1090
      %v1092 = vpop.f32.mrb[0].mxu0
      %1093 = vmatprep.mubr.bf16.mxu0 0
      %1094 = vmatmul.mubr.bf16.gmra.mrb[0].mxu0 %v999
      %v1095 = vpop.f32.mrb[0].mxu0
      %v1096 = vadd.f32 %v801, %v1095
      %v1097 = vpop.f32.mrb[0].mxu0
      %v1098 = vpop.f32.mrb[0].mxu0
      %v1099 = vadd.f32 %v804, %v1098
      %v1100 = vpop.f32.mrb[0].mxu0
      %1101 = vmatprep.mubr.bf16.mxu0 0
      %1102 = vmatmul.mubr.bf16.gmra.mrb[0].mxu0 %v1002
      %v1103 = vpop.f32.mrb[0].mxu0
      %v1104 = vadd.f32 %v809, %v1103
      %v1105 = vpop.f32.mrb[0].mxu0
      %v1106 = vpop.f32.mrb[0].mxu0
      %v1107 = vadd.f32 %v812, %v1106
      %v1108 = vpop.f32.mrb[0].mxu0
      %1109 = vmatprep.mubr.bf16.mxu0 0
      %1110 = vmatmul.mubr.bf16.gmra.mrb[0].mxu0 %v1005
      %v1111 = vpop.f32.mrb[0].mxu0
      %v1112 = vadd.f32 %v817, %v1111
      %v1113 = vpop.f32.mrb[0].mxu0
      %v1114 = vpop.f32.mrb[0].mxu0
      %v1115 = vadd.f32 %v820, %v1114
      %v1116 = vpop.f32.mrb[0].mxu0
      %1117 = vmatprep.mubr.bf16.mxu0 0
      %1118 = vmatmul.mubr.bf16.gmra.mrb[0].mxu0 %v1008
      %v1119 = vpop.f32.mrb[0].mxu0
      %v1120 = vadd.f32 %v825, %v1119
      %v1121 = vpop.f32.mrb[0].mxu0
      %v1122 = vpop.f32.mrb[0].mxu0
      %v1123 = vadd.f32 %v828, %v1122
      %v1124 = vpop.f32.mrb[0].mxu0
      %1125 = vmatprep.mubr.bf16.mxu0 0
      %1126 = vmatmul.mubr.bf16.gmra.mrb[0].mxu0 %v1011
      %v1127 = vpop.f32.mrb[0].mxu0
      %v1128 = vadd.f32 %v833, %v1127
      %v1129 = vpop.f32.mrb[0].mxu0
      %v1130 = vpop.f32.mrb[0].mxu0
      %v1131 = vadd.f32 %v836, %v1130
      %v1132 = vpop.f32.mrb[0].mxu0
      %1133 = vmatprep.mubr.bf16.mxu0 0
      %1134 = vmatmul.mubr.bf16.gmra.mrb[0].mxu0 %v1014
      %v1135 = vpop.f32.mrb[0].mxu0
      %v1136 = vadd.f32 %v841, %v1135
      %v1137 = vpop.f32.mrb[0].mxu0
      %v1138 = vpop.f32.mrb[0].mxu0
      %v1139 = vadd.f32 %v844, %v1138
      %v1140 = vpop.f32.mrb[0].mxu0
      %1141 = vmatprep.mubr.bf16.mxu0 0
      %1142 = vmatmul.mubr.bf16.gmra.mrb[0].mxu0 %v1017
      %v1143 = vpop.f32.mrb[0].mxu0
      %v1144 = vadd.f32 %v849, %v1143
      %v1145 = vpop.f32.mrb[0].mxu0
      %v1146 = vpop.f32.mrb[0].mxu0
      %v1147 = vadd.f32 %v852, %v1146
      %v1148 = vpop.f32.mrb[0].mxu0
      %1149 = vmatprep.mubr.bf16.mxu0 0
      %1150 = vmatmul.mubr.bf16.gmra.mrb[0].mxu0 %v1020
      %v1151 = vpop.f32.mrb[0].mxu0
      %v1152 = vadd.f32 %v857, %v1151
      %v1153 = vpop.f32.mrb[0].mxu0
      %v1154 = vpop.f32.mrb[0].mxu0
      %v1155 = vadd.f32 %v860, %v1154
      %v1156 = vpop.f32.mrb[0].mxu0
      %1157 = vmatprep.mubr.bf16.mxu0 0
      %1158 = vmatmul.mubr.bf16.gmra.mrb[0].mxu0 %v1023
      %v1159 = vpop.f32.mrb[0].mxu0
      %v1160 = vadd.f32 %v865, %v1159
      %v1161 = vpop.f32.mrb[0].mxu0
      %v1162 = vpop.f32.mrb[0].mxu0
      %v1163 = vadd.f32 %v868, %v1162
      %v1164 = vpop.f32.mrb[0].mxu0
      %1165 = vmatprep.mubr.bf16.mxu0 0
      %1166 = vmatmul.mubr.bf16.gmra.mrb[0].mxu0 %v1026
      %v1167 = vpop.f32.mrb[0].mxu0
      %v1168 = vadd.f32 %v873, %v1167
      %v1169 = vpop.f32.mrb[0].mxu0
      %v1170 = vpop.f32.mrb[0].mxu0
      %v1171 = vadd.f32 %v876, %v1170
      %v1172 = vpop.f32.mrb[0].mxu0
      %1173 = vmatprep.mubr.bf16.mxu0 0
      %1174 = vmatmul.mubr.bf16.gmra.mrb[0].mxu0 %v1029
      %v1175 = vpop.f32.mrb[0].mxu0
      %v1176 = vadd.f32 %v881, %v1175
      %v1177 = vpop.f32.mrb[0].mxu0
      %v1178 = vpop.f32.mrb[0].mxu0
      %v1179 = vadd.f32 %v884, %v1178
      %v1180 = vpop.f32.mrb[0].mxu0
      %1181 = vmatprep.mubr.bf16.mxu0 0
      %1182 = vmatmul.mubr.bf16.gmra.mrb[0].mxu0 %v1032
      %v1183 = vpop.f32.mrb[0].mxu0
      %v1184 = vadd.f32 %v889, %v1183
      %v1185 = vpop.f32.mrb[0].mxu0
      %v1186 = vpop.f32.mrb[0].mxu0
      %v1187 = vadd.f32 %v892, %v1186
      %v1188 = vpop.f32.mrb[0].mxu0
      %1189 = vmatprep.mubr.bf16.mxu0 0
      %1190 = vmatmul.mubr.bf16.gmra.mrb[0].mxu0 %v1035
      %v1191 = vpop.f32.mrb[0].mxu0
      %v1192 = vadd.f32 %v897, %v1191
      %v1193 = vpop.f32.mrb[0].mxu0
      %v1194 = vpop.f32.mrb[0].mxu0
      %v1195 = vadd.f32 %v900, %v1194
      %v1196 = vpop.f32.mrb[0].mxu0
      %1197 = vdwg.mxu0
      %v1198 = vld [vmem:[%s198] sm:$0xe]
      %v1199 = vld [vmem:[%s198 + $0xc] sm:$0xe]
      %v1200 = vld [vmem:[%s198 + $0x18] sm:$0xe]
      %v1201 = vld [vmem:[%s198 + $0x24] sm:$0xe]
      %v1202 = vld [vmem:[%s198 + $0x30] sm:$0xe]
      %v1203 = vld [vmem:[%s198 + $0x3c] sm:$0xe]
      %v1204 = vld [vmem:[%s198 + $0x48] sm:$0xe]
      %v1205 = vld [vmem:[%s198 + $0x54] sm:$0xe]
      %v1206 = vld [vmem:[%s198 + $0x60] sm:$0xe]
      %v1207 = vld [vmem:[%s198 + $0x6c] sm:$0xe]
      %v1208 = vld [vmem:[%s198 + $0x78] sm:$0xe]
      %v1209 = vld [vmem:[%s198 + $0x84] sm:$0xe]
      %v1210 = vld [vmem:[%s198 + $0x90] sm:$0xe]
      %v1211 = vld [vmem:[%s198 + $0x9c] sm:$0xe]
      %v1212 = vld [vmem:[%s198 + $0xa8] sm:$0xe]
      %v1213 = vld [vmem:[%s198 + $0xb4] sm:$0xe]
      %vm1246 = vcmask 1042432
      %vm1247 = vcmask 1046532
      %vm1248 = vmor %vm1246, %vm1247
      %v1249 = vrot.slane %v1198, 5
      %v1250 = vrot.slane %v1249, 4
      %v1251 = vrot.slane %v200, 5
      %v1252 = vsel %vm1248, %v1250, %v1251
      %v1253 = vrot.slane %v1251, 4
      %v1254 = vrot.slane %v233, 5
      %v1255 = vsel %vm1248, %v1253, %v1254
      %v1256 = vrot.slane %v1199, 5
      %v1257 = vrot.slane %v1256, 4
      %v1258 = vrot.slane %v202, 5
      %v1259 = vsel %vm1248, %v1257, %v1258
      %v1260 = vrot.slane %v1258, 4
      %v1261 = vrot.slane %v234, 5
      %v1262 = vsel %vm1248, %v1260, %v1261
      %v1263 = vrot.slane %v1200, 5
      %v1264 = vrot.slane %v1263, 4
      %v1265 = vrot.slane %v204, 5
      %v1266 = vsel %vm1248, %v1264, %v1265
      %v1267 = vrot.slane %v1265, 4
      %v1268 = vrot.slane %v235, 5
      %v1269 = vsel %vm1248, %v1267, %v1268
      %v1270 = vrot.slane %v1201, 5
      %v1271 = vrot.slane %v1270, 4
      %v1272 = vrot.slane %v206, 5
      %v1273 = vsel %vm1248, %v1271, %v1272
      %v1274 = vrot.slane %v1272, 4
      %v1275 = vrot.slane %v236, 5
      %v1276 = vsel %vm1248, %v1274, %v1275
      %v1277 = vrot.slane %v1202, 5
      %v1278 = vrot.slane %v1277, 4
      %v1279 = vrot.slane %v208, 5
      %v1280 = vsel %vm1248, %v1278, %v1279
      %v1281 = vrot.slane %v1279, 4
      %v1282 = vrot.slane %v237, 5
      %v1283 = vsel %vm1248, %v1281, %v1282
      %v1284 = vrot.slane %v1203, 5
      %v1285 = vrot.slane %v1284, 4
      %v1286 = vrot.slane %v210, 5
      %v1287 = vsel %vm1248, %v1285, %v1286
      %v1288 = vrot.slane %v1286, 4
      %v1289 = vrot.slane %v238, 5
      %v1290 = vsel %vm1248, %v1288, %v1289
      %v1291 = vrot.slane %v1204, 5
      %v1292 = vrot.slane %v1291, 4
      %v1293 = vrot.slane %v212, 5
      %v1294 = vsel %vm1248, %v1292, %v1293
      %v1295 = vrot.slane %v1293, 4
      %v1296 = vrot.slane %v239, 5
      %v1297 = vsel %vm1248, %v1295, %v1296
      %v1298 = vrot.slane %v1205, 5
      %v1299 = vrot.slane %v1298, 4
      %v1300 = vrot.slane %v214, 5
      %v1301 = vsel %vm1248, %v1299, %v1300
      %v1302 = vrot.slane %v1300, 4
      %v1303 = vrot.slane %v240, 5
      %v1304 = vsel %vm1248, %v1302, %v1303
      %v1305 = vrot.slane %v1206, 5
      %v1306 = vrot.slane %v1305, 4
      %v1307 = vrot.slane %v216, 5
      %v1308 = vsel %vm1248, %v1306, %v1307
      %v1309 = vrot.slane %v1307, 4
      %v1310 = vrot.slane %v241, 5
      %v1311 = vsel %vm1248, %v1309, %v1310
      %v1312 = vrot.slane %v1207, 5
      %v1313 = vrot.slane %v1312, 4
      %v1314 = vrot.slane %v218, 5
      %v1315 = vsel %vm1248, %v1313, %v1314
      %v1316 = vrot.slane %v1314, 4
      %v1317 = vrot.slane %v242, 5
      %v1318 = vsel %vm1248, %v1316, %v1317
      %v1319 = vrot.slane %v1208, 5
      %v1320 = vrot.slane %v1319, 4
      %v1321 = vrot.slane %v220, 5
      %v1322 = vsel %vm1248, %v1320, %v1321
      %v1323 = vrot.slane %v1321, 4
      %v1324 = vrot.slane %v243, 5
      %v1325 = vsel %vm1248, %v1323, %v1324
      %v1326 = vrot.slane %v1209, 5
      %v1327 = vrot.slane %v1326, 4
      %v1328 = vrot.slane %v222, 5
      %v1329 = vsel %vm1248, %v1327, %v1328
      %v1330 = vrot.slane %v1328, 4
      %v1331 = vrot.slane %v244, 5
      %v1332 = vsel %vm1248, %v1330, %v1331
      %v1333 = vrot.slane %v1210, 5
      %v1334 = vrot.slane %v1333, 4
      %v1335 = vrot.slane %v224, 5
      %v1336 = vsel %vm1248, %v1334, %v1335
      %v1337 = vrot.slane %v1335, 4
      %v1338 = vrot.slane %v245, 5
      %v1339 = vsel %vm1248, %v1337, %v1338
      %v1340 = vrot.slane %v1211, 5
      %v1341 = vrot.slane %v1340, 4
      %v1342 = vrot.slane %v226, 5
      %v1343 = vsel %vm1248, %v1341, %v1342
      %v1344 = vrot.slane %v1342, 4
      %v1345 = vrot.slane %v246, 5
      %v1346 = vsel %vm1248, %v1344, %v1345
      %v1347 = vrot.slane %v1212, 5
      %v1348 = vrot.slane %v1347, 4
      %v1349 = vrot.slane %v228, 5
      %v1350 = vsel %vm1248, %v1348, %v1349
      %v1351 = vrot.slane %v1349, 4
      %v1352 = vrot.slane %v247, 5
      %v1353 = vsel %vm1248, %v1351, %v1352
      %v1354 = vrot.slane %v1213, 5
      %v1355 = vrot.slane %v1354, 4
      %v1356 = vrot.slane %v230, 5
      %v1357 = vsel %vm1248, %v1355, %v1356
      %v1358 = vrot.slane %v1356, 4
      %v1359 = vrot.slane %v248, 5
      %v1360 = vsel %vm1248, %v1358, %v1359
      %s1361 = scalar_lea.vmem %s1, 16
      %v1362 = vld [vmem:[%s1361] sm:$0xf]
      %v1363 = vld [vmem:[%s1361 + $0x4] sm:$0xf]
      %v1364 = vunpack.c.l.b16 %v1252
      %v1365 = vunpack.c.l.b16 %v1255
      %v1366 = vunpack.c.l.b16 %v1259
      %v1367 = vunpack.c.l.b16 %v1262
      %v1368 = vunpack.c.l.b16 %v1266
      %v1369 = vunpack.c.l.b16 %v1269
      %v1370 = vunpack.c.l.b16 %v1273
      %v1371 = vunpack.c.l.b16 %v1276
      %v1372 = vunpack.c.l.b16 %v1280
      %v1373 = vunpack.c.l.b16 %v1283
      %v1374 = vunpack.c.l.b16 %v1287
      %v1375 = vunpack.c.l.b16 %v1290
      %v1376 = vunpack.c.l.b16 %v1294
      %v1377 = vunpack.c.l.b16 %v1297
      %v1378 = vunpack.c.l.b16 %v1301
      %v1379 = vunpack.c.l.b16 %v1304
      %v1380 = vunpack.c.l.b16 %v1308
      %v1381 = vunpack.c.l.b16 %v1311
      %v1382 = vunpack.c.l.b16 %v1315
      %v1383 = vunpack.c.l.b16 %v1318
      %v1384 = vunpack.c.l.b16 %v1322
      %v1385 = vunpack.c.l.b16 %v1325
      %v1386 = vunpack.c.l.b16 %v1329
      %v1387 = vunpack.c.l.b16 %v1332
      %v1388 = vunpack.c.l.b16 %v1336
      %v1389 = vunpack.c.l.b16 %v1339
      %v1390 = vunpack.c.l.b16 %v1343
      %v1391 = vunpack.c.l.b16 %v1346
      %v1392 = vunpack.c.l.b16 %v1350
      %v1393 = vunpack.c.l.b16 %v1353
      %v1394 = vunpack.c.l.b16 %v1357
      %v1395 = vunpack.c.l.b16 %v1360
      %v1396 = vpack.c.b16 %v1365, %v1364
      %v1397 = vpack.c.b16 %v1367, %v1366
      %v1398 = vpack.c.b16 %v1369, %v1368
      %v1399 = vpack.c.b16 %v1371, %v1370
      %v1400 = vpack.c.b16 %v1373, %v1372
      %v1401 = vpack.c.b16 %v1375, %v1374
      %v1402 = vpack.c.b16 %v1377, %v1376
      %v1403 = vpack.c.b16 %v1379, %v1378
      %v1404 = vpack.c.b16 %v1381, %v1380
      %v1405 = vpack.c.b16 %v1383, %v1382
      %v1406 = vpack.c.b16 %v1385, %v1384
      %v1407 = vpack.c.b16 %v1387, %v1386
      %v1408 = vpack.c.b16 %v1389, %v1388
      %v1409 = vpack.c.b16 %v1391, %v1390
      %v1410 = vpack.c.b16 %v1393, %v1392
      %v1411 = vpack.c.b16 %v1395, %v1394
      %v1414 = vunpack.c.l.b16 %v1362
      %v1415 = vunpack.c.l.b16 %v1363
      %v1416 = vpack.c.b16 %v1415, %v1414
      %v1419 = vsel %vm693, %v1396, 0
      %v1422 = vsel %vm693, %v1397, 0
      %v1425 = vsel %vm693, %v1398, 0
      %v1428 = vsel %vm693, %v1399, 0
      %v1431 = vsel %vm693, %v1400, 0
      %v1434 = vsel %vm693, %v1401, 0
      %v1437 = vsel %vm693, %v1402, 0
      %v1440 = vsel %vm693, %v1403, 0
      %v1443 = vsel %vm693, %v1404, 0
      %v1446 = vsel %vm693, %v1405, 0
      %v1449 = vsel %vm693, %v1406, 0
      %v1452 = vsel %vm693, %v1407, 0
      %v1455 = vsel %vm693, %v1408, 0
      %v1458 = vsel %vm693, %v1409, 0
      %v1461 = vsel %vm693, %v1410, 0
      %v1464 = vsel %vm693, %v1411, 0
      %1466 = vmatprep.subr.bf16.mxu0 0
      %1467 = vmatpush1.bf16.msra.mxu0 %v1416
      %1468 = vmatprep.subr.bf16.mxu0 0
      %1469 = vmatpush1.bf16.msra.mxu0 0
      %1470 = vmatprep.subr.bf16.mxu0 0
      %1471 = vmatpush1.bf16.msra.mxu0 0
      %1472 = vmatprep.subr.bf16.mxu0 0
      %1473 = vmatpush1.bf16.msra.mxu0 0
      %1474 = vmatprep.subr.bf16.mxu0 0
      %1475 = vmatpush1.bf16.msra.mxu0 0
      %1476 = vmatprep.subr.bf16.mxu0 0
      %1477 = vmatpush1.bf16.msra.mxu0 0
      %1478 = vmatprep.subr.bf16.mxu0 0
      %1479 = vmatpush1.bf16.msra.mxu0 0
      %1480 = vmatprep.subr.bf16.mxu0 0
      %1481 = vmatpush1.bf16.msra.mxu0 0
      %1482 = vmatprep.subr.bf16.mxu0 0
      %1483 = vmatpush1.bf16.msra.mxu0 0
      %1484 = vmatprep.subr.bf16.mxu0 0
      %1485 = vmatpush1.bf16.msra.mxu0 0
      %1486 = vmatprep.subr.bf16.mxu0 0
      %1487 = vmatpush1.bf16.msra.mxu0 0
      %1488 = vmatprep.subr.bf16.mxu0 0
      %1489 = vmatpush1.bf16.msra.mxu0 0
      %1490 = vmatprep.subr.bf16.mxu0 0
      %1491 = vmatpush1.bf16.msra.mxu0 0
      %1492 = vmatprep.subr.bf16.mxu0 0
      %1493 = vmatpush1.bf16.msra.mxu0 0
      %1494 = vmatprep.subr.bf16.mxu0 0
      %1495 = vmatpush1.bf16.msra.mxu0 0
      %1496 = vmatprep.subr.bf16.mxu0 0
      %1497 = vmatpush1.bf16.msra.mxu0 0
      %1498 = vmatprep.mubr.bf16.mxu0 0
      %1499 = vmatmul.mubr.bf16.gmra.mrb[0].mxu0 %v1419
      %v1500 = vpop.f32.mrb[0].mxu0
      %v1501 = vadd.f32 0.0, %v1500
      %v1502 = vpop.f32.mrb[0].mxu0
      %v1503 = vpop.f32.mrb[0].mxu0
      %v1504 = vadd.f32 0.0, %v1503
      %v1505 = vpop.f32.mrb[0].mxu0
      %1506 = vmatprep.mubr.bf16.mxu0 0
      %1507 = vmatmul.mubr.bf16.gmra.mrb[0].mxu0 %v1422
      %v1508 = vpop.f32.mrb[0].mxu0
      %v1509 = vadd.f32 0.0, %v1508
      %v1510 = vpop.f32.mrb[0].mxu0
      %v1511 = vpop.f32.mrb[0].mxu0
      %v1512 = vadd.f32 0.0, %v1511
      %v1513 = vpop.f32.mrb[0].mxu0
      %1514 = vmatprep.mubr.bf16.mxu0 0
      %1515 = vmatmul.mubr.bf16.gmra.mrb[0].mxu0 %v1425
      %v1516 = vpop.f32.mrb[0].mxu0
      %v1517 = vadd.f32 0.0, %v1516
      %v1518 = vpop.f32.mrb[0].mxu0
      %v1519 = vpop.f32.mrb[0].mxu0
      %v1520 = vadd.f32 0.0, %v1519
      %v1521 = vpop.f32.mrb[0].mxu0
      %1522 = vmatprep.mubr.bf16.mxu0 0
      %1523 = vmatmul.mubr.bf16.gmra.mrb[0].mxu0 %v1428
      %v1524 = vpop.f32.mrb[0].mxu0
      %v1525 = vadd.f32 0.0, %v1524
      %v1526 = vpop.f32.mrb[0].mxu0
      %v1527 = vpop.f32.mrb[0].mxu0
      %v1528 = vadd.f32 0.0, %v1527
      %v1529 = vpop.f32.mrb[0].mxu0
      %1530 = vmatprep.mubr.bf16.mxu0 0
      %1531 = vmatmul.mubr.bf16.gmra.mrb[0].mxu0 %v1431
      %v1532 = vpop.f32.mrb[0].mxu0
      %v1533 = vadd.f32 0.0, %v1532
      %v1534 = vpop.f32.mrb[0].mxu0
      %v1535 = vpop.f32.mrb[0].mxu0
      %v1536 = vadd.f32 0.0, %v1535
      %v1537 = vpop.f32.mrb[0].mxu0
      %1538 = vmatprep.mubr.bf16.mxu0 0
      %1539 = vmatmul.mubr.bf16.gmra.mrb[0].mxu0 %v1434
      %v1540 = vpop.f32.mrb[0].mxu0
      %v1541 = vadd.f32 0.0, %v1540
      %v1542 = vpop.f32.mrb[0].mxu0
      %v1543 = vpop.f32.mrb[0].mxu0
      %v1544 = vadd.f32 0.0, %v1543
      %v1545 = vpop.f32.mrb[0].mxu0
      %1546 = vmatprep.mubr.bf16.mxu0 0
      %1547 = vmatmul.mubr.bf16.gmra.mrb[0].mxu0 %v1437
      %v1548 = vpop.f32.mrb[0].mxu0
      %v1549 = vadd.f32 0.0, %v1548
      %v1550 = vpop.f32.mrb[0].mxu0
      %v1551 = vpop.f32.mrb[0].mxu0
      %v1552 = vadd.f32 0.0, %v1551
      %v1553 = vpop.f32.mrb[0].mxu0
      %1554 = vmatprep.mubr.bf16.mxu0 0
      %1555 = vmatmul.mubr.bf16.gmra.mrb[0].mxu0 %v1440
      %v1556 = vpop.f32.mrb[0].mxu0
      %v1557 = vadd.f32 0.0, %v1556
      %v1558 = vpop.f32.mrb[0].mxu0
      %v1559 = vpop.f32.mrb[0].mxu0
      %v1560 = vadd.f32 0.0, %v1559
      %v1561 = vpop.f32.mrb[0].mxu0
      %1562 = vmatprep.mubr.bf16.mxu0 0
      %1563 = vmatmul.mubr.bf16.gmra.mrb[0].mxu0 %v1443
      %v1564 = vpop.f32.mrb[0].mxu0
      %v1565 = vadd.f32 0.0, %v1564
      %v1566 = vpop.f32.mrb[0].mxu0
      %v1567 = vpop.f32.mrb[0].mxu0
      %v1568 = vadd.f32 0.0, %v1567
      %v1569 = vpop.f32.mrb[0].mxu0
      %1570 = vmatprep.mubr.bf16.mxu0 0
      %1571 = vmatmul.mubr.bf16.gmra.mrb[0].mxu0 %v1446
      %v1572 = vpop.f32.mrb[0].mxu0
      %v1573 = vadd.f32 0.0, %v1572
      %v1574 = vpop.f32.mrb[0].mxu0
      %v1575 = vpop.f32.mrb[0].mxu0
      %v1576 = vadd.f32 0.0, %v1575
      %v1577 = vpop.f32.mrb[0].mxu0
      %1578 = vmatprep.mubr.bf16.mxu0 0
      %1579 = vmatmul.mubr.bf16.gmra.mrb[0].mxu0 %v1449
      %v1580 = vpop.f32.mrb[0].mxu0
      %v1581 = vadd.f32 0.0, %v1580
      %v1582 = vpop.f32.mrb[0].mxu0
      %v1583 = vpop.f32.mrb[0].mxu0
      %v1584 = vadd.f32 0.0, %v1583
      %v1585 = vpop.f32.mrb[0].mxu0
      %1586 = vmatprep.mubr.bf16.mxu0 0
      %1587 = vmatmul.mubr.bf16.gmra.mrb[0].mxu0 %v1452
      %v1588 = vpop.f32.mrb[0].mxu0
      %v1589 = vadd.f32 0.0, %v1588
      %v1590 = vpop.f32.mrb[0].mxu0
      %v1591 = vpop.f32.mrb[0].mxu0
      %v1592 = vadd.f32 0.0, %v1591
      %v1593 = vpop.f32.mrb[0].mxu0
      %1594 = vmatprep.mubr.bf16.mxu0 0
      %1595 = vmatmul.mubr.bf16.gmra.mrb[0].mxu0 %v1455
      %v1596 = vpop.f32.mrb[0].mxu0
      %v1597 = vadd.f32 0.0, %v1596
      %v1598 = vpop.f32.mrb[0].mxu0
      %v1599 = vpop.f32.mrb[0].mxu0
      %v1600 = vadd.f32 0.0, %v1599
      %v1601 = vpop.f32.mrb[0].mxu0
      %1602 = vmatprep.mubr.bf16.mxu0 0
      %1603 = vmatmul.mubr.bf16.gmra.mrb[0].mxu0 %v1458
      %v1604 = vpop.f32.mrb[0].mxu0
      %v1605 = vadd.f32 0.0, %v1604
      %v1606 = vpop.f32.mrb[0].mxu0
      %v1607 = vpop.f32.mrb[0].mxu0
      %v1608 = vadd.f32 0.0, %v1607
      %v1609 = vpop.f32.mrb[0].mxu0
      %1610 = vmatprep.mubr.bf16.mxu0 0
      %1611 = vmatmul.mubr.bf16.gmra.mrb[0].mxu0 %v1461
      %v1612 = vpop.f32.mrb[0].mxu0
      %v1613 = vadd.f32 0.0, %v1612
      %v1614 = vpop.f32.mrb[0].mxu0
      %v1615 = vpop.f32.mrb[0].mxu0
      %v1616 = vadd.f32 0.0, %v1615
      %v1617 = vpop.f32.mrb[0].mxu0
      %1618 = vmatprep.mubr.bf16.mxu0 0
      %1619 = vmatmul.mubr.bf16.gmra.mrb[0].mxu0 %v1464
      %v1620 = vpop.f32.mrb[0].mxu0
      %v1621 = vadd.f32 0.0, %v1620
      %v1622 = vpop.f32.mrb[0].mxu0
      %v1623 = vpop.f32.mrb[0].mxu0
      %v1624 = vadd.f32 0.0, %v1623
      %v1625 = vpop.f32.mrb[0].mxu0
      %1626 = vdwg.mxu0
      %v1627 = vadd.f32 %v1072, %v1501
      %v1628 = vadd.f32 %v1075, %v1504
      %v1629 = vadd.f32 %v1080, %v1509
      %v1630 = vadd.f32 %v1083, %v1512
      %v1631 = vadd.f32 %v1088, %v1517
      %v1632 = vadd.f32 %v1091, %v1520
      %v1633 = vadd.f32 %v1096, %v1525
      %v1634 = vadd.f32 %v1099, %v1528
      %v1635 = vadd.f32 %v1104, %v1533
      %v1636 = vadd.f32 %v1107, %v1536
      %v1637 = vadd.f32 %v1112, %v1541
      %v1638 = vadd.f32 %v1115, %v1544
      %v1639 = vadd.f32 %v1120, %v1549
      %v1640 = vadd.f32 %v1123, %v1552
      %v1641 = vadd.f32 %v1128, %v1557
      %v1642 = vadd.f32 %v1131, %v1560
      %v1643 = vadd.f32 %v1136, %v1565
      %v1644 = vadd.f32 %v1139, %v1568
      %v1645 = vadd.f32 %v1144, %v1573
      %v1646 = vadd.f32 %v1147, %v1576
      %v1647 = vadd.f32 %v1152, %v1581
      %v1648 = vadd.f32 %v1155, %v1584
      %v1649 = vadd.f32 %v1160, %v1589
      %v1650 = vadd.f32 %v1163, %v1592
      %v1651 = vadd.f32 %v1168, %v1597
      %v1652 = vadd.f32 %v1171, %v1600
      %v1653 = vadd.f32 %v1176, %v1605
      %v1654 = vadd.f32 %v1179, %v1608
      %v1655 = vadd.f32 %v1184, %v1613
      %v1656 = vadd.f32 %v1187, %v1616
      %v1657 = vadd.f32 %v1192, %v1621
      %v1658 = vadd.f32 %v1195, %v1624
      %s1659 = sadd.s32 %s195, 1
      %s1660 = smul.u32 %s1659, 3
      %s1661 = smul.addr %s1660, 4
      %s1662 = scalar_lea.vmem %s183, %s1661
      %v1663 = vld [vmem:[%s1662] sm:$0xf]
      %v1664 = vld [vmem:[%s1662 + $0x4] sm:$0xf]
      %v1665 = vld [vmem:[%s1662 + $0xc] sm:$0xf]
      %v1666 = vld [vmem:[%s1662 + $0x10] sm:$0xf]
      %v1667 = vld [vmem:[%s1662 + $0x18] sm:$0xf]
      %v1668 = vld [vmem:[%s1662 + $0x1c] sm:$0xf]
      %v1669 = vld [vmem:[%s1662 + $0x24] sm:$0xf]
      %v1670 = vld [vmem:[%s1662 + $0x28] sm:$0xf]
      %v1671 = vld [vmem:[%s1662 + $0x30] sm:$0xf]
      %v1672 = vld [vmem:[%s1662 + $0x34] sm:$0xf]
      %v1673 = vld [vmem:[%s1662 + $0x3c] sm:$0xf]
      %v1674 = vld [vmem:[%s1662 + $0x40] sm:$0xf]
      %v1675 = vld [vmem:[%s1662 + $0x48] sm:$0xf]
      %v1676 = vld [vmem:[%s1662 + $0x4c] sm:$0xf]
      %v1677 = vld [vmem:[%s1662 + $0x54] sm:$0xf]
      %v1678 = vld [vmem:[%s1662 + $0x58] sm:$0xf]
      %v1679 = vld [vmem:[%s1662 + $0x60] sm:$0xf]
      %v1680 = vld [vmem:[%s1662 + $0x64] sm:$0xf]
      %v1681 = vld [vmem:[%s1662 + $0x6c] sm:$0xf]
      %v1682 = vld [vmem:[%s1662 + $0x70] sm:$0xf]
      %v1683 = vld [vmem:[%s1662 + $0x78] sm:$0xf]
      %v1684 = vld [vmem:[%s1662 + $0x7c] sm:$0xf]
      %v1685 = vld [vmem:[%s1662 + $0x84] sm:$0xf]
      %v1686 = vld [vmem:[%s1662 + $0x88] sm:$0xf]
      %v1687 = vld [vmem:[%s1662 + $0x90] sm:$0xf]
      %v1688 = vld [vmem:[%s1662 + $0x94] sm:$0xf]
      %v1689 = vld [vmem:[%s1662 + $0x9c] sm:$0xf]
      %v1690 = vld [vmem:[%s1662 + $0xa0] sm:$0xf]
      %v1691 = vld [vmem:[%s1662 + $0xa8] sm:$0xf]
      %v1692 = vld [vmem:[%s1662 + $0xac] sm:$0xf]
      %v1693 = vld [vmem:[%s1662 + $0xb4] sm:$0xf]
      %v1694 = vld [vmem:[%s1662 + $0xb8] sm:$0xf]
      %s1695 = scalar_lea.vmem %s1, 24
      %v1696 = vld [vmem:[%s1695] sm:$0xf]
      %v1697 = vld [vmem:[%s1695 + $0x4] sm:$0xf]
      %v1730 = vunpack.c.l.b16 %v1663
      %v1731 = vunpack.c.l.b16 %v1664
      %v1732 = vunpack.c.l.b16 %v1665
      %v1733 = vunpack.c.l.b16 %v1666
      %v1734 = vunpack.c.l.b16 %v1667
      %v1735 = vunpack.c.l.b16 %v1668
      %v1736 = vunpack.c.l.b16 %v1669
      %v1737 = vunpack.c.l.b16 %v1670
      %v1738 = vunpack.c.l.b16 %v1671
      %v1739 = vunpack.c.l.b16 %v1672
      %v1740 = vunpack.c.l.b16 %v1673
      %v1741 = vunpack.c.l.b16 %v1674
      %v1742 = vunpack.c.l.b16 %v1675
      %v1743 = vunpack.c.l.b16 %v1676
      %v1744 = vunpack.c.l.b16 %v1677
      %v1745 = vunpack.c.l.b16 %v1678
      %v1746 = vunpack.c.l.b16 %v1679
      %v1747 = vunpack.c.l.b16 %v1680
      %v1748 = vunpack.c.l.b16 %v1681
      %v1749 = vunpack.c.l.b16 %v1682
      %v1750 = vunpack.c.l.b16 %v1683
      %v1751 = vunpack.c.l.b16 %v1684
      %v1752 = vunpack.c.l.b16 %v1685
      %v1753 = vunpack.c.l.b16 %v1686
      %v1754 = vunpack.c.l.b16 %v1687
      %v1755 = vunpack.c.l.b16 %v1688
      %v1756 = vunpack.c.l.b16 %v1689
      %v1757 = vunpack.c.l.b16 %v1690
      %v1758 = vunpack.c.l.b16 %v1691
      %v1759 = vunpack.c.l.b16 %v1692
      %v1760 = vunpack.c.l.b16 %v1693
      %v1761 = vunpack.c.l.b16 %v1694
      %v1762 = vpack.c.b16 %v1731, %v1730
      %v1763 = vpack.c.b16 %v1733, %v1732
      %v1764 = vpack.c.b16 %v1735, %v1734
      %v1765 = vpack.c.b16 %v1737, %v1736
      %v1766 = vpack.c.b16 %v1739, %v1738
      %v1767 = vpack.c.b16 %v1741, %v1740
      %v1768 = vpack.c.b16 %v1743, %v1742
      %v1769 = vpack.c.b16 %v1745, %v1744
      %v1770 = vpack.c.b16 %v1747, %v1746
      %v1771 = vpack.c.b16 %v1749, %v1748
      %v1772 = vpack.c.b16 %v1751, %v1750
      %v1773 = vpack.c.b16 %v1753, %v1752
      %v1774 = vpack.c.b16 %v1755, %v1754
      %v1775 = vpack.c.b16 %v1757, %v1756
      %v1776 = vpack.c.b16 %v1759, %v1758
      %v1777 = vpack.c.b16 %v1761, %v1760
      %v1780 = vunpack.c.l.b16 %v1696
      %v1781 = vunpack.c.l.b16 %v1697
      %v1782 = vpack.c.b16 %v1781, %v1780
      %v1785 = vsel %vm693, %v1762, 0
      %v1788 = vsel %vm693, %v1763, 0
      %v1791 = vsel %vm693, %v1764, 0
      %v1794 = vsel %vm693, %v1765, 0
      %v1797 = vsel %vm693, %v1766, 0
      %v1800 = vsel %vm693, %v1767, 0
      %v1803 = vsel %vm693, %v1768, 0
      %v1806 = vsel %vm693, %v1769, 0
      %v1809 = vsel %vm693, %v1770, 0
      %v1812 = vsel %vm693, %v1771, 0
      %v1815 = vsel %vm693, %v1772, 0
      %v1818 = vsel %vm693, %v1773, 0
      %v1821 = vsel %vm693, %v1774, 0
      %v1824 = vsel %vm693, %v1775, 0
      %v1827 = vsel %vm693, %v1776, 0
      %v1830 = vsel %vm693, %v1777, 0
      %1832 = vmatprep.subr.bf16.mxu0 0
      %1833 = vmatpush1.bf16.msra.mxu0 %v1782
      %1834 = vmatprep.subr.bf16.mxu0 0
      %1835 = vmatpush1.bf16.msra.mxu0 0
      %1836 = vmatprep.subr.bf16.mxu0 0
      %1837 = vmatpush1.bf16.msra.mxu0 0
      %1838 = vmatprep.subr.bf16.mxu0 0
      %1839 = vmatpush1.bf16.msra.mxu0 0
      %1840 = vmatprep.subr.bf16.mxu0 0
      %1841 = vmatpush1.bf16.msra.mxu0 0
      %1842 = vmatprep.subr.bf16.mxu0 0
      %1843 = vmatpush1.bf16.msra.mxu0 0
      %1844 = vmatprep.subr.bf16.mxu0 0
      %1845 = vmatpush1.bf16.msra.mxu0 0
      %1846 = vmatprep.subr.bf16.mxu0 0
      %1847 = vmatpush1.bf16.msra.mxu0 0
      %1848 = vmatprep.subr.bf16.mxu0 0
      %1849 = vmatpush1.bf16.msra.mxu0 0
      %1850 = vmatprep.subr.bf16.mxu0 0
      %1851 = vmatpush1.bf16.msra.mxu0 0
      %1852 = vmatprep.subr.bf16.mxu0 0
      %1853 = vmatpush1.bf16.msra.mxu0 0
      %1854 = vmatprep.subr.bf16.mxu0 0
      %1855 = vmatpush1.bf16.msra.mxu0 0
      %1856 = vmatprep.subr.bf16.mxu0 0
      %1857 = vmatpush1.bf16.msra.mxu0 0
      %1858 = vmatprep.subr.bf16.mxu0 0
      %1859 = vmatpush1.bf16.msra.mxu0 0
      %1860 = vmatprep.subr.bf16.mxu0 0
      %1861 = vmatpush1.bf16.msra.mxu0 0
      %1862 = vmatprep.subr.bf16.mxu0 0
      %1863 = vmatpush1.bf16.msra.mxu0 0
      %1864 = vmatprep.mubr.bf16.mxu0 0
      %1865 = vmatmul.mubr.bf16.gmra.mrb[0].mxu0 %v1785
      %v1866 = vpop.f32.mrb[0].mxu0
      %v1867 = vadd.f32 0.0, %v1866
      %v1868 = vpop.f32.mrb[0].mxu0
      %v1869 = vpop.f32.mrb[0].mxu0
      %v1870 = vadd.f32 0.0, %v1869
      %v1871 = vpop.f32.mrb[0].mxu0
      %1872 = vmatprep.mubr.bf16.mxu0 0
      %1873 = vmatmul.mubr.bf16.gmra.mrb[0].mxu0 %v1788
      %v1874 = vpop.f32.mrb[0].mxu0
      %v1875 = vadd.f32 0.0, %v1874
      %v1876 = vpop.f32.mrb[0].mxu0
      %v1877 = vpop.f32.mrb[0].mxu0
      %v1878 = vadd.f32 0.0, %v1877
      %v1879 = vpop.f32.mrb[0].mxu0
      %1880 = vmatprep.mubr.bf16.mxu0 0
      %1881 = vmatmul.mubr.bf16.gmra.mrb[0].mxu0 %v1791
      %v1882 = vpop.f32.mrb[0].mxu0
      %v1883 = vadd.f32 0.0, %v1882
      %v1884 = vpop.f32.mrb[0].mxu0
      %v1885 = vpop.f32.mrb[0].mxu0
      %v1886 = vadd.f32 0.0, %v1885
      %v1887 = vpop.f32.mrb[0].mxu0
      %1888 = vmatprep.mubr.bf16.mxu0 0
      %1889 = vmatmul.mubr.bf16.gmra.mrb[0].mxu0 %v1794
      %v1890 = vpop.f32.mrb[0].mxu0
      %v1891 = vadd.f32 0.0, %v1890
      %v1892 = vpop.f32.mrb[0].mxu0
      %v1893 = vpop.f32.mrb[0].mxu0
      %v1894 = vadd.f32 0.0, %v1893
      %v1895 = vpop.f32.mrb[0].mxu0
      %1896 = vmatprep.mubr.bf16.mxu0 0
      %1897 = vmatmul.mubr.bf16.gmra.mrb[0].mxu0 %v1797
      %v1898 = vpop.f32.mrb[0].mxu0
      %v1899 = vadd.f32 0.0, %v1898
      %v1900 = vpop.f32.mrb[0].mxu0
      %v1901 = vpop.f32.mrb[0].mxu0
      %v1902 = vadd.f32 0.0, %v1901
      %v1903 = vpop.f32.mrb[0].mxu0
      %1904 = vmatprep.mubr.bf16.mxu0 0
      %1905 = vmatmul.mubr.bf16.gmra.mrb[0].mxu0 %v1800
      %v1906 = vpop.f32.mrb[0].mxu0
      %v1907 = vadd.f32 0.0, %v1906
      %v1908 = vpop.f32.mrb[0].mxu0
      %v1909 = vpop.f32.mrb[0].mxu0
      %v1910 = vadd.f32 0.0, %v1909
      %v1911 = vpop.f32.mrb[0].mxu0
      %1912 = vmatprep.mubr.bf16.mxu0 0
      %1913 = vmatmul.mubr.bf16.gmra.mrb[0].mxu0 %v1803
      %v1914 = vpop.f32.mrb[0].mxu0
      %v1915 = vadd.f32 0.0, %v1914
      %v1916 = vpop.f32.mrb[0].mxu0
      %v1917 = vpop.f32.mrb[0].mxu0
      %v1918 = vadd.f32 0.0, %v1917
      %v1919 = vpop.f32.mrb[0].mxu0
      %1920 = vmatprep.mubr.bf16.mxu0 0
      %1921 = vmatmul.mubr.bf16.gmra.mrb[0].mxu0 %v1806
      %v1922 = vpop.f32.mrb[0].mxu0
      %v1923 = vadd.f32 0.0, %v1922
      %v1924 = vpop.f32.mrb[0].mxu0
      %v1925 = vpop.f32.mrb[0].mxu0
      %v1926 = vadd.f32 0.0, %v1925
      %v1927 = vpop.f32.mrb[0].mxu0
      %1928 = vmatprep.mubr.bf16.mxu0 0
      %1929 = vmatmul.mubr.bf16.gmra.mrb[0].mxu0 %v1809
      %v1930 = vpop.f32.mrb[0].mxu0
      %v1931 = vadd.f32 0.0, %v1930
      %v1932 = vpop.f32.mrb[0].mxu0
      %v1933 = vpop.f32.mrb[0].mxu0
      %v1934 = vadd.f32 0.0, %v1933
      %v1935 = vpop.f32.mrb[0].mxu0
      %1936 = vmatprep.mubr.bf16.mxu0 0
      %1937 = vmatmul.mubr.bf16.gmra.mrb[0].mxu0 %v1812
      %v1938 = vpop.f32.mrb[0].mxu0
      %v1939 = vadd.f32 0.0, %v1938
      %v1940 = vpop.f32.mrb[0].mxu0
      %v1941 = vpop.f32.mrb[0].mxu0
      %v1942 = vadd.f32 0.0, %v1941
      %v1943 = vpop.f32.mrb[0].mxu0
      %1944 = vmatprep.mubr.bf16.mxu0 0
      %1945 = vmatmul.mubr.bf16.gmra.mrb[0].mxu0 %v1815
      %v1946 = vpop.f32.mrb[0].mxu0
      %v1947 = vadd.f32 0.0, %v1946
      %v1948 = vpop.f32.mrb[0].mxu0
      %v1949 = vpop.f32.mrb[0].mxu0
      %v1950 = vadd.f32 0.0, %v1949
      %v1951 = vpop.f32.mrb[0].mxu0
      %1952 = vmatprep.mubr.bf16.mxu0 0
      %1953 = vmatmul.mubr.bf16.gmra.mrb[0].mxu0 %v1818
      %v1954 = vpop.f32.mrb[0].mxu0
      %v1955 = vadd.f32 0.0, %v1954
      %v1956 = vpop.f32.mrb[0].mxu0
      %v1957 = vpop.f32.mrb[0].mxu0
      %v1958 = vadd.f32 0.0, %v1957
      %v1959 = vpop.f32.mrb[0].mxu0
      %1960 = vmatprep.mubr.bf16.mxu0 0
      %1961 = vmatmul.mubr.bf16.gmra.mrb[0].mxu0 %v1821
      %v1962 = vpop.f32.mrb[0].mxu0
      %v1963 = vadd.f32 0.0, %v1962
      %v1964 = vpop.f32.mrb[0].mxu0
      %v1965 = vpop.f32.mrb[0].mxu0
      %v1966 = vadd.f32 0.0, %v1965
      %v1967 = vpop.f32.mrb[0].mxu0
      %1968 = vmatprep.mubr.bf16.mxu0 0
      %1969 = vmatmul.mubr.bf16.gmra.mrb[0].mxu0 %v1824
      %v1970 = vpop.f32.mrb[0].mxu0
      %v1971 = vadd.f32 0.0, %v1970
      %v1972 = vpop.f32.mrb[0].mxu0
      %v1973 = vpop.f32.mrb[0].mxu0
      %v1974 = vadd.f32 0.0, %v1973
      %v1975 = vpop.f32.mrb[0].mxu0
      %1976 = vmatprep.mubr.bf16.mxu0 0
      %1977 = vmatmul.mubr.bf16.gmra.mrb[0].mxu0 %v1827
      %v1978 = vpop.f32.mrb[0].mxu0
      %v1979 = vadd.f32 0.0, %v1978
      %v1980 = vpop.f32.mrb[0].mxu0
      %v1981 = vpop.f32.mrb[0].mxu0
      %v1982 = vadd.f32 0.0, %v1981
      %v1983 = vpop.f32.mrb[0].mxu0
      %1984 = vmatprep.mubr.bf16.mxu0 0
      %1985 = vmatmul.mubr.bf16.gmra.mrb[0].mxu0 %v1830
      %v1986 = vpop.f32.mrb[0].mxu0
      %v1987 = vadd.f32 0.0, %v1986
      %v1988 = vpop.f32.mrb[0].mxu0
      %v1989 = vpop.f32.mrb[0].mxu0
      %v1990 = vadd.f32 0.0, %v1989
      %v1991 = vpop.f32.mrb[0].mxu0
      %1992 = vdwg.mxu0
      %v1993 = vadd.f32 %v1627, %v1867
      %v1994 = vadd.f32 %v1628, %v1870
      %v1995 = vadd.f32 %v1629, %v1875
      %v1996 = vadd.f32 %v1630, %v1878
      %v1997 = vadd.f32 %v1631, %v1883
      %v1998 = vadd.f32 %v1632, %v1886
      %v1999 = vadd.f32 %v1633, %v1891
      %v2000 = vadd.f32 %v1634, %v1894
      %v2001 = vadd.f32 %v1635, %v1899
      %v2002 = vadd.f32 %v1636, %v1902
      %v2003 = vadd.f32 %v1637, %v1907
      %v2004 = vadd.f32 %v1638, %v1910
      %v2005 = vadd.f32 %v1639, %v1915
      %v2006 = vadd.f32 %v1640, %v1918
      %v2007 = vadd.f32 %v1641, %v1923
      %v2008 = vadd.f32 %v1642, %v1926
      %v2009 = vadd.f32 %v1643, %v1931
      %v2010 = vadd.f32 %v1644, %v1934
      %v2011 = vadd.f32 %v1645, %v1939
      %v2012 = vadd.f32 %v1646, %v1942
      %v2013 = vadd.f32 %v1647, %v1947
      %v2014 = vadd.f32 %v1648, %v1950
      %v2015 = vadd.f32 %v1649, %v1955
      %v2016 = vadd.f32 %v1650, %v1958
      %v2017 = vadd.f32 %v1651, %v1963
      %v2018 = vadd.f32 %v1652, %v1966
      %v2019 = vadd.f32 %v1653, %v1971
      %v2020 = vadd.f32 %v1654, %v1974
      %v2021 = vadd.f32 %v1655, %v1979
      %v2022 = vadd.f32 %v1656, %v1982
      %v2023 = vadd.f32 %v1657, %v1987
      %v2024 = vadd.f32 %v1658, %v1990
      %v2025 = vld [vmem:[%s1662] sm:$0xf]
      %v2026 = vld [vmem:[%s1662 + $0x4] sm:$0xf]
      %v2027 = vld [vmem:[%s1662 + $0x8] sm:$0x1]
      %v2028 = vld [vmem:[%s1662 + $0xc] sm:$0xf]
      %v2029 = vld [vmem:[%s1662 + $0x10] sm:$0xf]
      %v2030 = vld [vmem:[%s1662 + $0x14] sm:$0x1]
      %v2031 = vld [vmem:[%s1662 + $0x18] sm:$0xf]
      %v2032 = vld [vmem:[%s1662 + $0x1c] sm:$0xf]
      %v2033 = vld [vmem:[%s1662 + $0x20] sm:$0x1]
      %v2034 = vld [vmem:[%s1662 + $0x24] sm:$0xf]
      %v2035 = vld [vmem:[%s1662 + $0x28] sm:$0xf]
      %v2036 = vld [vmem:[%s1662 + $0x2c] sm:$0x1]
      %v2037 = vld [vmem:[%s1662 + $0x30] sm:$0xf]
      %v2038 = vld [vmem:[%s1662 + $0x34] sm:$0xf]
      %v2039 = vld [vmem:[%s1662 + $0x38] sm:$0x1]
      %v2040 = vld [vmem:[%s1662 + $0x3c] sm:$0xf]
      %v2041 = vld [vmem:[%s1662 + $0x40] sm:$0xf]
      %v2042 = vld [vmem:[%s1662 + $0x44] sm:$0x1]
      %v2043 = vld [vmem:[%s1662 + $0x48] sm:$0xf]
      %v2044 = vld [vmem:[%s1662 + $0x4c] sm:$0xf]
      %v2045 = vld [vmem:[%s1662 + $0x50] sm:$0x1]
      %v2046 = vld [vmem:[%s1662 + $0x54] sm:$0xf]
      %v2047 = vld [vmem:[%s1662 + $0x58] sm:$0xf]
      %v2048 = vld [vmem:[%s1662 + $0x5c] sm:$0x1]
      %v2049 = vld [vmem:[%s1662 + $0x60] sm:$0xf]
      %v2050 = vld [vmem:[%s1662 + $0x64] sm:$0xf]
      %v2051 = vld [vmem:[%s1662 + $0x68] sm:$0x1]
      %v2052 = vld [vmem:[%s1662 + $0x6c] sm:$0xf]
      %v2053 = vld [vmem:[%s1662 + $0x70] sm:$0xf]
      %v2054 = vld [vmem:[%s1662 + $0x74] sm:$0x1]
      %v2055 = vld [vmem:[%s1662 + $0x78] sm:$0xf]
      %v2056 = vld [vmem:[%s1662 + $0x7c] sm:$0xf]
      %v2057 = vld [vmem:[%s1662 + $0x80] sm:$0x1]
      %v2058 = vld [vmem:[%s1662 + $0x84] sm:$0xf]
      %v2059 = vld [vmem:[%s1662 + $0x88] sm:$0xf]
      %v2060 = vld [vmem:[%s1662 + $0x8c] sm:$0x1]
      %v2061 = vld [vmem:[%s1662 + $0x90] sm:$0xf]
      %v2062 = vld [vmem:[%s1662 + $0x94] sm:$0xf]
      %v2063 = vld [vmem:[%s1662 + $0x98] sm:$0x1]
      %v2064 = vld [vmem:[%s1662 + $0x9c] sm:$0xf]
      %v2065 = vld [vmem:[%s1662 + $0xa0] sm:$0xf]
      %v2066 = vld [vmem:[%s1662 + $0xa4] sm:$0x1]
      %v2067 = vld [vmem:[%s1662 + $0xa8] sm:$0xf]
      %v2068 = vld [vmem:[%s1662 + $0xac] sm:$0xf]
      %v2069 = vld [vmem:[%s1662 + $0xb0] sm:$0x1]
      %v2070 = vld [vmem:[%s1662 + $0xb4] sm:$0xf]
      %v2071 = vld [vmem:[%s1662 + $0xb8] sm:$0xf]
      %v2072 = vld [vmem:[%s1662 + $0xbc] sm:$0x1]
      %v2074 = vshrl.u32 %v2025, 16
      %v2076 = vrot.slane %v2074, 4
      %v2077 = vshll.u32 %v2025, 16
      %v2079 = vrot.slane %v2077, 5
      %v2080 = vor.u32 %v2076, %v2079
      %v2081 = vrot.slane %v2080, 4
      %v2083 = vshll.u32 %v2026, 16
      %v2085 = vrot.slane %v2083, 5
      %v2086 = vsel %vm251, %v2081, %v2085
      %v2087 = vshrl.u32 %v2026, 16
      %v2089 = vrot.slane %v2087, 4
      %v2090 = vor.u32 %v2089, %v2085
      %v2091 = vrot.slane %v2090, 4
      %v2093 = vshll.u32 %v2027, 16
      %v2095 = vrot.slane %v2093, 5
      %v2096 = vsel %vm251, %v2091, %v2095
      %v2098 = vshrl.u32 %v2028, 16
      %v2100 = vrot.slane %v2098, 4
      %v2101 = vshll.u32 %v2028, 16
      %v2103 = vrot.slane %v2101, 5
      %v2104 = vor.u32 %v2100, %v2103
      %v2105 = vrot.slane %v2104, 4
      %v2107 = vshll.u32 %v2029, 16
      %v2109 = vrot.slane %v2107, 5
      %v2110 = vsel %vm251, %v2105, %v2109
      %v2111 = vshrl.u32 %v2029, 16
      %v2113 = vrot.slane %v2111, 4
      %v2114 = vor.u32 %v2113, %v2109
      %v2115 = vrot.slane %v2114, 4
      %v2117 = vshll.u32 %v2030, 16
      %v2119 = vrot.slane %v2117, 5
      %v2120 = vsel %vm251, %v2115, %v2119
      %v2122 = vshrl.u32 %v2031, 16
      %v2124 = vrot.slane %v2122, 4
      %v2125 = vshll.u32 %v2031, 16
      %v2127 = vrot.slane %v2125, 5
      %v2128 = vor.u32 %v2124, %v2127
      %v2129 = vrot.slane %v2128, 4
      %v2131 = vshll.u32 %v2032, 16
      %v2133 = vrot.slane %v2131, 5
      %v2134 = vsel %vm251, %v2129, %v2133
      %v2135 = vshrl.u32 %v2032, 16
      %v2137 = vrot.slane %v2135, 4
      %v2138 = vor.u32 %v2137, %v2133
      %v2139 = vrot.slane %v2138, 4
      %v2141 = vshll.u32 %v2033, 16
      %v2143 = vrot.slane %v2141, 5
      %v2144 = vsel %vm251, %v2139, %v2143
      %v2146 = vshrl.u32 %v2034, 16
      %v2148 = vrot.slane %v2146, 4
      %v2149 = vshll.u32 %v2034, 16
      %v2151 = vrot.slane %v2149, 5
      %v2152 = vor.u32 %v2148, %v2151
      %v2153 = vrot.slane %v2152, 4
      %v2155 = vshll.u32 %v2035, 16
      %v2157 = vrot.slane %v2155, 5
      %v2158 = vsel %vm251, %v2153, %v2157
      %v2159 = vshrl.u32 %v2035, 16
      %v2161 = vrot.slane %v2159, 4
      %v2162 = vor.u32 %v2161, %v2157
      %v2163 = vrot.slane %v2162, 4
      %v2165 = vshll.u32 %v2036, 16
      %v2167 = vrot.slane %v2165, 5
      %v2168 = vsel %vm251, %v2163, %v2167
      %v2170 = vshrl.u32 %v2037, 16
      %v2172 = vrot.slane %v2170, 4
      %v2173 = vshll.u32 %v2037, 16
      %v2175 = vrot.slane %v2173, 5
      %v2176 = vor.u32 %v2172, %v2175
      %v2177 = vrot.slane %v2176, 4
      %v2179 = vshll.u32 %v2038, 16
      %v2181 = vrot.slane %v2179, 5
      %v2182 = vsel %vm251, %v2177, %v2181
      %v2183 = vshrl.u32 %v2038, 16
      %v2185 = vrot.slane %v2183, 4
      %v2186 = vor.u32 %v2185, %v2181
      %v2187 = vrot.slane %v2186, 4
      %v2189 = vshll.u32 %v2039, 16
      %v2191 = vrot.slane %v2189, 5
      %v2192 = vsel %vm251, %v2187, %v2191
      %v2194 = vshrl.u32 %v2040, 16
      %v2196 = vrot.slane %v2194, 4
      %v2197 = vshll.u32 %v2040, 16
      %v2199 = vrot.slane %v2197, 5
      %v2200 = vor.u32 %v2196, %v2199
      %v2201 = vrot.slane %v2200, 4
      %v2203 = vshll.u32 %v2041, 16
      %v2205 = vrot.slane %v2203, 5
      %v2206 = vsel %vm251, %v2201, %v2205
      %v2207 = vshrl.u32 %v2041, 16
      %v2209 = vrot.slane %v2207, 4
      %v2210 = vor.u32 %v2209, %v2205
      %v2211 = vrot.slane %v2210, 4
      %v2213 = vshll.u32 %v2042, 16
      %v2215 = vrot.slane %v2213, 5
      %v2216 = vsel %vm251, %v2211, %v2215
      %v2218 = vshrl.u32 %v2043, 16
      %v2220 = vrot.slane %v2218, 4
      %v2221 = vshll.u32 %v2043, 16
      %v2223 = vrot.slane %v2221, 5
      %v2224 = vor.u32 %v2220, %v2223
      %v2225 = vrot.slane %v2224, 4
      %v2227 = vshll.u32 %v2044, 16
      %v2229 = vrot.slane %v2227, 5
      %v2230 = vsel %vm251, %v2225, %v2229
      %v2231 = vshrl.u32 %v2044, 16
      %v2233 = vrot.slane %v2231, 4
      %v2234 = vor.u32 %v2233, %v2229
      %v2235 = vrot.slane %v2234, 4
      %v2237 = vshll.u32 %v2045, 16
      %v2239 = vrot.slane %v2237, 5
      %v2240 = vsel %vm251, %v2235, %v2239
      %v2242 = vshrl.u32 %v2046, 16
      %v2244 = vrot.slane %v2242, 4
      %v2245 = vshll.u32 %v2046, 16
      %v2247 = vrot.slane %v2245, 5
      %v2248 = vor.u32 %v2244, %v2247
      %v2249 = vrot.slane %v2248, 4
      %v2251 = vshll.u32 %v2047, 16
      %v2253 = vrot.slane %v2251, 5
      %v2254 = vsel %vm251, %v2249, %v2253
      %v2255 = vshrl.u32 %v2047, 16
      %v2257 = vrot.slane %v2255, 4
      %v2258 = vor.u32 %v2257, %v2253
      %v2259 = vrot.slane %v2258, 4
      %v2261 = vshll.u32 %v2048, 16
      %v2263 = vrot.slane %v2261, 5
      %v2264 = vsel %vm251, %v2259, %v2263
      %v2266 = vshrl.u32 %v2049, 16
      %v2268 = vrot.slane %v2266, 4
      %v2269 = vshll.u32 %v2049, 16
      %v2271 = vrot.slane %v2269, 5
      %v2272 = vor.u32 %v2268, %v2271
      %v2273 = vrot.slane %v2272, 4
      %v2275 = vshll.u32 %v2050, 16
      %v2277 = vrot.slane %v2275, 5
      %v2278 = vsel %vm251, %v2273, %v2277
      %v2279 = vshrl.u32 %v2050, 16
      %v2281 = vrot.slane %v2279, 4
      %v2282 = vor.u32 %v2281, %v2277
      %v2283 = vrot.slane %v2282, 4
      %v2285 = vshll.u32 %v2051, 16
      %v2287 = vrot.slane %v2285, 5
      %v2288 = vsel %vm251, %v2283, %v2287
      %v2290 = vshrl.u32 %v2052, 16
      %v2292 = vrot.slane %v2290, 4
      %v2293 = vshll.u32 %v2052, 16
      %v2295 = vrot.slane %v2293, 5
      %v2296 = vor.u32 %v2292, %v2295
      %v2297 = vrot.slane %v2296, 4
      %v2299 = vshll.u32 %v2053, 16
      %v2301 = vrot.slane %v2299, 5
      %v2302 = vsel %vm251, %v2297, %v2301
      %v2303 = vshrl.u32 %v2053, 16
      %v2305 = vrot.slane %v2303, 4
      %v2306 = vor.u32 %v2305, %v2301
      %v2307 = vrot.slane %v2306, 4
      %v2309 = vshll.u32 %v2054, 16
      %v2311 = vrot.slane %v2309, 5
      %v2312 = vsel %vm251, %v2307, %v2311
      %v2314 = vshrl.u32 %v2055, 16
      %v2316 = vrot.slane %v2314, 4
      %v2317 = vshll.u32 %v2055, 16
      %v2319 = vrot.slane %v2317, 5
      %v2320 = vor.u32 %v2316, %v2319
      %v2321 = vrot.slane %v2320, 4
      %v2323 = vshll.u32 %v2056, 16
      %v2325 = vrot.slane %v2323, 5
      %v2326 = vsel %vm251, %v2321, %v2325
      %v2327 = vshrl.u32 %v2056, 16
      %v2329 = vrot.slane %v2327, 4
      %v2330 = vor.u32 %v2329, %v2325
      %v2331 = vrot.slane %v2330, 4
      %v2333 = vshll.u32 %v2057, 16
      %v2335 = vrot.slane %v2333, 5
      %v2336 = vsel %vm251, %v2331, %v2335
      %v2338 = vshrl.u32 %v2058, 16
      %v2340 = vrot.slane %v2338, 4
      %v2341 = vshll.u32 %v2058, 16
      %v2343 = vrot.slane %v2341, 5
      %v2344 = vor.u32 %v2340, %v2343
      %v2345 = vrot.slane %v2344, 4
      %v2347 = vshll.u32 %v2059, 16
      %v2349 = vrot.slane %v2347, 5
      %v2350 = vsel %vm251, %v2345, %v2349
      %v2351 = vshrl.u32 %v2059, 16
      %v2353 = vrot.slane %v2351, 4
      %v2354 = vor.u32 %v2353, %v2349
      %v2355 = vrot.slane %v2354, 4
      %v2357 = vshll.u32 %v2060, 16
      %v2359 = vrot.slane %v2357, 5
      %v2360 = vsel %vm251, %v2355, %v2359
      %v2362 = vshrl.u32 %v2061, 16
      %v2364 = vrot.slane %v2362, 4
      %v2365 = vshll.u32 %v2061, 16
      %v2367 = vrot.slane %v2365, 5
      %v2368 = vor.u32 %v2364, %v2367
      %v2369 = vrot.slane %v2368, 4
      %v2371 = vshll.u32 %v2062, 16
      %v2373 = vrot.slane %v2371, 5
      %v2374 = vsel %vm251, %v2369, %v2373
      %v2375 = vshrl.u32 %v2062, 16
      %v2377 = vrot.slane %v2375, 4
      %v2378 = vor.u32 %v2377, %v2373
      %v2379 = vrot.slane %v2378, 4
      %v2381 = vshll.u32 %v2063, 16
      %v2383 = vrot.slane %v2381, 5
      %v2384 = vsel %vm251, %v2379, %v2383
      %v2386 = vshrl.u32 %v2064, 16
      %v2388 = vrot.slane %v2386, 4
      %v2389 = vshll.u32 %v2064, 16
      %v2391 = vrot.slane %v2389, 5
      %v2392 = vor.u32 %v2388, %v2391
      %v2393 = vrot.slane %v2392, 4
      %v2395 = vshll.u32 %v2065, 16
      %v2397 = vrot.slane %v2395, 5
      %v2398 = vsel %vm251, %v2393, %v2397
      %v2399 = vshrl.u32 %v2065, 16
      %v2401 = vrot.slane %v2399, 4
      %v2402 = vor.u32 %v2401, %v2397
      %v2403 = vrot.slane %v2402, 4
      %v2405 = vshll.u32 %v2066, 16
      %v2407 = vrot.slane %v2405, 5
      %v2408 = vsel %vm251, %v2403, %v2407
      %v2410 = vshrl.u32 %v2067, 16
      %v2412 = vrot.slane %v2410, 4
      %v2413 = vshll.u32 %v2067, 16
      %v2415 = vrot.slane %v2413, 5
      %v2416 = vor.u32 %v2412, %v2415
      %v2417 = vrot.slane %v2416, 4
      %v2419 = vshll.u32 %v2068, 16
      %v2421 = vrot.slane %v2419, 5
      %v2422 = vsel %vm251, %v2417, %v2421
      %v2423 = vshrl.u32 %v2068, 16
      %v2425 = vrot.slane %v2423, 4
      %v2426 = vor.u32 %v2425, %v2421
      %v2427 = vrot.slane %v2426, 4
      %v2429 = vshll.u32 %v2069, 16
      %v2431 = vrot.slane %v2429, 5
      %v2432 = vsel %vm251, %v2427, %v2431
      %v2434 = vshrl.u32 %v2070, 16
      %v2436 = vrot.slane %v2434, 4
      %v2437 = vshll.u32 %v2070, 16
      %v2439 = vrot.slane %v2437, 5
      %v2440 = vor.u32 %v2436, %v2439
      %v2441 = vrot.slane %v2440, 4
      %v2443 = vshll.u32 %v2071, 16
      %v2445 = vrot.slane %v2443, 5
      %v2446 = vsel %vm251, %v2441, %v2445
      %v2447 = vshrl.u32 %v2071, 16
      %v2449 = vrot.slane %v2447, 4
      %v2450 = vor.u32 %v2449, %v2445
      %v2451 = vrot.slane %v2450, 4
      %v2453 = vshll.u32 %v2072, 16
      %v2455 = vrot.slane %v2453, 5
      %v2456 = vsel %vm251, %v2451, %v2455
      %s2457 = scalar_lea.vmem %s1, 32
      %v2458 = vld [vmem:[%s2457] sm:$0xf]
      %v2459 = vld [vmem:[%s2457 + $0x4] sm:$0xf]
      %v2460 = vunpack.c.l.b16 %v2086
      %v2461 = vunpack.c.l.b16 %v2096
      %v2462 = vunpack.c.l.b16 %v2110
      %v2463 = vunpack.c.l.b16 %v2120
      %v2464 = vunpack.c.l.b16 %v2134
      %v2465 = vunpack.c.l.b16 %v2144
      %v2466 = vunpack.c.l.b16 %v2158
      %v2467 = vunpack.c.l.b16 %v2168
      %v2468 = vunpack.c.l.b16 %v2182
      %v2469 = vunpack.c.l.b16 %v2192
      %v2470 = vunpack.c.l.b16 %v2206
      %v2471 = vunpack.c.l.b16 %v2216
      %v2472 = vunpack.c.l.b16 %v2230
      %v2473 = vunpack.c.l.b16 %v2240
      %v2474 = vunpack.c.l.b16 %v2254
      %v2475 = vunpack.c.l.b16 %v2264
      %v2476 = vunpack.c.l.b16 %v2278
      %v2477 = vunpack.c.l.b16 %v2288
      %v2478 = vunpack.c.l.b16 %v2302
      %v2479 = vunpack.c.l.b16 %v2312
      %v2480 = vunpack.c.l.b16 %v2326
      %v2481 = vunpack.c.l.b16 %v2336
      %v2482 = vunpack.c.l.b16 %v2350
      %v2483 = vunpack.c.l.b16 %v2360
      %v2484 = vunpack.c.l.b16 %v2374
      %v2485 = vunpack.c.l.b16 %v2384
      %v2486 = vunpack.c.l.b16 %v2398
      %v2487 = vunpack.c.l.b16 %v2408
      %v2488 = vunpack.c.l.b16 %v2422
      %v2489 = vunpack.c.l.b16 %v2432
      %v2490 = vunpack.c.l.b16 %v2446
      %v2491 = vunpack.c.l.b16 %v2456
      %v2492 = vpack.c.b16 %v2461, %v2460
      %v2493 = vpack.c.b16 %v2463, %v2462
      %v2494 = vpack.c.b16 %v2465, %v2464
      %v2495 = vpack.c.b16 %v2467, %v2466
      %v2496 = vpack.c.b16 %v2469, %v2468
      %v2497 = vpack.c.b16 %v2471, %v2470
      %v2498 = vpack.c.b16 %v2473, %v2472
      %v2499 = vpack.c.b16 %v2475, %v2474
      %v2500 = vpack.c.b16 %v2477, %v2476
      %v2501 = vpack.c.b16 %v2479, %v2478
      %v2502 = vpack.c.b16 %v2481, %v2480
      %v2503 = vpack.c.b16 %v2483, %v2482
      %v2504 = vpack.c.b16 %v2485, %v2484
      %v2505 = vpack.c.b16 %v2487, %v2486
      %v2506 = vpack.c.b16 %v2489, %v2488
      %v2507 = vpack.c.b16 %v2491, %v2490
      %v2510 = vunpack.c.l.b16 %v2458
      %v2511 = vunpack.c.l.b16 %v2459
      %v2512 = vpack.c.b16 %v2511, %v2510
      %v2515 = vsel %vm693, %v2492, 0
      %v2518 = vsel %vm693, %v2493, 0
      %v2521 = vsel %vm693, %v2494, 0
      %v2524 = vsel %vm693, %v2495, 0
      %v2527 = vsel %vm693, %v2496, 0
      %v2530 = vsel %vm693, %v2497, 0
      %v2533 = vsel %vm693, %v2498, 0
      %v2536 = vsel %vm693, %v2499, 0
      %v2539 = vsel %vm693, %v2500, 0
      %v2542 = vsel %vm693, %v2501, 0
      %v2545 = vsel %vm693, %v2502, 0
      %v2548 = vsel %vm693, %v2503, 0
      %v2551 = vsel %vm693, %v2504, 0
      %v2554 = vsel %vm693, %v2505, 0
      %v2557 = vsel %vm693, %v2506, 0
      %v2560 = vsel %vm693, %v2507, 0
      %2562 = vmatprep.subr.bf16.mxu0 0
      %2563 = vmatpush1.bf16.msra.mxu0 %v2512
      %2564 = vmatprep.subr.bf16.mxu0 0
      %2565 = vmatpush1.bf16.msra.mxu0 0
      %2566 = vmatprep.subr.bf16.mxu0 0
      %2567 = vmatpush1.bf16.msra.mxu0 0
      %2568 = vmatprep.subr.bf16.mxu0 0
      %2569 = vmatpush1.bf16.msra.mxu0 0
      %2570 = vmatprep.subr.bf16.mxu0 0
      %2571 = vmatpush1.bf16.msra.mxu0 0
      %2572 = vmatprep.subr.bf16.mxu0 0
      %2573 = vmatpush1.bf16.msra.mxu0 0
      %2574 = vmatprep.subr.bf16.mxu0 0
      %2575 = vmatpush1.bf16.msra.mxu0 0
      %2576 = vmatprep.subr.bf16.mxu0 0
      %2577 = vmatpush1.bf16.msra.mxu0 0
      %2578 = vmatprep.subr.bf16.mxu0 0
      %2579 = vmatpush1.bf16.msra.mxu0 0
      %2580 = vmatprep.subr.bf16.mxu0 0
      %2581 = vmatpush1.bf16.msra.mxu0 0
      %2582 = vmatprep.subr.bf16.mxu0 0
      %2583 = vmatpush1.bf16.msra.mxu0 0
      %2584 = vmatprep.subr.bf16.mxu0 0
      %2585 = vmatpush1.bf16.msra.mxu0 0
      %2586 = vmatprep.subr.bf16.mxu0 0
      %2587 = vmatpush1.bf16.msra.mxu0 0
      %2588 = vmatprep.subr.bf16.mxu0 0
      %2589 = vmatpush1.bf16.msra.mxu0 0
      %2590 = vmatprep.subr.bf16.mxu0 0
      %2591 = vmatpush1.bf16.msra.mxu0 0
      %2592 = vmatprep.subr.bf16.mxu0 0
      %2593 = vmatpush1.bf16.msra.mxu0 0
      %2594 = vmatprep.mubr.bf16.mxu0 0
      %2595 = vmatmul.mubr.bf16.gmra.mrb[0].mxu0 %v2515
      %v2596 = vpop.f32.mrb[0].mxu0
      %v2597 = vadd.f32 0.0, %v2596
      %v2598 = vpop.f32.mrb[0].mxu0
      %v2599 = vpop.f32.mrb[0].mxu0
      %v2600 = vadd.f32 0.0, %v2599
      %v2601 = vpop.f32.mrb[0].mxu0
      %2602 = vmatprep.mubr.bf16.mxu0 0
      %2603 = vmatmul.mubr.bf16.gmra.mrb[0].mxu0 %v2518
      %v2604 = vpop.f32.mrb[0].mxu0
      %v2605 = vadd.f32 0.0, %v2604
      %v2606 = vpop.f32.mrb[0].mxu0
      %v2607 = vpop.f32.mrb[0].mxu0
      %v2608 = vadd.f32 0.0, %v2607
      %v2609 = vpop.f32.mrb[0].mxu0
      %2610 = vmatprep.mubr.bf16.mxu0 0
      %2611 = vmatmul.mubr.bf16.gmra.mrb[0].mxu0 %v2521
      %v2612 = vpop.f32.mrb[0].mxu0
      %v2613 = vadd.f32 0.0, %v2612
      %v2614 = vpop.f32.mrb[0].mxu0
      %v2615 = vpop.f32.mrb[0].mxu0
      %v2616 = vadd.f32 0.0, %v2615
      %v2617 = vpop.f32.mrb[0].mxu0
      %2618 = vmatprep.mubr.bf16.mxu0 0
      %2619 = vmatmul.mubr.bf16.gmra.mrb[0].mxu0 %v2524
      %v2620 = vpop.f32.mrb[0].mxu0
      %v2621 = vadd.f32 0.0, %v2620
      %v2622 = vpop.f32.mrb[0].mxu0
      %v2623 = vpop.f32.mrb[0].mxu0
      %v2624 = vadd.f32 0.0, %v2623
      %v2625 = vpop.f32.mrb[0].mxu0
      %2626 = vmatprep.mubr.bf16.mxu0 0
      %2627 = vmatmul.mubr.bf16.gmra.mrb[0].mxu0 %v2527
      %v2628 = vpop.f32.mrb[0].mxu0
      %v2629 = vadd.f32 0.0, %v2628
      %v2630 = vpop.f32.mrb[0].mxu0
      %v2631 = vpop.f32.mrb[0].mxu0
      %v2632 = vadd.f32 0.0, %v2631
      %v2633 = vpop.f32.mrb[0].mxu0
      %2634 = vmatprep.mubr.bf16.mxu0 0
      %2635 = vmatmul.mubr.bf16.gmra.mrb[0].mxu0 %v2530
      %v2636 = vpop.f32.mrb[0].mxu0
      %v2637 = vadd.f32 0.0, %v2636
      %v2638 = vpop.f32.mrb[0].mxu0
      %v2639 = vpop.f32.mrb[0].mxu0
      %v2640 = vadd.f32 0.0, %v2639
      %v2641 = vpop.f32.mrb[0].mxu0
      %2642 = vmatprep.mubr.bf16.mxu0 0
      %2643 = vmatmul.mubr.bf16.gmra.mrb[0].mxu0 %v2533
      %v2644 = vpop.f32.mrb[0].mxu0
      %v2645 = vadd.f32 0.0, %v2644
      %v2646 = vpop.f32.mrb[0].mxu0
      %v2647 = vpop.f32.mrb[0].mxu0
      %v2648 = vadd.f32 0.0, %v2647
      %v2649 = vpop.f32.mrb[0].mxu0
      %2650 = vmatprep.mubr.bf16.mxu0 0
      %2651 = vmatmul.mubr.bf16.gmra.mrb[0].mxu0 %v2536
      %v2652 = vpop.f32.mrb[0].mxu0
      %v2653 = vadd.f32 0.0, %v2652
      %v2654 = vpop.f32.mrb[0].mxu0
      %v2655 = vpop.f32.mrb[0].mxu0
      %v2656 = vadd.f32 0.0, %v2655
      %v2657 = vpop.f32.mrb[0].mxu0
      %2658 = vmatprep.mubr.bf16.mxu0 0
      %2659 = vmatmul.mubr.bf16.gmra.mrb[0].mxu0 %v2539
      %v2660 = vpop.f32.mrb[0].mxu0
      %v2661 = vadd.f32 0.0, %v2660
      %v2662 = vpop.f32.mrb[0].mxu0
      %v2663 = vpop.f32.mrb[0].mxu0
      %v2664 = vadd.f32 0.0, %v2663
      %v2665 = vpop.f32.mrb[0].mxu0
      %2666 = vmatprep.mubr.bf16.mxu0 0
      %2667 = vmatmul.mubr.bf16.gmra.mrb[0].mxu0 %v2542
      %v2668 = vpop.f32.mrb[0].mxu0
      %v2669 = vadd.f32 0.0, %v2668
      %v2670 = vpop.f32.mrb[0].mxu0
      %v2671 = vpop.f32.mrb[0].mxu0
      %v2672 = vadd.f32 0.0, %v2671
      %v2673 = vpop.f32.mrb[0].mxu0
      %2674 = vmatprep.mubr.bf16.mxu0 0
      %2675 = vmatmul.mubr.bf16.gmra.mrb[0].mxu0 %v2545
      %v2676 = vpop.f32.mrb[0].mxu0
      %v2677 = vadd.f32 0.0, %v2676
      %v2678 = vpop.f32.mrb[0].mxu0
      %v2679 = vpop.f32.mrb[0].mxu0
      %v2680 = vadd.f32 0.0, %v2679
      %v2681 = vpop.f32.mrb[0].mxu0
      %2682 = vmatprep.mubr.bf16.mxu0 0
      %2683 = vmatmul.mubr.bf16.gmra.mrb[0].mxu0 %v2548
      %v2684 = vpop.f32.mrb[0].mxu0
      %v2685 = vadd.f32 0.0, %v2684
      %v2686 = vpop.f32.mrb[0].mxu0
      %v2687 = vpop.f32.mrb[0].mxu0
      %v2688 = vadd.f32 0.0, %v2687
      %v2689 = vpop.f32.mrb[0].mxu0
      %2690 = vmatprep.mubr.bf16.mxu0 0
      %2691 = vmatmul.mubr.bf16.gmra.mrb[0].mxu0 %v2551
      %v2692 = vpop.f32.mrb[0].mxu0
      %v2693 = vadd.f32 0.0, %v2692
      %v2694 = vpop.f32.mrb[0].mxu0
      %v2695 = vpop.f32.mrb[0].mxu0
      %v2696 = vadd.f32 0.0, %v2695
      %v2697 = vpop.f32.mrb[0].mxu0
      %2698 = vmatprep.mubr.bf16.mxu0 0
      %2699 = vmatmul.mubr.bf16.gmra.mrb[0].mxu0 %v2554
      %v2700 = vpop.f32.mrb[0].mxu0
      %v2701 = vadd.f32 0.0, %v2700
      %v2702 = vpop.f32.mrb[0].mxu0
      %v2703 = vpop.f32.mrb[0].mxu0
      %v2704 = vadd.f32 0.0, %v2703
      %v2705 = vpop.f32.mrb[0].mxu0
      %2706 = vmatprep.mubr.bf16.mxu0 0
      %2707 = vmatmul.mubr.bf16.gmra.mrb[0].mxu0 %v2557
      %v2708 = vpop.f32.mrb[0].mxu0
      %v2709 = vadd.f32 0.0, %v2708
      %v2710 = vpop.f32.mrb[0].mxu0
      %v2711 = vpop.f32.mrb[0].mxu0
      %v2712 = vadd.f32 0.0, %v2711
      %v2713 = vpop.f32.mrb[0].mxu0
      %2714 = vmatprep.mubr.bf16.mxu0 0
      %2715 = vmatmul.mubr.bf16.gmra.mrb[0].mxu0 %v2560
      %v2716 = vpop.f32.mrb[0].mxu0
      %v2717 = vadd.f32 0.0, %v2716
      %v2718 = vpop.f32.mrb[0].mxu0
      %v2719 = vpop.f32.mrb[0].mxu0
      %v2720 = vadd.f32 0.0, %v2719
      %v2721 = vpop.f32.mrb[0].mxu0
      %2722 = vdwg.mxu0
      %v2723 = vadd.f32 %v1993, %v2597
      %v2724 = vadd.f32 %v1994, %v2600
      %v2725 = vadd.f32 %v1995, %v2605
      %v2726 = vadd.f32 %v1996, %v2608
      %v2727 = vadd.f32 %v1997, %v2613
      %v2728 = vadd.f32 %v1998, %v2616
      %v2729 = vadd.f32 %v1999, %v2621
      %v2730 = vadd.f32 %v2000, %v2624
      %v2731 = vadd.f32 %v2001, %v2629
      %v2732 = vadd.f32 %v2002, %v2632
      %v2733 = vadd.f32 %v2003, %v2637
      %v2734 = vadd.f32 %v2004, %v2640
      %v2735 = vadd.f32 %v2005, %v2645
      %v2736 = vadd.f32 %v2006, %v2648
      %v2737 = vadd.f32 %v2007, %v2653
      %v2738 = vadd.f32 %v2008, %v2656
      %v2739 = vadd.f32 %v2009, %v2661
      %v2740 = vadd.f32 %v2010, %v2664
      %v2741 = vadd.f32 %v2011, %v2669
      %v2742 = vadd.f32 %v2012, %v2672
      %v2743 = vadd.f32 %v2013, %v2677
      %v2744 = vadd.f32 %v2014, %v2680
      %v2745 = vadd.f32 %v2015, %v2685
      %v2746 = vadd.f32 %v2016, %v2688
      %v2747 = vadd.f32 %v2017, %v2693
      %v2748 = vadd.f32 %v2018, %v2696
      %v2749 = vadd.f32 %v2019, %v2701
      %v2750 = vadd.f32 %v2020, %v2704
      %v2751 = vadd.f32 %v2021, %v2709
      %v2752 = vadd.f32 %v2022, %v2712
      %v2753 = vadd.f32 %v2023, %v2717
      %v2754 = vadd.f32 %v2024, %v2720
      %v2755 = vld [vmem:[%s1662] sm:$0xe]
      %v2756 = vld [vmem:[%s1662 + $0xc] sm:$0xe]
      %v2757 = vld [vmem:[%s1662 + $0x18] sm:$0xe]
      %v2758 = vld [vmem:[%s1662 + $0x24] sm:$0xe]
      %v2759 = vld [vmem:[%s1662 + $0x30] sm:$0xe]
      %v2760 = vld [vmem:[%s1662 + $0x3c] sm:$0xe]
      %v2761 = vld [vmem:[%s1662 + $0x48] sm:$0xe]
      %v2762 = vld [vmem:[%s1662 + $0x54] sm:$0xe]
      %v2763 = vld [vmem:[%s1662 + $0x60] sm:$0xe]
      %v2764 = vld [vmem:[%s1662 + $0x6c] sm:$0xe]
      %v2765 = vld [vmem:[%s1662 + $0x78] sm:$0xe]
      %v2766 = vld [vmem:[%s1662 + $0x84] sm:$0xe]
      %v2767 = vld [vmem:[%s1662 + $0x90] sm:$0xe]
      %v2768 = vld [vmem:[%s1662 + $0x9c] sm:$0xe]
      %v2769 = vld [vmem:[%s1662 + $0xa8] sm:$0xe]
      %v2770 = vld [vmem:[%s1662 + $0xb4] sm:$0xe]
      %v2819 = vrot.slane %v2755, 5
      %v2820 = vrot.slane %v2819, 4
      %v2821 = vrot.slane %v2026, 5
      %v2822 = vsel %vm1248, %v2820, %v2821
      %v2823 = vrot.slane %v2821, 4
      %v2824 = vrot.slane %v2027, 5
      %v2825 = vsel %vm1248, %v2823, %v2824
      %v2826 = vrot.slane %v2756, 5
      %v2827 = vrot.slane %v2826, 4
      %v2828 = vrot.slane %v2029, 5
      %v2829 = vsel %vm1248, %v2827, %v2828
      %v2830 = vrot.slane %v2828, 4
      %v2831 = vrot.slane %v2030, 5
      %v2832 = vsel %vm1248, %v2830, %v2831
      %v2833 = vrot.slane %v2757, 5
      %v2834 = vrot.slane %v2833, 4
      %v2835 = vrot.slane %v2032, 5
      %v2836 = vsel %vm1248, %v2834, %v2835
      %v2837 = vrot.slane %v2835, 4
      %v2838 = vrot.slane %v2033, 5
      %v2839 = vsel %vm1248, %v2837, %v2838
      %v2840 = vrot.slane %v2758, 5
      %v2841 = vrot.slane %v2840, 4
      %v2842 = vrot.slane %v2035, 5
      %v2843 = vsel %vm1248, %v2841, %v2842
      %v2844 = vrot.slane %v2842, 4
      %v2845 = vrot.slane %v2036, 5
      %v2846 = vsel %vm1248, %v2844, %v2845
      %v2847 = vrot.slane %v2759, 5
      %v2848 = vrot.slane %v2847, 4
      %v2849 = vrot.slane %v2038, 5
      %v2850 = vsel %vm1248, %v2848, %v2849
      %v2851 = vrot.slane %v2849, 4
      %v2852 = vrot.slane %v2039, 5
      %v2853 = vsel %vm1248, %v2851, %v2852
      %v2854 = vrot.slane %v2760, 5
      %v2855 = vrot.slane %v2854, 4
      %v2856 = vrot.slane %v2041, 5
      %v2857 = vsel %vm1248, %v2855, %v2856
      %v2858 = vrot.slane %v2856, 4
      %v2859 = vrot.slane %v2042, 5
      %v2860 = vsel %vm1248, %v2858, %v2859
      %v2861 = vrot.slane %v2761, 5
      %v2862 = vrot.slane %v2861, 4
      %v2863 = vrot.slane %v2044, 5
      %v2864 = vsel %vm1248, %v2862, %v2863
      %v2865 = vrot.slane %v2863, 4
      %v2866 = vrot.slane %v2045, 5
      %v2867 = vsel %vm1248, %v2865, %v2866
      %v2868 = vrot.slane %v2762, 5
      %v2869 = vrot.slane %v2868, 4
      %v2870 = vrot.slane %v2047, 5
      %v2871 = vsel %vm1248, %v2869, %v2870
      %v2872 = vrot.slane %v2870, 4
      %v2873 = vrot.slane %v2048, 5
      %v2874 = vsel %vm1248, %v2872, %v2873
      %v2875 = vrot.slane %v2763, 5
      %v2876 = vrot.slane %v2875, 4
      %v2877 = vrot.slane %v2050, 5
      %v2878 = vsel %vm1248, %v2876, %v2877
      %v2879 = vrot.slane %v2877, 4
      %v2880 = vrot.slane %v2051, 5
      %v2881 = vsel %vm1248, %v2879, %v2880
      %v2882 = vrot.slane %v2764, 5
      %v2883 = vrot.slane %v2882, 4
      %v2884 = vrot.slane %v2053, 5
      %v2885 = vsel %vm1248, %v2883, %v2884
      %v2886 = vrot.slane %v2884, 4
      %v2887 = vrot.slane %v2054, 5
      %v2888 = vsel %vm1248, %v2886, %v2887
      %v2889 = vrot.slane %v2765, 5
      %v2890 = vrot.slane %v2889, 4
      %v2891 = vrot.slane %v2056, 5
      %v2892 = vsel %vm1248, %v2890, %v2891
      %v2893 = vrot.slane %v2891, 4
      %v2894 = vrot.slane %v2057, 5
      %v2895 = vsel %vm1248, %v2893, %v2894
      %v2896 = vrot.slane %v2766, 5
      %v2897 = vrot.slane %v2896, 4
      %v2898 = vrot.slane %v2059, 5
      %v2899 = vsel %vm1248, %v2897, %v2898
      %v2900 = vrot.slane %v2898, 4
      %v2901 = vrot.slane %v2060, 5
      %v2902 = vsel %vm1248, %v2900, %v2901
      %v2903 = vrot.slane %v2767, 5
      %v2904 = vrot.slane %v2903, 4
      %v2905 = vrot.slane %v2062, 5
      %v2906 = vsel %vm1248, %v2904, %v2905
      %v2907 = vrot.slane %v2905, 4
      %v2908 = vrot.slane %v2063, 5
      %v2909 = vsel %vm1248, %v2907, %v2908
      %v2910 = vrot.slane %v2768, 5
      %v2911 = vrot.slane %v2910, 4
      %v2912 = vrot.slane %v2065, 5
      %v2913 = vsel %vm1248, %v2911, %v2912
      %v2914 = vrot.slane %v2912, 4
      %v2915 = vrot.slane %v2066, 5
      %v2916 = vsel %vm1248, %v2914, %v2915
      %v2917 = vrot.slane %v2769, 5
      %v2918 = vrot.slane %v2917, 4
      %v2919 = vrot.slane %v2068, 5
      %v2920 = vsel %vm1248, %v2918, %v2919
      %v2921 = vrot.slane %v2919, 4
      %v2922 = vrot.slane %v2069, 5
      %v2923 = vsel %vm1248, %v2921, %v2922
      %v2924 = vrot.slane %v2770, 5
      %v2925 = vrot.slane %v2924, 4
      %v2926 = vrot.slane %v2071, 5
      %v2927 = vsel %vm1248, %v2925, %v2926
      %v2928 = vrot.slane %v2926, 4
      %v2929 = vrot.slane %v2072, 5
      %v2930 = vsel %vm1248, %v2928, %v2929
      %s2931 = scalar_lea.vmem %s1, 40
      %v2932 = vld [vmem:[%s2931] sm:$0xf]
      %v2933 = vld [vmem:[%s2931 + $0x4] sm:$0xf]
      %v2934 = vunpack.c.l.b16 %v2822
      %v2935 = vunpack.c.l.b16 %v2825
      %v2936 = vunpack.c.l.b16 %v2829
      %v2937 = vunpack.c.l.b16 %v2832
      %v2938 = vunpack.c.l.b16 %v2836
      %v2939 = vunpack.c.l.b16 %v2839
      %v2940 = vunpack.c.l.b16 %v2843
      %v2941 = vunpack.c.l.b16 %v2846
      %v2942 = vunpack.c.l.b16 %v2850
      %v2943 = vunpack.c.l.b16 %v2853
      %v2944 = vunpack.c.l.b16 %v2857
      %v2945 = vunpack.c.l.b16 %v2860
      %v2946 = vunpack.c.l.b16 %v2864
      %v2947 = vunpack.c.l.b16 %v2867
      %v2948 = vunpack.c.l.b16 %v2871
      %v2949 = vunpack.c.l.b16 %v2874
      %v2950 = vunpack.c.l.b16 %v2878
      %v2951 = vunpack.c.l.b16 %v2881
      %v2952 = vunpack.c.l.b16 %v2885
      %v2953 = vunpack.c.l.b16 %v2888
      %v2954 = vunpack.c.l.b16 %v2892
      %v2955 = vunpack.c.l.b16 %v2895
      %v2956 = vunpack.c.l.b16 %v2899
      %v2957 = vunpack.c.l.b16 %v2902
      %v2958 = vunpack.c.l.b16 %v2906
      %v2959 = vunpack.c.l.b16 %v2909
      %v2960 = vunpack.c.l.b16 %v2913
      %v2961 = vunpack.c.l.b16 %v2916
      %v2962 = vunpack.c.l.b16 %v2920
      %v2963 = vunpack.c.l.b16 %v2923
      %v2964 = vunpack.c.l.b16 %v2927
      %v2965 = vunpack.c.l.b16 %v2930
      %v2966 = vpack.c.b16 %v2935, %v2934
      %v2967 = vpack.c.b16 %v2937, %v2936
      %v2968 = vpack.c.b16 %v2939, %v2938
      %v2969 = vpack.c.b16 %v2941, %v2940
      %v2970 = vpack.c.b16 %v2943, %v2942
      %v2971 = vpack.c.b16 %v2945, %v2944
      %v2972 = vpack.c.b16 %v2947, %v2946
      %v2973 = vpack.c.b16 %v2949, %v2948
      %v2974 = vpack.c.b16 %v2951, %v2950
      %v2975 = vpack.c.b16 %v2953, %v2952
      %v2976 = vpack.c.b16 %v2955, %v2954
      %v2977 = vpack.c.b16 %v2957, %v2956
      %v2978 = vpack.c.b16 %v2959, %v2958
      %v2979 = vpack.c.b16 %v2961, %v2960
      %v2980 = vpack.c.b16 %v2963, %v2962
      %v2981 = vpack.c.b16 %v2965, %v2964
      %v2984 = vunpack.c.l.b16 %v2932
      %v2985 = vunpack.c.l.b16 %v2933
      %v2986 = vpack.c.b16 %v2985, %v2984
      %v2989 = vsel %vm693, %v2966, 0
      %v2992 = vsel %vm693, %v2967, 0
      %v2995 = vsel %vm693, %v2968, 0
      %v2998 = vsel %vm693, %v2969, 0
      %v3001 = vsel %vm693, %v2970, 0
      %v3004 = vsel %vm693, %v2971, 0
      %v3007 = vsel %vm693, %v2972, 0
      %v3010 = vsel %vm693, %v2973, 0
      %v3013 = vsel %vm693, %v2974, 0
      %v3016 = vsel %vm693, %v2975, 0
      %v3019 = vsel %vm693, %v2976, 0
      %v3022 = vsel %vm693, %v2977, 0
      %v3025 = vsel %vm693, %v2978, 0
      %v3028 = vsel %vm693, %v2979, 0
      %v3031 = vsel %vm693, %v2980, 0
      %v3034 = vsel %vm693, %v2981, 0
      %3036 = vmatprep.subr.bf16.mxu0 0
      %3037 = vmatpush1.bf16.msra.mxu0 %v2986
      %3038 = vmatprep.subr.bf16.mxu0 0
      %3039 = vmatpush1.bf16.msra.mxu0 0
      %3040 = vmatprep.subr.bf16.mxu0 0
      %3041 = vmatpush1.bf16.msra.mxu0 0
      %3042 = vmatprep.subr.bf16.mxu0 0
      %3043 = vmatpush1.bf16.msra.mxu0 0
      %3044 = vmatprep.subr.bf16.mxu0 0
      %3045 = vmatpush1.bf16.msra.mxu0 0
      %3046 = vmatprep.subr.bf16.mxu0 0
      %3047 = vmatpush1.bf16.msra.mxu0 0
      %3048 = vmatprep.subr.bf16.mxu0 0
      %3049 = vmatpush1.bf16.msra.mxu0 0
      %3050 = vmatprep.subr.bf16.mxu0 0
      %3051 = vmatpush1.bf16.msra.mxu0 0
      %3052 = vmatprep.subr.bf16.mxu0 0
      %3053 = vmatpush1.bf16.msra.mxu0 0
      %3054 = vmatprep.subr.bf16.mxu0 0
      %3055 = vmatpush1.bf16.msra.mxu0 0
      %3056 = vmatprep.subr.bf16.mxu0 0
      %3057 = vmatpush1.bf16.msra.mxu0 0
      %3058 = vmatprep.subr.bf16.mxu0 0
      %3059 = vmatpush1.bf16.msra.mxu0 0
      %3060 = vmatprep.subr.bf16.mxu0 0
      %3061 = vmatpush1.bf16.msra.mxu0 0
      %3062 = vmatprep.subr.bf16.mxu0 0
      %3063 = vmatpush1.bf16.msra.mxu0 0
      %3064 = vmatprep.subr.bf16.mxu0 0
      %3065 = vmatpush1.bf16.msra.mxu0 0
      %3066 = vmatprep.subr.bf16.mxu0 0
      %3067 = vmatpush1.bf16.msra.mxu0 0
      %3068 = vmatprep.mubr.bf16.mxu0 0
      %3069 = vmatmul.mubr.bf16.gmra.mrb[0].mxu0 %v2989
      %v3070 = vpop.f32.mrb[0].mxu0
      %v3071 = vadd.f32 0.0, %v3070
      %v3072 = vpop.f32.mrb[0].mxu0
      %v3073 = vpop.f32.mrb[0].mxu0
      %v3074 = vadd.f32 0.0, %v3073
      %v3075 = vpop.f32.mrb[0].mxu0
      %3076 = vmatprep.mubr.bf16.mxu0 0
      %3077 = vmatmul.mubr.bf16.gmra.mrb[0].mxu0 %v2992
      %v3078 = vpop.f32.mrb[0].mxu0
      %v3079 = vadd.f32 0.0, %v3078
      %v3080 = vpop.f32.mrb[0].mxu0
      %v3081 = vpop.f32.mrb[0].mxu0
      %v3082 = vadd.f32 0.0, %v3081
      %v3083 = vpop.f32.mrb[0].mxu0
      %3084 = vmatprep.mubr.bf16.mxu0 0
      %3085 = vmatmul.mubr.bf16.gmra.mrb[0].mxu0 %v2995
      %v3086 = vpop.f32.mrb[0].mxu0
      %v3087 = vadd.f32 0.0, %v3086
      %v3088 = vpop.f32.mrb[0].mxu0
      %v3089 = vpop.f32.mrb[0].mxu0
      %v3090 = vadd.f32 0.0, %v3089
      %v3091 = vpop.f32.mrb[0].mxu0
      %3092 = vmatprep.mubr.bf16.mxu0 0
      %3093 = vmatmul.mubr.bf16.gmra.mrb[0].mxu0 %v2998
      %v3094 = vpop.f32.mrb[0].mxu0
      %v3095 = vadd.f32 0.0, %v3094
      %v3096 = vpop.f32.mrb[0].mxu0
      %v3097 = vpop.f32.mrb[0].mxu0
      %v3098 = vadd.f32 0.0, %v3097
      %v3099 = vpop.f32.mrb[0].mxu0
      %3100 = vmatprep.mubr.bf16.mxu0 0
      %3101 = vmatmul.mubr.bf16.gmra.mrb[0].mxu0 %v3001
      %v3102 = vpop.f32.mrb[0].mxu0
      %v3103 = vadd.f32 0.0, %v3102
      %v3104 = vpop.f32.mrb[0].mxu0
      %v3105 = vpop.f32.mrb[0].mxu0
      %v3106 = vadd.f32 0.0, %v3105
      %v3107 = vpop.f32.mrb[0].mxu0
      %3108 = vmatprep.mubr.bf16.mxu0 0
      %3109 = vmatmul.mubr.bf16.gmra.mrb[0].mxu0 %v3004
      %v3110 = vpop.f32.mrb[0].mxu0
      %v3111 = vadd.f32 0.0, %v3110
      %v3112 = vpop.f32.mrb[0].mxu0
      %v3113 = vpop.f32.mrb[0].mxu0
      %v3114 = vadd.f32 0.0, %v3113
      %v3115 = vpop.f32.mrb[0].mxu0
      %3116 = vmatprep.mubr.bf16.mxu0 0
      %3117 = vmatmul.mubr.bf16.gmra.mrb[0].mxu0 %v3007
      %v3118 = vpop.f32.mrb[0].mxu0
      %v3119 = vadd.f32 0.0, %v3118
      %v3120 = vpop.f32.mrb[0].mxu0
      %v3121 = vpop.f32.mrb[0].mxu0
      %v3122 = vadd.f32 0.0, %v3121
      %v3123 = vpop.f32.mrb[0].mxu0
      %3124 = vmatprep.mubr.bf16.mxu0 0
      %3125 = vmatmul.mubr.bf16.gmra.mrb[0].mxu0 %v3010
      %v3126 = vpop.f32.mrb[0].mxu0
      %v3127 = vadd.f32 0.0, %v3126
      %v3128 = vpop.f32.mrb[0].mxu0
      %v3129 = vpop.f32.mrb[0].mxu0
      %v3130 = vadd.f32 0.0, %v3129
      %v3131 = vpop.f32.mrb[0].mxu0
      %3132 = vmatprep.mubr.bf16.mxu0 0
      %3133 = vmatmul.mubr.bf16.gmra.mrb[0].mxu0 %v3013
      %v3134 = vpop.f32.mrb[0].mxu0
      %v3135 = vadd.f32 0.0, %v3134
      %v3136 = vpop.f32.mrb[0].mxu0
      %v3137 = vpop.f32.mrb[0].mxu0
      %v3138 = vadd.f32 0.0, %v3137
      %v3139 = vpop.f32.mrb[0].mxu0
      %3140 = vmatprep.mubr.bf16.mxu0 0
      %3141 = vmatmul.mubr.bf16.gmra.mrb[0].mxu0 %v3016
      %v3142 = vpop.f32.mrb[0].mxu0
      %v3143 = vadd.f32 0.0, %v3142
      %v3144 = vpop.f32.mrb[0].mxu0
      %v3145 = vpop.f32.mrb[0].mxu0
      %v3146 = vadd.f32 0.0, %v3145
      %v3147 = vpop.f32.mrb[0].mxu0
      %3148 = vmatprep.mubr.bf16.mxu0 0
      %3149 = vmatmul.mubr.bf16.gmra.mrb[0].mxu0 %v3019
      %v3150 = vpop.f32.mrb[0].mxu0
      %v3151 = vadd.f32 0.0, %v3150
      %v3152 = vpop.f32.mrb[0].mxu0
      %v3153 = vpop.f32.mrb[0].mxu0
      %v3154 = vadd.f32 0.0, %v3153
      %v3155 = vpop.f32.mrb[0].mxu0
      %3156 = vmatprep.mubr.bf16.mxu0 0
      %3157 = vmatmul.mubr.bf16.gmra.mrb[0].mxu0 %v3022
      %v3158 = vpop.f32.mrb[0].mxu0
      %v3159 = vadd.f32 0.0, %v3158
      %v3160 = vpop.f32.mrb[0].mxu0
      %v3161 = vpop.f32.mrb[0].mxu0
      %v3162 = vadd.f32 0.0, %v3161
      %v3163 = vpop.f32.mrb[0].mxu0
      %3164 = vmatprep.mubr.bf16.mxu0 0
      %3165 = vmatmul.mubr.bf16.gmra.mrb[0].mxu0 %v3025
      %v3166 = vpop.f32.mrb[0].mxu0
      %v3167 = vadd.f32 0.0, %v3166
      %v3168 = vpop.f32.mrb[0].mxu0
      %v3169 = vpop.f32.mrb[0].mxu0
      %v3170 = vadd.f32 0.0, %v3169
      %v3171 = vpop.f32.mrb[0].mxu0
      %3172 = vmatprep.mubr.bf16.mxu0 0
      %3173 = vmatmul.mubr.bf16.gmra.mrb[0].mxu0 %v3028
      %v3174 = vpop.f32.mrb[0].mxu0
      %v3175 = vadd.f32 0.0, %v3174
      %v3176 = vpop.f32.mrb[0].mxu0
      %v3177 = vpop.f32.mrb[0].mxu0
      %v3178 = vadd.f32 0.0, %v3177
      %v3179 = vpop.f32.mrb[0].mxu0
      %3180 = vmatprep.mubr.bf16.mxu0 0
      %3181 = vmatmul.mubr.bf16.gmra.mrb[0].mxu0 %v3031
      %v3182 = vpop.f32.mrb[0].mxu0
      %v3183 = vadd.f32 0.0, %v3182
      %v3184 = vpop.f32.mrb[0].mxu0
      %v3185 = vpop.f32.mrb[0].mxu0
      %v3186 = vadd.f32 0.0, %v3185
      %v3187 = vpop.f32.mrb[0].mxu0
      %3188 = vmatprep.mubr.bf16.mxu0 0
      %3189 = vmatmul.mubr.bf16.gmra.mrb[0].mxu0 %v3034
      %v3190 = vpop.f32.mrb[0].mxu0
      %v3191 = vadd.f32 0.0, %v3190
      %v3192 = vpop.f32.mrb[0].mxu0
      %v3193 = vpop.f32.mrb[0].mxu0
      %v3194 = vadd.f32 0.0, %v3193
      %v3195 = vpop.f32.mrb[0].mxu0
      %3196 = vdwg.mxu0
      %v3197 = vadd.f32 %v2723, %v3071
      %v3198 = vadd.f32 %v2724, %v3074
      %v3199 = vadd.f32 %v2725, %v3079
      %v3200 = vadd.f32 %v2726, %v3082
      %v3201 = vadd.f32 %v2727, %v3087
      %v3202 = vadd.f32 %v2728, %v3090
      %v3203 = vadd.f32 %v2729, %v3095
      %v3204 = vadd.f32 %v2730, %v3098
      %v3205 = vadd.f32 %v2731, %v3103
      %v3206 = vadd.f32 %v2732, %v3106
      %v3207 = vadd.f32 %v2733, %v3111
      %v3208 = vadd.f32 %v2734, %v3114
      %v3209 = vadd.f32 %v2735, %v3119
      %v3210 = vadd.f32 %v2736, %v3122
      %v3211 = vadd.f32 %v2737, %v3127
      %v3212 = vadd.f32 %v2738, %v3130
      %v3213 = vadd.f32 %v2739, %v3135
      %v3214 = vadd.f32 %v2740, %v3138
      %v3215 = vadd.f32 %v2741, %v3143
      %v3216 = vadd.f32 %v2742, %v3146
      %v3217 = vadd.f32 %v2743, %v3151
      %v3218 = vadd.f32 %v2744, %v3154
      %v3219 = vadd.f32 %v2745, %v3159
      %v3220 = vadd.f32 %v2746, %v3162
      %v3221 = vadd.f32 %v2747, %v3167
      %v3222 = vadd.f32 %v2748, %v3170
      %v3223 = vadd.f32 %v2749, %v3175
      %v3224 = vadd.f32 %v2750, %v3178
      %v3225 = vadd.f32 %v2751, %v3183
      %v3226 = vadd.f32 %v2752, %v3186
      %v3227 = vadd.f32 %v2753, %v3191
      %v3228 = vadd.f32 %v2754, %v3194
      %s3229 = sadd.s32 %s195, 2
      %s3230 = smul.u32 %s3229, 3
      %s3231 = smul.addr %s3230, 4
      %s3232 = scalar_lea.vmem %s183, %s3231
      %v3233 = vld [vmem:[%s3232] sm:$0xf]
      %v3234 = vld [vmem:[%s3232 + $0x4] sm:$0xf]
      %v3235 = vld [vmem:[%s3232 + $0xc] sm:$0xf]
      %v3236 = vld [vmem:[%s3232 + $0x10] sm:$0xf]
      %v3237 = vld [vmem:[%s3232 + $0x18] sm:$0xf]
      %v3238 = vld [vmem:[%s3232 + $0x1c] sm:$0xf]
      %v3239 = vld [vmem:[%s3232 + $0x24] sm:$0xf]
      %v3240 = vld [vmem:[%s3232 + $0x28] sm:$0xf]
      %v3241 = vld [vmem:[%s3232 + $0x30] sm:$0xf]
      %v3242 = vld [vmem:[%s3232 + $0x34] sm:$0xf]
      %v3243 = vld [vmem:[%s3232 + $0x3c] sm:$0xf]
      %v3244 = vld [vmem:[%s3232 + $0x40] sm:$0xf]
      %v3245 = vld [vmem:[%s3232 + $0x48] sm:$0xf]
      %v3246 = vld [vmem:[%s3232 + $0x4c] sm:$0xf]
      %v3247 = vld [vmem:[%s3232 + $0x54] sm:$0xf]
      %v3248 = vld [vmem:[%s3232 + $0x58] sm:$0xf]
      %v3249 = vld [vmem:[%s3232 + $0x60] sm:$0xf]
      %v3250 = vld [vmem:[%s3232 + $0x64] sm:$0xf]
      %v3251 = vld [vmem:[%s3232 + $0x6c] sm:$0xf]
      %v3252 = vld [vmem:[%s3232 + $0x70] sm:$0xf]
      %v3253 = vld [vmem:[%s3232 + $0x78] sm:$0xf]
      %v3254 = vld [vmem:[%s3232 + $0x7c] sm:$0xf]
      %v3255 = vld [vmem:[%s3232 + $0x84] sm:$0xf]
      %v3256 = vld [vmem:[%s3232 + $0x88] sm:$0xf]
      %v3257 = vld [vmem:[%s3232 + $0x90] sm:$0xf]
      %v3258 = vld [vmem:[%s3232 + $0x94] sm:$0xf]
      %v3259 = vld [vmem:[%s3232 + $0x9c] sm:$0xf]
      %v3260 = vld [vmem:[%s3232 + $0xa0] sm:$0xf]
      %v3261 = vld [vmem:[%s3232 + $0xa8] sm:$0xf]
      %v3262 = vld [vmem:[%s3232 + $0xac] sm:$0xf]
      %v3263 = vld [vmem:[%s3232 + $0xb4] sm:$0xf]
      %v3264 = vld [vmem:[%s3232 + $0xb8] sm:$0xf]
      %s3265 = scalar_lea.vmem %s1, 48
      %v3266 = vld [vmem:[%s3265] sm:$0xf]
      %v3267 = vld [vmem:[%s3265 + $0x4] sm:$0xf]
      %v3300 = vunpack.c.l.b16 %v3233
      %v3301 = vunpack.c.l.b16 %v3234
      %v3302 = vunpack.c.l.b16 %v3235
      %v3303 = vunpack.c.l.b16 %v3236
      %v3304 = vunpack.c.l.b16 %v3237
      %v3305 = vunpack.c.l.b16 %v3238
      %v3306 = vunpack.c.l.b16 %v3239
      %v3307 = vunpack.c.l.b16 %v3240
      %v3308 = vunpack.c.l.b16 %v3241
      %v3309 = vunpack.c.l.b16 %v3242
      %v3310 = vunpack.c.l.b16 %v3243
      %v3311 = vunpack.c.l.b16 %v3244
      %v3312 = vunpack.c.l.b16 %v3245
      %v3313 = vunpack.c.l.b16 %v3246
      %v3314 = vunpack.c.l.b16 %v3247
      %v3315 = vunpack.c.l.b16 %v3248
      %v3316 = vunpack.c.l.b16 %v3249
      %v3317 = vunpack.c.l.b16 %v3250
      %v3318 = vunpack.c.l.b16 %v3251
      %v3319 = vunpack.c.l.b16 %v3252
      %v3320 = vunpack.c.l.b16 %v3253
      %v3321 = vunpack.c.l.b16 %v3254
      %v3322 = vunpack.c.l.b16 %v3255
      %v3323 = vunpack.c.l.b16 %v3256
      %v3324 = vunpack.c.l.b16 %v3257
      %v3325 = vunpack.c.l.b16 %v3258
      %v3326 = vunpack.c.l.b16 %v3259
      %v3327 = vunpack.c.l.b16 %v3260
      %v3328 = vunpack.c.l.b16 %v3261
      %v3329 = vunpack.c.l.b16 %v3262
      %v3330 = vunpack.c.l.b16 %v3263
      %v3331 = vunpack.c.l.b16 %v3264
      %v3332 = vpack.c.b16 %v3301, %v3300
      %v3333 = vpack.c.b16 %v3303, %v3302
      %v3334 = vpack.c.b16 %v3305, %v3304
      %v3335 = vpack.c.b16 %v3307, %v3306
      %v3336 = vpack.c.b16 %v3309, %v3308
      %v3337 = vpack.c.b16 %v3311, %v3310
      %v3338 = vpack.c.b16 %v3313, %v3312
      %v3339 = vpack.c.b16 %v3315, %v3314
      %v3340 = vpack.c.b16 %v3317, %v3316
      %v3341 = vpack.c.b16 %v3319, %v3318
      %v3342 = vpack.c.b16 %v3321, %v3320
      %v3343 = vpack.c.b16 %v3323, %v3322
      %v3344 = vpack.c.b16 %v3325, %v3324
      %v3345 = vpack.c.b16 %v3327, %v3326
      %v3346 = vpack.c.b16 %v3329, %v3328
      %v3347 = vpack.c.b16 %v3331, %v3330
      %v3350 = vunpack.c.l.b16 %v3266
      %v3351 = vunpack.c.l.b16 %v3267
      %v3352 = vpack.c.b16 %v3351, %v3350
      %v3355 = vsel %vm693, %v3332, 0
      %v3358 = vsel %vm693, %v3333, 0
      %v3361 = vsel %vm693, %v3334, 0
      %v3364 = vsel %vm693, %v3335, 0
      %v3367 = vsel %vm693, %v3336, 0
      %v3370 = vsel %vm693, %v3337, 0
      %v3373 = vsel %vm693, %v3338, 0
      %v3376 = vsel %vm693, %v3339, 0
      %v3379 = vsel %vm693, %v3340, 0
      %v3382 = vsel %vm693, %v3341, 0
      %v3385 = vsel %vm693, %v3342, 0
      %v3388 = vsel %vm693, %v3343, 0
      %v3391 = vsel %vm693, %v3344, 0
      %v3394 = vsel %vm693, %v3345, 0
      %v3397 = vsel %vm693, %v3346, 0
      %v3400 = vsel %vm693, %v3347, 0
      %3402 = vmatprep.subr.bf16.mxu0 0
      %3403 = vmatpush1.bf16.msra.mxu0 %v3352
      %3404 = vmatprep.subr.bf16.mxu0 0
      %3405 = vmatpush1.bf16.msra.mxu0 0
      %3406 = vmatprep.subr.bf16.mxu0 0
      %3407 = vmatpush1.bf16.msra.mxu0 0
      %3408 = vmatprep.subr.bf16.mxu0 0
      %3409 = vmatpush1.bf16.msra.mxu0 0
      %3410 = vmatprep.subr.bf16.mxu0 0
      %3411 = vmatpush1.bf16.msra.mxu0 0
      %3412 = vmatprep.subr.bf16.mxu0 0
      %3413 = vmatpush1.bf16.msra.mxu0 0
      %3414 = vmatprep.subr.bf16.mxu0 0
      %3415 = vmatpush1.bf16.msra.mxu0 0
      %3416 = vmatprep.subr.bf16.mxu0 0
      %3417 = vmatpush1.bf16.msra.mxu0 0
      %3418 = vmatprep.subr.bf16.mxu0 0
      %3419 = vmatpush1.bf16.msra.mxu0 0
      %3420 = vmatprep.subr.bf16.mxu0 0
      %3421 = vmatpush1.bf16.msra.mxu0 0
      %3422 = vmatprep.subr.bf16.mxu0 0
      %3423 = vmatpush1.bf16.msra.mxu0 0
      %3424 = vmatprep.subr.bf16.mxu0 0
      %3425 = vmatpush1.bf16.msra.mxu0 0
      %3426 = vmatprep.subr.bf16.mxu0 0
      %3427 = vmatpush1.bf16.msra.mxu0 0
      %3428 = vmatprep.subr.bf16.mxu0 0
      %3429 = vmatpush1.bf16.msra.mxu0 0
      %3430 = vmatprep.subr.bf16.mxu0 0
      %3431 = vmatpush1.bf16.msra.mxu0 0
      %3432 = vmatprep.subr.bf16.mxu0 0
      %3433 = vmatpush1.bf16.msra.mxu0 0
      %3434 = vmatprep.mubr.bf16.mxu0 0
      %3435 = vmatmul.mubr.bf16.gmra.mrb[0].mxu0 %v3355
      %v3436 = vpop.f32.mrb[0].mxu0
      %v3437 = vadd.f32 0.0, %v3436
      %v3438 = vpop.f32.mrb[0].mxu0
      %v3439 = vpop.f32.mrb[0].mxu0
      %v3440 = vadd.f32 0.0, %v3439
      %v3441 = vpop.f32.mrb[0].mxu0
      %3442 = vmatprep.mubr.bf16.mxu0 0
      %3443 = vmatmul.mubr.bf16.gmra.mrb[0].mxu0 %v3358
      %v3444 = vpop.f32.mrb[0].mxu0
      %v3445 = vadd.f32 0.0, %v3444
      %v3446 = vpop.f32.mrb[0].mxu0
      %v3447 = vpop.f32.mrb[0].mxu0
      %v3448 = vadd.f32 0.0, %v3447
      %v3449 = vpop.f32.mrb[0].mxu0
      %3450 = vmatprep.mubr.bf16.mxu0 0
      %3451 = vmatmul.mubr.bf16.gmra.mrb[0].mxu0 %v3361
      %v3452 = vpop.f32.mrb[0].mxu0
      %v3453 = vadd.f32 0.0, %v3452
      %v3454 = vpop.f32.mrb[0].mxu0
      %v3455 = vpop.f32.mrb[0].mxu0
      %v3456 = vadd.f32 0.0, %v3455
      %v3457 = vpop.f32.mrb[0].mxu0
      %3458 = vmatprep.mubr.bf16.mxu0 0
      %3459 = vmatmul.mubr.bf16.gmra.mrb[0].mxu0 %v3364
      %v3460 = vpop.f32.mrb[0].mxu0
      %v3461 = vadd.f32 0.0, %v3460
      %v3462 = vpop.f32.mrb[0].mxu0
      %v3463 = vpop.f32.mrb[0].mxu0
      %v3464 = vadd.f32 0.0, %v3463
      %v3465 = vpop.f32.mrb[0].mxu0
      %3466 = vmatprep.mubr.bf16.mxu0 0
      %3467 = vmatmul.mubr.bf16.gmra.mrb[0].mxu0 %v3367
      %v3468 = vpop.f32.mrb[0].mxu0
      %v3469 = vadd.f32 0.0, %v3468
      %v3470 = vpop.f32.mrb[0].mxu0
      %v3471 = vpop.f32.mrb[0].mxu0
      %v3472 = vadd.f32 0.0, %v3471
      %v3473 = vpop.f32.mrb[0].mxu0
      %3474 = vmatprep.mubr.bf16.mxu0 0
      %3475 = vmatmul.mubr.bf16.gmra.mrb[0].mxu0 %v3370
      %v3476 = vpop.f32.mrb[0].mxu0
      %v3477 = vadd.f32 0.0, %v3476
      %v3478 = vpop.f32.mrb[0].mxu0
      %v3479 = vpop.f32.mrb[0].mxu0
      %v3480 = vadd.f32 0.0, %v3479
      %v3481 = vpop.f32.mrb[0].mxu0
      %3482 = vmatprep.mubr.bf16.mxu0 0
      %3483 = vmatmul.mubr.bf16.gmra.mrb[0].mxu0 %v3373
      %v3484 = vpop.f32.mrb[0].mxu0
      %v3485 = vadd.f32 0.0, %v3484
      %v3486 = vpop.f32.mrb[0].mxu0
      %v3487 = vpop.f32.mrb[0].mxu0
      %v3488 = vadd.f32 0.0, %v3487
      %v3489 = vpop.f32.mrb[0].mxu0
      %3490 = vmatprep.mubr.bf16.mxu0 0
      %3491 = vmatmul.mubr.bf16.gmra.mrb[0].mxu0 %v3376
      %v3492 = vpop.f32.mrb[0].mxu0
      %v3493 = vadd.f32 0.0, %v3492
      %v3494 = vpop.f32.mrb[0].mxu0
      %v3495 = vpop.f32.mrb[0].mxu0
      %v3496 = vadd.f32 0.0, %v3495
      %v3497 = vpop.f32.mrb[0].mxu0
      %3498 = vmatprep.mubr.bf16.mxu0 0
      %3499 = vmatmul.mubr.bf16.gmra.mrb[0].mxu0 %v3379
      %v3500 = vpop.f32.mrb[0].mxu0
      %v3501 = vadd.f32 0.0, %v3500
      %v3502 = vpop.f32.mrb[0].mxu0
      %v3503 = vpop.f32.mrb[0].mxu0
      %v3504 = vadd.f32 0.0, %v3503
      %v3505 = vpop.f32.mrb[0].mxu0
      %3506 = vmatprep.mubr.bf16.mxu0 0
      %3507 = vmatmul.mubr.bf16.gmra.mrb[0].mxu0 %v3382
      %v3508 = vpop.f32.mrb[0].mxu0
      %v3509 = vadd.f32 0.0, %v3508
      %v3510 = vpop.f32.mrb[0].mxu0
      %v3511 = vpop.f32.mrb[0].mxu0
      %v3512 = vadd.f32 0.0, %v3511
      %v3513 = vpop.f32.mrb[0].mxu0
      %3514 = vmatprep.mubr.bf16.mxu0 0
      %3515 = vmatmul.mubr.bf16.gmra.mrb[0].mxu0 %v3385
      %v3516 = vpop.f32.mrb[0].mxu0
      %v3517 = vadd.f32 0.0, %v3516
      %v3518 = vpop.f32.mrb[0].mxu0
      %v3519 = vpop.f32.mrb[0].mxu0
      %v3520 = vadd.f32 0.0, %v3519
      %v3521 = vpop.f32.mrb[0].mxu0
      %3522 = vmatprep.mubr.bf16.mxu0 0
      %3523 = vmatmul.mubr.bf16.gmra.mrb[0].mxu0 %v3388
      %v3524 = vpop.f32.mrb[0].mxu0
      %v3525 = vadd.f32 0.0, %v3524
      %v3526 = vpop.f32.mrb[0].mxu0
      %v3527 = vpop.f32.mrb[0].mxu0
      %v3528 = vadd.f32 0.0, %v3527
      %v3529 = vpop.f32.mrb[0].mxu0
      %3530 = vmatprep.mubr.bf16.mxu0 0
      %3531 = vmatmul.mubr.bf16.gmra.mrb[0].mxu0 %v3391
      %v3532 = vpop.f32.mrb[0].mxu0
      %v3533 = vadd.f32 0.0, %v3532
      %v3534 = vpop.f32.mrb[0].mxu0
      %v3535 = vpop.f32.mrb[0].mxu0
      %v3536 = vadd.f32 0.0, %v3535
      %v3537 = vpop.f32.mrb[0].mxu0
      %3538 = vmatprep.mubr.bf16.mxu0 0
      %3539 = vmatmul.mubr.bf16.gmra.mrb[0].mxu0 %v3394
      %v3540 = vpop.f32.mrb[0].mxu0
      %v3541 = vadd.f32 0.0, %v3540
      %v3542 = vpop.f32.mrb[0].mxu0
      %v3543 = vpop.f32.mrb[0].mxu0
      %v3544 = vadd.f32 0.0, %v3543
      %v3545 = vpop.f32.mrb[0].mxu0
      %3546 = vmatprep.mubr.bf16.mxu0 0
      %3547 = vmatmul.mubr.bf16.gmra.mrb[0].mxu0 %v3397
      %v3548 = vpop.f32.mrb[0].mxu0
      %v3549 = vadd.f32 0.0, %v3548
      %v3550 = vpop.f32.mrb[0].mxu0
      %v3551 = vpop.f32.mrb[0].mxu0
      %v3552 = vadd.f32 0.0, %v3551
      %v3553 = vpop.f32.mrb[0].mxu0
      %3554 = vmatprep.mubr.bf16.mxu0 0
      %3555 = vmatmul.mubr.bf16.gmra.mrb[0].mxu0 %v3400
      %v3556 = vpop.f32.mrb[0].mxu0
      %v3557 = vadd.f32 0.0, %v3556
      %v3558 = vpop.f32.mrb[0].mxu0
      %v3559 = vpop.f32.mrb[0].mxu0
      %v3560 = vadd.f32 0.0, %v3559
      %v3561 = vpop.f32.mrb[0].mxu0
      %3562 = vdwg.mxu0
      %v3563 = vadd.f32 %v3197, %v3437
      %v3564 = vadd.f32 %v3198, %v3440
      %v3565 = vadd.f32 %v3199, %v3445
      %v3566 = vadd.f32 %v3200, %v3448
      %v3567 = vadd.f32 %v3201, %v3453
      %v3568 = vadd.f32 %v3202, %v3456
      %v3569 = vadd.f32 %v3203, %v3461
      %v3570 = vadd.f32 %v3204, %v3464
      %v3571 = vadd.f32 %v3205, %v3469
      %v3572 = vadd.f32 %v3206, %v3472
      %v3573 = vadd.f32 %v3207, %v3477
      %v3574 = vadd.f32 %v3208, %v3480
      %v3575 = vadd.f32 %v3209, %v3485
      %v3576 = vadd.f32 %v3210, %v3488
      %v3577 = vadd.f32 %v3211, %v3493
      %v3578 = vadd.f32 %v3212, %v3496
      %v3579 = vadd.f32 %v3213, %v3501
      %v3580 = vadd.f32 %v3214, %v3504
      %v3581 = vadd.f32 %v3215, %v3509
      %v3582 = vadd.f32 %v3216, %v3512
      %v3583 = vadd.f32 %v3217, %v3517
      %v3584 = vadd.f32 %v3218, %v3520
      %v3585 = vadd.f32 %v3219, %v3525
      %v3586 = vadd.f32 %v3220, %v3528
      %v3587 = vadd.f32 %v3221, %v3533
      %v3588 = vadd.f32 %v3222, %v3536
      %v3589 = vadd.f32 %v3223, %v3541
      %v3590 = vadd.f32 %v3224, %v3544
      %v3591 = vadd.f32 %v3225, %v3549
      %v3592 = vadd.f32 %v3226, %v3552
      %v3593 = vadd.f32 %v3227, %v3557
      %v3594 = vadd.f32 %v3228, %v3560
      %v3595 = vld [vmem:[%s3232] sm:$0xf]
      %v3596 = vld [vmem:[%s3232 + $0x4] sm:$0xf]
      %v3597 = vld [vmem:[%s3232 + $0x8] sm:$0x1]
      %v3598 = vld [vmem:[%s3232 + $0xc] sm:$0xf]
      %v3599 = vld [vmem:[%s3232 + $0x10] sm:$0xf]
      %v3600 = vld [vmem:[%s3232 + $0x14] sm:$0x1]
      %v3601 = vld [vmem:[%s3232 + $0x18] sm:$0xf]
      %v3602 = vld [vmem:[%s3232 + $0x1c] sm:$0xf]
      %v3603 = vld [vmem:[%s3232 + $0x20] sm:$0x1]
      %v3604 = vld [vmem:[%s3232 + $0x24] sm:$0xf]
      %v3605 = vld [vmem:[%s3232 + $0x28] sm:$0xf]
      %v3606 = vld [vmem:[%s3232 + $0x2c] sm:$0x1]
      %v3607 = vld [vmem:[%s3232 + $0x30] sm:$0xf]
      %v3608 = vld [vmem:[%s3232 + $0x34] sm:$0xf]
      %v3609 = vld [vmem:[%s3232 + $0x38] sm:$0x1]
      %v3610 = vld [vmem:[%s3232 + $0x3c] sm:$0xf]
      %v3611 = vld [vmem:[%s3232 + $0x40] sm:$0xf]
      %v3612 = vld [vmem:[%s3232 + $0x44] sm:$0x1]
      %v3613 = vld [vmem:[%s3232 + $0x48] sm:$0xf]
      %v3614 = vld [vmem:[%s3232 + $0x4c] sm:$0xf]
      %v3615 = vld [vmem:[%s3232 + $0x50] sm:$0x1]
      %v3616 = vld [vmem:[%s3232 + $0x54] sm:$0xf]
      %v3617 = vld [vmem:[%s3232 + $0x58] sm:$0xf]
      %v3618 = vld [vmem:[%s3232 + $0x5c] sm:$0x1]
      %v3619 = vld [vmem:[%s3232 + $0x60] sm:$0xf]
      %v3620 = vld [vmem:[%s3232 + $0x64] sm:$0xf]
      %v3621 = vld [vmem:[%s3232 + $0x68] sm:$0x1]
      %v3622 = vld [vmem:[%s3232 + $0x6c] sm:$0xf]
      %v3623 = vld [vmem:[%s3232 + $0x70] sm:$0xf]
      %v3624 = vld [vmem:[%s3232 + $0x74] sm:$0x1]
      %v3625 = vld [vmem:[%s3232 + $0x78] sm:$0xf]
      %v3626 = vld [vmem:[%s3232 + $0x7c] sm:$0xf]
      %v3627 = vld [vmem:[%s3232 + $0x80] sm:$0x1]
      %v3628 = vld [vmem:[%s3232 + $0x84] sm:$0xf]
      %v3629 = vld [vmem:[%s3232 + $0x88] sm:$0xf]
      %v3630 = vld [vmem:[%s3232 + $0x8c] sm:$0x1]
      %v3631 = vld [vmem:[%s3232 + $0x90] sm:$0xf]
      %v3632 = vld [vmem:[%s3232 + $0x94] sm:$0xf]
      %v3633 = vld [vmem:[%s3232 + $0x98] sm:$0x1]
      %v3634 = vld [vmem:[%s3232 + $0x9c] sm:$0xf]
      %v3635 = vld [vmem:[%s3232 + $0xa0] sm:$0xf]
      %v3636 = vld [vmem:[%s3232 + $0xa4] sm:$0x1]
      %v3637 = vld [vmem:[%s3232 + $0xa8] sm:$0xf]
      %v3638 = vld [vmem:[%s3232 + $0xac] sm:$0xf]
      %v3639 = vld [vmem:[%s3232 + $0xb0] sm:$0x1]
      %v3640 = vld [vmem:[%s3232 + $0xb4] sm:$0xf]
      %v3641 = vld [vmem:[%s3232 + $0xb8] sm:$0xf]
      %v3642 = vld [vmem:[%s3232 + $0xbc] sm:$0x1]
      %v3644 = vshrl.u32 %v3595, 16
      %v3646 = vrot.slane %v3644, 4
      %v3647 = vshll.u32 %v3595, 16
      %v3649 = vrot.slane %v3647, 5
      %v3650 = vor.u32 %v3646, %v3649
      %v3651 = vrot.slane %v3650, 4
      %v3653 = vshll.u32 %v3596, 16
      %v3655 = vrot.slane %v3653, 5
      %v3656 = vsel %vm251, %v3651, %v3655
      %v3657 = vshrl.u32 %v3596, 16
      %v3659 = vrot.slane %v3657, 4
      %v3660 = vor.u32 %v3659, %v3655
      %v3661 = vrot.slane %v3660, 4
      %v3663 = vshll.u32 %v3597, 16
      %v3665 = vrot.slane %v3663, 5
      %v3666 = vsel %vm251, %v3661, %v3665
      %v3668 = vshrl.u32 %v3598, 16
      %v3670 = vrot.slane %v3668, 4
      %v3671 = vshll.u32 %v3598, 16
      %v3673 = vrot.slane %v3671, 5
      %v3674 = vor.u32 %v3670, %v3673
      %v3675 = vrot.slane %v3674, 4
      %v3677 = vshll.u32 %v3599, 16
      %v3679 = vrot.slane %v3677, 5
      %v3680 = vsel %vm251, %v3675, %v3679
      %v3681 = vshrl.u32 %v3599, 16
      %v3683 = vrot.slane %v3681, 4
      %v3684 = vor.u32 %v3683, %v3679
      %v3685 = vrot.slane %v3684, 4
      %v3687 = vshll.u32 %v3600, 16
      %v3689 = vrot.slane %v3687, 5
      %v3690 = vsel %vm251, %v3685, %v3689
      %v3692 = vshrl.u32 %v3601, 16
      %v3694 = vrot.slane %v3692, 4
      %v3695 = vshll.u32 %v3601, 16
      %v3697 = vrot.slane %v3695, 5
      %v3698 = vor.u32 %v3694, %v3697
      %v3699 = vrot.slane %v3698, 4
      %v3701 = vshll.u32 %v3602, 16
      %v3703 = vrot.slane %v3701, 5
      %v3704 = vsel %vm251, %v3699, %v3703
      %v3705 = vshrl.u32 %v3602, 16
      %v3707 = vrot.slane %v3705, 4
      %v3708 = vor.u32 %v3707, %v3703
      %v3709 = vrot.slane %v3708, 4
      %v3711 = vshll.u32 %v3603, 16
      %v3713 = vrot.slane %v3711, 5
      %v3714 = vsel %vm251, %v3709, %v3713
      %v3716 = vshrl.u32 %v3604, 16
      %v3718 = vrot.slane %v3716, 4
      %v3719 = vshll.u32 %v3604, 16
      %v3721 = vrot.slane %v3719, 5
      %v3722 = vor.u32 %v3718, %v3721
      %v3723 = vrot.slane %v3722, 4
      %v3725 = vshll.u32 %v3605, 16
      %v3727 = vrot.slane %v3725, 5
      %v3728 = vsel %vm251, %v3723, %v3727
      %v3729 = vshrl.u32 %v3605, 16
      %v3731 = vrot.slane %v3729, 4
      %v3732 = vor.u32 %v3731, %v3727
      %v3733 = vrot.slane %v3732, 4
      %v3735 = vshll.u32 %v3606, 16
      %v3737 = vrot.slane %v3735, 5
      %v3738 = vsel %vm251, %v3733, %v3737
      %v3740 = vshrl.u32 %v3607, 16
      %v3742 = vrot.slane %v3740, 4
      %v3743 = vshll.u32 %v3607, 16
      %v3745 = vrot.slane %v3743, 5
      %v3746 = vor.u32 %v3742, %v3745
      %v3747 = vrot.slane %v3746, 4
      %v3749 = vshll.u32 %v3608, 16
      %v3751 = vrot.slane %v3749, 5
      %v3752 = vsel %vm251, %v3747, %v3751
      %v3753 = vshrl.u32 %v3608, 16
      %v3755 = vrot.slane %v3753, 4
      %v3756 = vor.u32 %v3755, %v3751
      %v3757 = vrot.slane %v3756, 4
      %v3759 = vshll.u32 %v3609, 16
      %v3761 = vrot.slane %v3759, 5
      %v3762 = vsel %vm251, %v3757, %v3761
      %v3764 = vshrl.u32 %v3610, 16
      %v3766 = vrot.slane %v3764, 4
      %v3767 = vshll.u32 %v3610, 16
      %v3769 = vrot.slane %v3767, 5
      %v3770 = vor.u32 %v3766, %v3769
      %v3771 = vrot.slane %v3770, 4
      %v3773 = vshll.u32 %v3611, 16
      %v3775 = vrot.slane %v3773, 5
      %v3776 = vsel %vm251, %v3771, %v3775
      %v3777 = vshrl.u32 %v3611, 16
      %v3779 = vrot.slane %v3777, 4
      %v3780 = vor.u32 %v3779, %v3775
      %v3781 = vrot.slane %v3780, 4
      %v3783 = vshll.u32 %v3612, 16
      %v3785 = vrot.slane %v3783, 5
      %v3786 = vsel %vm251, %v3781, %v3785
      %v3788 = vshrl.u32 %v3613, 16
      %v3790 = vrot.slane %v3788, 4
      %v3791 = vshll.u32 %v3613, 16
      %v3793 = vrot.slane %v3791, 5
      %v3794 = vor.u32 %v3790, %v3793
      %v3795 = vrot.slane %v3794, 4
      %v3797 = vshll.u32 %v3614, 16
      %v3799 = vrot.slane %v3797, 5
      %v3800 = vsel %vm251, %v3795, %v3799
      %v3801 = vshrl.u32 %v3614, 16
      %v3803 = vrot.slane %v3801, 4
      %v3804 = vor.u32 %v3803, %v3799
      %v3805 = vrot.slane %v3804, 4
      %v3807 = vshll.u32 %v3615, 16
      %v3809 = vrot.slane %v3807, 5
      %v3810 = vsel %vm251, %v3805, %v3809
      %v3812 = vshrl.u32 %v3616, 16
      %v3814 = vrot.slane %v3812, 4
      %v3815 = vshll.u32 %v3616, 16
      %v3817 = vrot.slane %v3815, 5
      %v3818 = vor.u32 %v3814, %v3817
      %v3819 = vrot.slane %v3818, 4
      %v3821 = vshll.u32 %v3617, 16
      %v3823 = vrot.slane %v3821, 5
      %v3824 = vsel %vm251, %v3819, %v3823
      %v3825 = vshrl.u32 %v3617, 16
      %v3827 = vrot.slane %v3825, 4
      %v3828 = vor.u32 %v3827, %v3823
      %v3829 = vrot.slane %v3828, 4
      %v3831 = vshll.u32 %v3618, 16
      %v3833 = vrot.slane %v3831, 5
      %v3834 = vsel %vm251, %v3829, %v3833
      %v3836 = vshrl.u32 %v3619, 16
      %v3838 = vrot.slane %v3836, 4
      %v3839 = vshll.u32 %v3619, 16
      %v3841 = vrot.slane %v3839, 5
      %v3842 = vor.u32 %v3838, %v3841
      %v3843 = vrot.slane %v3842, 4
      %v3845 = vshll.u32 %v3620, 16
      %v3847 = vrot.slane %v3845, 5
      %v3848 = vsel %vm251, %v3843, %v3847
      %v3849 = vshrl.u32 %v3620, 16
      %v3851 = vrot.slane %v3849, 4
      %v3852 = vor.u32 %v3851, %v3847
      %v3853 = vrot.slane %v3852, 4
      %v3855 = vshll.u32 %v3621, 16
      %v3857 = vrot.slane %v3855, 5
      %v3858 = vsel %vm251, %v3853, %v3857
      %v3860 = vshrl.u32 %v3622, 16
      %v3862 = vrot.slane %v3860, 4
      %v3863 = vshll.u32 %v3622, 16
      %v3865 = vrot.slane %v3863, 5
      %v3866 = vor.u32 %v3862, %v3865
      %v3867 = vrot.slane %v3866, 4
      %v3869 = vshll.u32 %v3623, 16
      %v3871 = vrot.slane %v3869, 5
      %v3872 = vsel %vm251, %v3867, %v3871
      %v3873 = vshrl.u32 %v3623, 16
      %v3875 = vrot.slane %v3873, 4
      %v3876 = vor.u32 %v3875, %v3871
      %v3877 = vrot.slane %v3876, 4
      %v3879 = vshll.u32 %v3624, 16
      %v3881 = vrot.slane %v3879, 5
      %v3882 = vsel %vm251, %v3877, %v3881
      %v3884 = vshrl.u32 %v3625, 16
      %v3886 = vrot.slane %v3884, 4
      %v3887 = vshll.u32 %v3625, 16
      %v3889 = vrot.slane %v3887, 5
      %v3890 = vor.u32 %v3886, %v3889
      %v3891 = vrot.slane %v3890, 4
      %v3893 = vshll.u32 %v3626, 16
      %v3895 = vrot.slane %v3893, 5
      %v3896 = vsel %vm251, %v3891, %v3895
      %v3897 = vshrl.u32 %v3626, 16
      %v3899 = vrot.slane %v3897, 4
      %v3900 = vor.u32 %v3899, %v3895
      %v3901 = vrot.slane %v3900, 4
      %v3903 = vshll.u32 %v3627, 16
      %v3905 = vrot.slane %v3903, 5
      %v3906 = vsel %vm251, %v3901, %v3905
      %v3908 = vshrl.u32 %v3628, 16
      %v3910 = vrot.slane %v3908, 4
      %v3911 = vshll.u32 %v3628, 16
      %v3913 = vrot.slane %v3911, 5
      %v3914 = vor.u32 %v3910, %v3913
      %v3915 = vrot.slane %v3914, 4
      %v3917 = vshll.u32 %v3629, 16
      %v3919 = vrot.slane %v3917, 5
      %v3920 = vsel %vm251, %v3915, %v3919
      %v3921 = vshrl.u32 %v3629, 16
      %v3923 = vrot.slane %v3921, 4
      %v3924 = vor.u32 %v3923, %v3919
      %v3925 = vrot.slane %v3924, 4
      %v3927 = vshll.u32 %v3630, 16
      %v3929 = vrot.slane %v3927, 5
      %v3930 = vsel %vm251, %v3925, %v3929
      %v3932 = vshrl.u32 %v3631, 16
      %v3934 = vrot.slane %v3932, 4
      %v3935 = vshll.u32 %v3631, 16
      %v3937 = vrot.slane %v3935, 5
      %v3938 = vor.u32 %v3934, %v3937
      %v3939 = vrot.slane %v3938, 4
      %v3941 = vshll.u32 %v3632, 16
      %v3943 = vrot.slane %v3941, 5
      %v3944 = vsel %vm251, %v3939, %v3943
      %v3945 = vshrl.u32 %v3632, 16
      %v3947 = vrot.slane %v3945, 4
      %v3948 = vor.u32 %v3947, %v3943
      %v3949 = vrot.slane %v3948, 4
      %v3951 = vshll.u32 %v3633, 16
      %v3953 = vrot.slane %v3951, 5
      %v3954 = vsel %vm251, %v3949, %v3953
      %v3956 = vshrl.u32 %v3634, 16
      %v3958 = vrot.slane %v3956, 4
      %v3959 = vshll.u32 %v3634, 16
      %v3961 = vrot.slane %v3959, 5
      %v3962 = vor.u32 %v3958, %v3961
      %v3963 = vrot.slane %v3962, 4
      %v3965 = vshll.u32 %v3635, 16
      %v3967 = vrot.slane %v3965, 5
      %v3968 = vsel %vm251, %v3963, %v3967
      %v3969 = vshrl.u32 %v3635, 16
      %v3971 = vrot.slane %v3969, 4
      %v3972 = vor.u32 %v3971, %v3967
      %v3973 = vrot.slane %v3972, 4
      %v3975 = vshll.u32 %v3636, 16
      %v3977 = vrot.slane %v3975, 5
      %v3978 = vsel %vm251, %v3973, %v3977
      %v3980 = vshrl.u32 %v3637, 16
      %v3982 = vrot.slane %v3980, 4
      %v3983 = vshll.u32 %v3637, 16
      %v3985 = vrot.slane %v3983, 5
      %v3986 = vor.u32 %v3982, %v3985
      %v3987 = vrot.slane %v3986, 4
      %v3989 = vshll.u32 %v3638, 16
      %v3991 = vrot.slane %v3989, 5
      %v3992 = vsel %vm251, %v3987, %v3991
      %v3993 = vshrl.u32 %v3638, 16
      %v3995 = vrot.slane %v3993, 4
      %v3996 = vor.u32 %v3995, %v3991
      %v3997 = vrot.slane %v3996, 4
      %v3999 = vshll.u32 %v3639, 16
      %v4001 = vrot.slane %v3999, 5
      %v4002 = vsel %vm251, %v3997, %v4001
      %v4004 = vshrl.u32 %v3640, 16
      %v4006 = vrot.slane %v4004, 4
      %v4007 = vshll.u32 %v3640, 16
      %v4009 = vrot.slane %v4007, 5
      %v4010 = vor.u32 %v4006, %v4009
      %v4011 = vrot.slane %v4010, 4
      %v4013 = vshll.u32 %v3641, 16
      %v4015 = vrot.slane %v4013, 5
      %v4016 = vsel %vm251, %v4011, %v4015
      %v4017 = vshrl.u32 %v3641, 16
      %v4019 = vrot.slane %v4017, 4
      %v4020 = vor.u32 %v4019, %v4015
      %v4021 = vrot.slane %v4020, 4
      %v4023 = vshll.u32 %v3642, 16
      %v4025 = vrot.slane %v4023, 5
      %v4026 = vsel %vm251, %v4021, %v4025
      %s4027 = scalar_lea.vmem %s1, 56
      %v4028 = vld [vmem:[%s4027] sm:$0xf]
      %v4029 = vld [vmem:[%s4027 + $0x4] sm:$0xf]
      %v4030 = vunpack.c.l.b16 %v3656
      %v4031 = vunpack.c.l.b16 %v3666
      %v4032 = vunpack.c.l.b16 %v3680
      %v4033 = vunpack.c.l.b16 %v3690
      %v4034 = vunpack.c.l.b16 %v3704
      %v4035 = vunpack.c.l.b16 %v3714
      %v4036 = vunpack.c.l.b16 %v3728
      %v4037 = vunpack.c.l.b16 %v3738
      %v4038 = vunpack.c.l.b16 %v3752
      %v4039 = vunpack.c.l.b16 %v3762
      %v4040 = vunpack.c.l.b16 %v3776
      %v4041 = vunpack.c.l.b16 %v3786
      %v4042 = vunpack.c.l.b16 %v3800
      %v4043 = vunpack.c.l.b16 %v3810
      %v4044 = vunpack.c.l.b16 %v3824
      %v4045 = vunpack.c.l.b16 %v3834
      %v4046 = vunpack.c.l.b16 %v3848
      %v4047 = vunpack.c.l.b16 %v3858
      %v4048 = vunpack.c.l.b16 %v3872
      %v4049 = vunpack.c.l.b16 %v3882
      %v4050 = vunpack.c.l.b16 %v3896
      %v4051 = vunpack.c.l.b16 %v3906
      %v4052 = vunpack.c.l.b16 %v3920
      %v4053 = vunpack.c.l.b16 %v3930
      %v4054 = vunpack.c.l.b16 %v3944
      %v4055 = vunpack.c.l.b16 %v3954
      %v4056 = vunpack.c.l.b16 %v3968
      %v4057 = vunpack.c.l.b16 %v3978
      %v4058 = vunpack.c.l.b16 %v3992
      %v4059 = vunpack.c.l.b16 %v4002
      %v4060 = vunpack.c.l.b16 %v4016
      %v4061 = vunpack.c.l.b16 %v4026
      %v4062 = vpack.c.b16 %v4031, %v4030
      %v4063 = vpack.c.b16 %v4033, %v4032
      %v4064 = vpack.c.b16 %v4035, %v4034
      %v4065 = vpack.c.b16 %v4037, %v4036
      %v4066 = vpack.c.b16 %v4039, %v4038
      %v4067 = vpack.c.b16 %v4041, %v4040
      %v4068 = vpack.c.b16 %v4043, %v4042
      %v4069 = vpack.c.b16 %v4045, %v4044
      %v4070 = vpack.c.b16 %v4047, %v4046
      %v4071 = vpack.c.b16 %v4049, %v4048
      %v4072 = vpack.c.b16 %v4051, %v4050
      %v4073 = vpack.c.b16 %v4053, %v4052
      %v4074 = vpack.c.b16 %v4055, %v4054
      %v4075 = vpack.c.b16 %v4057, %v4056
      %v4076 = vpack.c.b16 %v4059, %v4058
      %v4077 = vpack.c.b16 %v4061, %v4060
      %v4080 = vunpack.c.l.b16 %v4028
      %v4081 = vunpack.c.l.b16 %v4029
      %v4082 = vpack.c.b16 %v4081, %v4080
      %v4085 = vsel %vm693, %v4062, 0
      %v4088 = vsel %vm693, %v4063, 0
      %v4091 = vsel %vm693, %v4064, 0
      %v4094 = vsel %vm693, %v4065, 0
      %v4097 = vsel %vm693, %v4066, 0
      %v4100 = vsel %vm693, %v4067, 0
      %v4103 = vsel %vm693, %v4068, 0
      %v4106 = vsel %vm693, %v4069, 0
      %v4109 = vsel %vm693, %v4070, 0
      %v4112 = vsel %vm693, %v4071, 0
      %v4115 = vsel %vm693, %v4072, 0
      %v4118 = vsel %vm693, %v4073, 0
      %v4121 = vsel %vm693, %v4074, 0
      %v4124 = vsel %vm693, %v4075, 0
      %v4127 = vsel %vm693, %v4076, 0
      %v4130 = vsel %vm693, %v4077, 0
      %4132 = vmatprep.subr.bf16.mxu0 0
      %4133 = vmatpush1.bf16.msra.mxu0 %v4082
      %4134 = vmatprep.subr.bf16.mxu0 0
      %4135 = vmatpush1.bf16.msra.mxu0 0
      %4136 = vmatprep.subr.bf16.mxu0 0
      %4137 = vmatpush1.bf16.msra.mxu0 0
      %4138 = vmatprep.subr.bf16.mxu0 0
      %4139 = vmatpush1.bf16.msra.mxu0 0
      %4140 = vmatprep.subr.bf16.mxu0 0
      %4141 = vmatpush1.bf16.msra.mxu0 0
      %4142 = vmatprep.subr.bf16.mxu0 0
      %4143 = vmatpush1.bf16.msra.mxu0 0
      %4144 = vmatprep.subr.bf16.mxu0 0
      %4145 = vmatpush1.bf16.msra.mxu0 0
      %4146 = vmatprep.subr.bf16.mxu0 0
      %4147 = vmatpush1.bf16.msra.mxu0 0
      %4148 = vmatprep.subr.bf16.mxu0 0
      %4149 = vmatpush1.bf16.msra.mxu0 0
      %4150 = vmatprep.subr.bf16.mxu0 0
      %4151 = vmatpush1.bf16.msra.mxu0 0
      %4152 = vmatprep.subr.bf16.mxu0 0
      %4153 = vmatpush1.bf16.msra.mxu0 0
      %4154 = vmatprep.subr.bf16.mxu0 0
      %4155 = vmatpush1.bf16.msra.mxu0 0
      %4156 = vmatprep.subr.bf16.mxu0 0
      %4157 = vmatpush1.bf16.msra.mxu0 0
      %4158 = vmatprep.subr.bf16.mxu0 0
      %4159 = vmatpush1.bf16.msra.mxu0 0
      %4160 = vmatprep.subr.bf16.mxu0 0
      %4161 = vmatpush1.bf16.msra.mxu0 0
      %4162 = vmatprep.subr.bf16.mxu0 0
      %4163 = vmatpush1.bf16.msra.mxu0 0
      %4164 = vmatprep.mubr.bf16.mxu0 0
      %4165 = vmatmul.mubr.bf16.gmra.mrb[0].mxu0 %v4085
      %v4166 = vpop.f32.mrb[0].mxu0
      %v4167 = vadd.f32 0.0, %v4166
      %v4168 = vpop.f32.mrb[0].mxu0
      %v4169 = vpop.f32.mrb[0].mxu0
      %v4170 = vadd.f32 0.0, %v4169
      %v4171 = vpop.f32.mrb[0].mxu0
      %4172 = vmatprep.mubr.bf16.mxu0 0
      %4173 = vmatmul.mubr.bf16.gmra.mrb[0].mxu0 %v4088
      %v4174 = vpop.f32.mrb[0].mxu0
      %v4175 = vadd.f32 0.0, %v4174
      %v4176 = vpop.f32.mrb[0].mxu0
      %v4177 = vpop.f32.mrb[0].mxu0
      %v4178 = vadd.f32 0.0, %v4177
      %v4179 = vpop.f32.mrb[0].mxu0
      %4180 = vmatprep.mubr.bf16.mxu0 0
      %4181 = vmatmul.mubr.bf16.gmra.mrb[0].mxu0 %v4091
      %v4182 = vpop.f32.mrb[0].mxu0
      %v4183 = vadd.f32 0.0, %v4182
      %v4184 = vpop.f32.mrb[0].mxu0
      %v4185 = vpop.f32.mrb[0].mxu0
      %v4186 = vadd.f32 0.0, %v4185
      %v4187 = vpop.f32.mrb[0].mxu0
      %4188 = vmatprep.mubr.bf16.mxu0 0
      %4189 = vmatmul.mubr.bf16.gmra.mrb[0].mxu0 %v4094
      %v4190 = vpop.f32.mrb[0].mxu0
      %v4191 = vadd.f32 0.0, %v4190
      %v4192 = vpop.f32.mrb[0].mxu0
      %v4193 = vpop.f32.mrb[0].mxu0
      %v4194 = vadd.f32 0.0, %v4193
      %v4195 = vpop.f32.mrb[0].mxu0
      %4196 = vmatprep.mubr.bf16.mxu0 0
      %4197 = vmatmul.mubr.bf16.gmra.mrb[0].mxu0 %v4097
      %v4198 = vpop.f32.mrb[0].mxu0
      %v4199 = vadd.f32 0.0, %v4198
      %v4200 = vpop.f32.mrb[0].mxu0
      %v4201 = vpop.f32.mrb[0].mxu0
      %v4202 = vadd.f32 0.0, %v4201
      %v4203 = vpop.f32.mrb[0].mxu0
      %4204 = vmatprep.mubr.bf16.mxu0 0
      %4205 = vmatmul.mubr.bf16.gmra.mrb[0].mxu0 %v4100
      %v4206 = vpop.f32.mrb[0].mxu0
      %v4207 = vadd.f32 0.0, %v4206
      %v4208 = vpop.f32.mrb[0].mxu0
      %v4209 = vpop.f32.mrb[0].mxu0
      %v4210 = vadd.f32 0.0, %v4209
      %v4211 = vpop.f32.mrb[0].mxu0
      %4212 = vmatprep.mubr.bf16.mxu0 0
      %4213 = vmatmul.mubr.bf16.gmra.mrb[0].mxu0 %v4103
      %v4214 = vpop.f32.mrb[0].mxu0
      %v4215 = vadd.f32 0.0, %v4214
      %v4216 = vpop.f32.mrb[0].mxu0
      %v4217 = vpop.f32.mrb[0].mxu0
      %v4218 = vadd.f32 0.0, %v4217
      %v4219 = vpop.f32.mrb[0].mxu0
      %4220 = vmatprep.mubr.bf16.mxu0 0
      %4221 = vmatmul.mubr.bf16.gmra.mrb[0].mxu0 %v4106
      %v4222 = vpop.f32.mrb[0].mxu0
      %v4223 = vadd.f32 0.0, %v4222
      %v4224 = vpop.f32.mrb[0].mxu0
      %v4225 = vpop.f32.mrb[0].mxu0
      %v4226 = vadd.f32 0.0, %v4225
      %v4227 = vpop.f32.mrb[0].mxu0
      %4228 = vmatprep.mubr.bf16.mxu0 0
      %4229 = vmatmul.mubr.bf16.gmra.mrb[0].mxu0 %v4109
      %v4230 = vpop.f32.mrb[0].mxu0
      %v4231 = vadd.f32 0.0, %v4230
      %v4232 = vpop.f32.mrb[0].mxu0
      %v4233 = vpop.f32.mrb[0].mxu0
      %v4234 = vadd.f32 0.0, %v4233
      %v4235 = vpop.f32.mrb[0].mxu0
      %4236 = vmatprep.mubr.bf16.mxu0 0
      %4237 = vmatmul.mubr.bf16.gmra.mrb[0].mxu0 %v4112
      %v4238 = vpop.f32.mrb[0].mxu0
      %v4239 = vadd.f32 0.0, %v4238
      %v4240 = vpop.f32.mrb[0].mxu0
      %v4241 = vpop.f32.mrb[0].mxu0
      %v4242 = vadd.f32 0.0, %v4241
      %v4243 = vpop.f32.mrb[0].mxu0
      %4244 = vmatprep.mubr.bf16.mxu0 0
      %4245 = vmatmul.mubr.bf16.gmra.mrb[0].mxu0 %v4115
      %v4246 = vpop.f32.mrb[0].mxu0
      %v4247 = vadd.f32 0.0, %v4246
      %v4248 = vpop.f32.mrb[0].mxu0
      %v4249 = vpop.f32.mrb[0].mxu0
      %v4250 = vadd.f32 0.0, %v4249
      %v4251 = vpop.f32.mrb[0].mxu0
      %4252 = vmatprep.mubr.bf16.mxu0 0
      %4253 = vmatmul.mubr.bf16.gmra.mrb[0].mxu0 %v4118
      %v4254 = vpop.f32.mrb[0].mxu0
      %v4255 = vadd.f32 0.0, %v4254
      %v4256 = vpop.f32.mrb[0].mxu0
      %v4257 = vpop.f32.mrb[0].mxu0
      %v4258 = vadd.f32 0.0, %v4257
      %v4259 = vpop.f32.mrb[0].mxu0
      %4260 = vmatprep.mubr.bf16.mxu0 0
      %4261 = vmatmul.mubr.bf16.gmra.mrb[0].mxu0 %v4121
      %v4262 = vpop.f32.mrb[0].mxu0
      %v4263 = vadd.f32 0.0, %v4262
      %v4264 = vpop.f32.mrb[0].mxu0
      %v4265 = vpop.f32.mrb[0].mxu0
      %v4266 = vadd.f32 0.0, %v4265
      %v4267 = vpop.f32.mrb[0].mxu0
      %4268 = vmatprep.mubr.bf16.mxu0 0
      %4269 = vmatmul.mubr.bf16.gmra.mrb[0].mxu0 %v4124
      %v4270 = vpop.f32.mrb[0].mxu0
      %v4271 = vadd.f32 0.0, %v4270
      %v4272 = vpop.f32.mrb[0].mxu0
      %v4273 = vpop.f32.mrb[0].mxu0
      %v4274 = vadd.f32 0.0, %v4273
      %v4275 = vpop.f32.mrb[0].mxu0
      %4276 = vmatprep.mubr.bf16.mxu0 0
      %4277 = vmatmul.mubr.bf16.gmra.mrb[0].mxu0 %v4127
      %v4278 = vpop.f32.mrb[0].mxu0
      %v4279 = vadd.f32 0.0, %v4278
      %v4280 = vpop.f32.mrb[0].mxu0
      %v4281 = vpop.f32.mrb[0].mxu0
      %v4282 = vadd.f32 0.0, %v4281
      %v4283 = vpop.f32.mrb[0].mxu0
      %4284 = vmatprep.mubr.bf16.mxu0 0
      %4285 = vmatmul.mubr.bf16.gmra.mrb[0].mxu0 %v4130
      %v4286 = vpop.f32.mrb[0].mxu0
      %v4287 = vadd.f32 0.0, %v4286
      %v4288 = vpop.f32.mrb[0].mxu0
      %v4289 = vpop.f32.mrb[0].mxu0
      %v4290 = vadd.f32 0.0, %v4289
      %v4291 = vpop.f32.mrb[0].mxu0
      %4292 = vdwg.mxu0
      %v4293 = vadd.f32 %v3563, %v4167
      %v4294 = vadd.f32 %v3564, %v4170
      %v4295 = vadd.f32 %v3565, %v4175
      %v4296 = vadd.f32 %v3566, %v4178
      %v4297 = vadd.f32 %v3567, %v4183
      %v4298 = vadd.f32 %v3568, %v4186
      %v4299 = vadd.f32 %v3569, %v4191
      %v4300 = vadd.f32 %v3570, %v4194
      %v4301 = vadd.f32 %v3571, %v4199
      %v4302 = vadd.f32 %v3572, %v4202
      %v4303 = vadd.f32 %v3573, %v4207
      %v4304 = vadd.f32 %v3574, %v4210
      %v4305 = vadd.f32 %v3575, %v4215
      %v4306 = vadd.f32 %v3576, %v4218
      %v4307 = vadd.f32 %v3577, %v4223
      %v4308 = vadd.f32 %v3578, %v4226
      %v4309 = vadd.f32 %v3579, %v4231
      %v4310 = vadd.f32 %v3580, %v4234
      %v4311 = vadd.f32 %v3581, %v4239
      %v4312 = vadd.f32 %v3582, %v4242
      %v4313 = vadd.f32 %v3583, %v4247
      %v4314 = vadd.f32 %v3584, %v4250
      %v4315 = vadd.f32 %v3585, %v4255
      %v4316 = vadd.f32 %v3586, %v4258
      %v4317 = vadd.f32 %v3587, %v4263
      %v4318 = vadd.f32 %v3588, %v4266
      %v4319 = vadd.f32 %v3589, %v4271
      %v4320 = vadd.f32 %v3590, %v4274
      %v4321 = vadd.f32 %v3591, %v4279
      %v4322 = vadd.f32 %v3592, %v4282
      %v4323 = vadd.f32 %v3593, %v4287
      %v4324 = vadd.f32 %v3594, %v4290
      %v4325 = vld [vmem:[%s3232] sm:$0xe]
      %v4326 = vld [vmem:[%s3232 + $0xc] sm:$0xe]
      %v4327 = vld [vmem:[%s3232 + $0x18] sm:$0xe]
      %v4328 = vld [vmem:[%s3232 + $0x24] sm:$0xe]
      %v4329 = vld [vmem:[%s3232 + $0x30] sm:$0xe]
      %v4330 = vld [vmem:[%s3232 + $0x3c] sm:$0xe]
      %v4331 = vld [vmem:[%s3232 + $0x48] sm:$0xe]
      %v4332 = vld [vmem:[%s3232 + $0x54] sm:$0xe]
      %v4333 = vld [vmem:[%s3232 + $0x60] sm:$0xe]
      %v4334 = vld [vmem:[%s3232 + $0x6c] sm:$0xe]
      %v4335 = vld [vmem:[%s3232 + $0x78] sm:$0xe]
      %v4336 = vld [vmem:[%s3232 + $0x84] sm:$0xe]
      %v4337 = vld [vmem:[%s3232 + $0x90] sm:$0xe]
      %v4338 = vld [vmem:[%s3232 + $0x9c] sm:$0xe]
      %v4339 = vld [vmem:[%s3232 + $0xa8] sm:$0xe]
      %v4340 = vld [vmem:[%s3232 + $0xb4] sm:$0xe]
      %v4389 = vrot.slane %v4325, 5
      %v4390 = vrot.slane %v4389, 4
      %v4391 = vrot.slane %v3596, 5
      %v4392 = vsel %vm1248, %v4390, %v4391
      %v4393 = vrot.slane %v4391, 4
      %v4394 = vrot.slane %v3597, 5
      %v4395 = vsel %vm1248, %v4393, %v4394
      %v4396 = vrot.slane %v4326, 5
      %v4397 = vrot.slane %v4396, 4
      %v4398 = vrot.slane %v3599, 5
      %v4399 = vsel %vm1248, %v4397, %v4398
      %v4400 = vrot.slane %v4398, 4
      %v4401 = vrot.slane %v3600, 5
      %v4402 = vsel %vm1248, %v4400, %v4401
      %v4403 = vrot.slane %v4327, 5
      %v4404 = vrot.slane %v4403, 4
      %v4405 = vrot.slane %v3602, 5
      %v4406 = vsel %vm1248, %v4404, %v4405
      %v4407 = vrot.slane %v4405, 4
      %v4408 = vrot.slane %v3603, 5
      %v4409 = vsel %vm1248, %v4407, %v4408
      %v4410 = vrot.slane %v4328, 5
      %v4411 = vrot.slane %v4410, 4
      %v4412 = vrot.slane %v3605, 5
      %v4413 = vsel %vm1248, %v4411, %v4412
      %v4414 = vrot.slane %v4412, 4
      %v4415 = vrot.slane %v3606, 5
      %v4416 = vsel %vm1248, %v4414, %v4415
      %v4417 = vrot.slane %v4329, 5
      %v4418 = vrot.slane %v4417, 4
      %v4419 = vrot.slane %v3608, 5
      %v4420 = vsel %vm1248, %v4418, %v4419
      %v4421 = vrot.slane %v4419, 4
      %v4422 = vrot.slane %v3609, 5
      %v4423 = vsel %vm1248, %v4421, %v4422
      %v4424 = vrot.slane %v4330, 5
      %v4425 = vrot.slane %v4424, 4
      %v4426 = vrot.slane %v3611, 5
      %v4427 = vsel %vm1248, %v4425, %v4426
      %v4428 = vrot.slane %v4426, 4
      %v4429 = vrot.slane %v3612, 5
      %v4430 = vsel %vm1248, %v4428, %v4429
      %v4431 = vrot.slane %v4331, 5
      %v4432 = vrot.slane %v4431, 4
      %v4433 = vrot.slane %v3614, 5
      %v4434 = vsel %vm1248, %v4432, %v4433
      %v4435 = vrot.slane %v4433, 4
      %v4436 = vrot.slane %v3615, 5
      %v4437 = vsel %vm1248, %v4435, %v4436
      %v4438 = vrot.slane %v4332, 5
      %v4439 = vrot.slane %v4438, 4
      %v4440 = vrot.slane %v3617, 5
      %v4441 = vsel %vm1248, %v4439, %v4440
      %v4442 = vrot.slane %v4440, 4
      %v4443 = vrot.slane %v3618, 5
      %v4444 = vsel %vm1248, %v4442, %v4443
      %v4445 = vrot.slane %v4333, 5
      %v4446 = vrot.slane %v4445, 4
      %v4447 = vrot.slane %v3620, 5
      %v4448 = vsel %vm1248, %v4446, %v4447
      %v4449 = vrot.slane %v4447, 4
      %v4450 = vrot.slane %v3621, 5
      %v4451 = vsel %vm1248, %v4449, %v4450
      %v4452 = vrot.slane %v4334, 5
      %v4453 = vrot.slane %v4452, 4
      %v4454 = vrot.slane %v3623, 5
      %v4455 = vsel %vm1248, %v4453, %v4454
      %v4456 = vrot.slane %v4454, 4
      %v4457 = vrot.slane %v3624, 5
      %v4458 = vsel %vm1248, %v4456, %v4457
      %v4459 = vrot.slane %v4335, 5
      %v4460 = vrot.slane %v4459, 4
      %v4461 = vrot.slane %v3626, 5
      %v4462 = vsel %vm1248, %v4460, %v4461
      %v4463 = vrot.slane %v4461, 4
      %v4464 = vrot.slane %v3627, 5
      %v4465 = vsel %vm1248, %v4463, %v4464
      %v4466 = vrot.slane %v4336, 5
      %v4467 = vrot.slane %v4466, 4
      %v4468 = vrot.slane %v3629, 5
      %v4469 = vsel %vm1248, %v4467, %v4468
      %v4470 = vrot.slane %v4468, 4
      %v4471 = vrot.slane %v3630, 5
      %v4472 = vsel %vm1248, %v4470, %v4471
      %v4473 = vrot.slane %v4337, 5
      %v4474 = vrot.slane %v4473, 4
      %v4475 = vrot.slane %v3632, 5
      %v4476 = vsel %vm1248, %v4474, %v4475
      %v4477 = vrot.slane %v4475, 4
      %v4478 = vrot.slane %v3633, 5
      %v4479 = vsel %vm1248, %v4477, %v4478
      %v4480 = vrot.slane %v4338, 5
      %v4481 = vrot.slane %v4480, 4
      %v4482 = vrot.slane %v3635, 5
      %v4483 = vsel %vm1248, %v4481, %v4482
      %v4484 = vrot.slane %v4482, 4
      %v4485 = vrot.slane %v3636, 5
      %v4486 = vsel %vm1248, %v4484, %v4485
      %v4487 = vrot.slane %v4339, 5
      %v4488 = vrot.slane %v4487, 4
      %v4489 = vrot.slane %v3638, 5
      %v4490 = vsel %vm1248, %v4488, %v4489
      %v4491 = vrot.slane %v4489, 4
      %v4492 = vrot.slane %v3639, 5
      %v4493 = vsel %vm1248, %v4491, %v4492
      %v4494 = vrot.slane %v4340, 5
      %v4495 = vrot.slane %v4494, 4
      %v4496 = vrot.slane %v3641, 5
      %v4497 = vsel %vm1248, %v4495, %v4496
      %v4498 = vrot.slane %v4496, 4
      %v4499 = vrot.slane %v3642, 5
      %v4500 = vsel %vm1248, %v4498, %v4499
      %s4501 = scalar_lea.vmem %s1, 64
      %v4502 = vld [vmem:[%s4501] sm:$0xf]
      %v4503 = vld [vmem:[%s4501 + $0x4] sm:$0xf]
      %v4504 = vunpack.c.l.b16 %v4392
      %v4505 = vunpack.c.l.b16 %v4395
      %v4506 = vunpack.c.l.b16 %v4399
      %v4507 = vunpack.c.l.b16 %v4402
      %v4508 = vunpack.c.l.b16 %v4406
      %v4509 = vunpack.c.l.b16 %v4409
      %v4510 = vunpack.c.l.b16 %v4413
      %v4511 = vunpack.c.l.b16 %v4416
      %v4512 = vunpack.c.l.b16 %v4420
      %v4513 = vunpack.c.l.b16 %v4423
      %v4514 = vunpack.c.l.b16 %v4427
      %v4515 = vunpack.c.l.b16 %v4430
      %v4516 = vunpack.c.l.b16 %v4434
      %v4517 = vunpack.c.l.b16 %v4437
      %v4518 = vunpack.c.l.b16 %v4441
      %v4519 = vunpack.c.l.b16 %v4444
      %v4520 = vunpack.c.l.b16 %v4448
      %v4521 = vunpack.c.l.b16 %v4451
      %v4522 = vunpack.c.l.b16 %v4455
      %v4523 = vunpack.c.l.b16 %v4458
      %v4524 = vunpack.c.l.b16 %v4462
      %v4525 = vunpack.c.l.b16 %v4465
      %v4526 = vunpack.c.l.b16 %v4469
      %v4527 = vunpack.c.l.b16 %v4472
      %v4528 = vunpack.c.l.b16 %v4476
      %v4529 = vunpack.c.l.b16 %v4479
      %v4530 = vunpack.c.l.b16 %v4483
      %v4531 = vunpack.c.l.b16 %v4486
      %v4532 = vunpack.c.l.b16 %v4490
      %v4533 = vunpack.c.l.b16 %v4493
      %v4534 = vunpack.c.l.b16 %v4497
      %v4535 = vunpack.c.l.b16 %v4500
      %v4536 = vpack.c.b16 %v4505, %v4504
      %v4537 = vpack.c.b16 %v4507, %v4506
      %v4538 = vpack.c.b16 %v4509, %v4508
      %v4539 = vpack.c.b16 %v4511, %v4510
      %v4540 = vpack.c.b16 %v4513, %v4512
      %v4541 = vpack.c.b16 %v4515, %v4514
      %v4542 = vpack.c.b16 %v4517, %v4516
      %v4543 = vpack.c.b16 %v4519, %v4518
      %v4544 = vpack.c.b16 %v4521, %v4520
      %v4545 = vpack.c.b16 %v4523, %v4522
      %v4546 = vpack.c.b16 %v4525, %v4524
      %v4547 = vpack.c.b16 %v4527, %v4526
      %v4548 = vpack.c.b16 %v4529, %v4528
      %v4549 = vpack.c.b16 %v4531, %v4530
      %v4550 = vpack.c.b16 %v4533, %v4532
      %v4551 = vpack.c.b16 %v4535, %v4534
      %v4554 = vunpack.c.l.b16 %v4502
      %v4555 = vunpack.c.l.b16 %v4503
      %v4556 = vpack.c.b16 %v4555, %v4554
      %v4559 = vsel %vm693, %v4536, 0
      %v4562 = vsel %vm693, %v4537, 0
      %v4565 = vsel %vm693, %v4538, 0
      %v4568 = vsel %vm693, %v4539, 0
      %v4571 = vsel %vm693, %v4540, 0
      %v4574 = vsel %vm693, %v4541, 0
      %v4577 = vsel %vm693, %v4542, 0
      %v4580 = vsel %vm693, %v4543, 0
      %v4583 = vsel %vm693, %v4544, 0
      %v4586 = vsel %vm693, %v4545, 0
      %v4589 = vsel %vm693, %v4546, 0
      %v4592 = vsel %vm693, %v4547, 0
      %v4595 = vsel %vm693, %v4548, 0
      %v4598 = vsel %vm693, %v4549, 0
      %v4601 = vsel %vm693, %v4550, 0
      %v4604 = vsel %vm693, %v4551, 0
      %4606 = vmatprep.subr.bf16.mxu0 0
      %4607 = vmatpush1.bf16.msra.mxu0 %v4556
      %4608 = vmatprep.subr.bf16.mxu0 0
      %4609 = vmatpush1.bf16.msra.mxu0 0
      %4610 = vmatprep.subr.bf16.mxu0 0
      %4611 = vmatpush1.bf16.msra.mxu0 0
      %4612 = vmatprep.subr.bf16.mxu0 0
      %4613 = vmatpush1.bf16.msra.mxu0 0
      %4614 = vmatprep.subr.bf16.mxu0 0
      %4615 = vmatpush1.bf16.msra.mxu0 0
      %4616 = vmatprep.subr.bf16.mxu0 0
      %4617 = vmatpush1.bf16.msra.mxu0 0
      %4618 = vmatprep.subr.bf16.mxu0 0
      %4619 = vmatpush1.bf16.msra.mxu0 0
      %4620 = vmatprep.subr.bf16.mxu0 0
      %4621 = vmatpush1.bf16.msra.mxu0 0
      %4622 = vmatprep.subr.bf16.mxu0 0
      %4623 = vmatpush1.bf16.msra.mxu0 0
      %4624 = vmatprep.subr.bf16.mxu0 0
      %4625 = vmatpush1.bf16.msra.mxu0 0
      %4626 = vmatprep.subr.bf16.mxu0 0
      %4627 = vmatpush1.bf16.msra.mxu0 0
      %4628 = vmatprep.subr.bf16.mxu0 0
      %4629 = vmatpush1.bf16.msra.mxu0 0
      %4630 = vmatprep.subr.bf16.mxu0 0
      %4631 = vmatpush1.bf16.msra.mxu0 0
      %4632 = vmatprep.subr.bf16.mxu0 0
      %4633 = vmatpush1.bf16.msra.mxu0 0
      %4634 = vmatprep.subr.bf16.mxu0 0
      %4635 = vmatpush1.bf16.msra.mxu0 0
      %4636 = vmatprep.subr.bf16.mxu0 0
      %4637 = vmatpush1.bf16.msra.mxu0 0
      %4638 = vmatprep.mubr.bf16.mxu0 0
      %4639 = vmatmul.mubr.bf16.gmra.mrb[0].mxu0 %v4559
      %v4640 = vpop.f32.mrb[0].mxu0
      %v4641 = vadd.f32 0.0, %v4640
      %v4642 = vpop.f32.mrb[0].mxu0
      %v4643 = vpop.f32.mrb[0].mxu0
      %v4644 = vadd.f32 0.0, %v4643
      %v4645 = vpop.f32.mrb[0].mxu0
      %4646 = vmatprep.mubr.bf16.mxu0 0
      %4647 = vmatmul.mubr.bf16.gmra.mrb[0].mxu0 %v4562
      %v4648 = vpop.f32.mrb[0].mxu0
      %v4649 = vadd.f32 0.0, %v4648
      %v4650 = vpop.f32.mrb[0].mxu0
      %v4651 = vpop.f32.mrb[0].mxu0
      %v4652 = vadd.f32 0.0, %v4651
      %v4653 = vpop.f32.mrb[0].mxu0
      %4654 = vmatprep.mubr.bf16.mxu0 0
      %4655 = vmatmul.mubr.bf16.gmra.mrb[0].mxu0 %v4565
      %v4656 = vpop.f32.mrb[0].mxu0
      %v4657 = vadd.f32 0.0, %v4656
      %v4658 = vpop.f32.mrb[0].mxu0
      %v4659 = vpop.f32.mrb[0].mxu0
      %v4660 = vadd.f32 0.0, %v4659
      %v4661 = vpop.f32.mrb[0].mxu0
      %4662 = vmatprep.mubr.bf16.mxu0 0
      %4663 = vmatmul.mubr.bf16.gmra.mrb[0].mxu0 %v4568
      %v4664 = vpop.f32.mrb[0].mxu0
      %v4665 = vadd.f32 0.0, %v4664
      %v4666 = vpop.f32.mrb[0].mxu0
      %v4667 = vpop.f32.mrb[0].mxu0
      %v4668 = vadd.f32 0.0, %v4667
      %v4669 = vpop.f32.mrb[0].mxu0
      %4670 = vmatprep.mubr.bf16.mxu0 0
      %4671 = vmatmul.mubr.bf16.gmra.mrb[0].mxu0 %v4571
      %v4672 = vpop.f32.mrb[0].mxu0
      %v4673 = vadd.f32 0.0, %v4672
      %v4674 = vpop.f32.mrb[0].mxu0
      %v4675 = vpop.f32.mrb[0].mxu0
      %v4676 = vadd.f32 0.0, %v4675
      %v4677 = vpop.f32.mrb[0].mxu0
      %4678 = vmatprep.mubr.bf16.mxu0 0
      %4679 = vmatmul.mubr.bf16.gmra.mrb[0].mxu0 %v4574
      %v4680 = vpop.f32.mrb[0].mxu0
      %v4681 = vadd.f32 0.0, %v4680
      %v4682 = vpop.f32.mrb[0].mxu0
      %v4683 = vpop.f32.mrb[0].mxu0
      %v4684 = vadd.f32 0.0, %v4683
      %v4685 = vpop.f32.mrb[0].mxu0
      %4686 = vmatprep.mubr.bf16.mxu0 0
      %4687 = vmatmul.mubr.bf16.gmra.mrb[0].mxu0 %v4577
      %v4688 = vpop.f32.mrb[0].mxu0
      %v4689 = vadd.f32 0.0, %v4688
      %v4690 = vpop.f32.mrb[0].mxu0
      %v4691 = vpop.f32.mrb[0].mxu0
      %v4692 = vadd.f32 0.0, %v4691
      %v4693 = vpop.f32.mrb[0].mxu0
      %4694 = vmatprep.mubr.bf16.mxu0 0
      %4695 = vmatmul.mubr.bf16.gmra.mrb[0].mxu0 %v4580
      %v4696 = vpop.f32.mrb[0].mxu0
      %v4697 = vadd.f32 0.0, %v4696
      %v4698 = vpop.f32.mrb[0].mxu0
      %v4699 = vpop.f32.mrb[0].mxu0
      %v4700 = vadd.f32 0.0, %v4699
      %v4701 = vpop.f32.mrb[0].mxu0
      %4702 = vmatprep.mubr.bf16.mxu0 0
      %4703 = vmatmul.mubr.bf16.gmra.mrb[0].mxu0 %v4583
      %v4704 = vpop.f32.mrb[0].mxu0
      %v4705 = vadd.f32 0.0, %v4704
      %v4706 = vpop.f32.mrb[0].mxu0
      %v4707 = vpop.f32.mrb[0].mxu0
      %v4708 = vadd.f32 0.0, %v4707
      %v4709 = vpop.f32.mrb[0].mxu0
      %4710 = vmatprep.mubr.bf16.mxu0 0
      %4711 = vmatmul.mubr.bf16.gmra.mrb[0].mxu0 %v4586
      %v4712 = vpop.f32.mrb[0].mxu0
      %v4713 = vadd.f32 0.0, %v4712
      %v4714 = vpop.f32.mrb[0].mxu0
      %v4715 = vpop.f32.mrb[0].mxu0
      %v4716 = vadd.f32 0.0, %v4715
      %v4717 = vpop.f32.mrb[0].mxu0
      %4718 = vmatprep.mubr.bf16.mxu0 0
      %4719 = vmatmul.mubr.bf16.gmra.mrb[0].mxu0 %v4589
      %v4720 = vpop.f32.mrb[0].mxu0
      %v4721 = vadd.f32 0.0, %v4720
      %v4722 = vpop.f32.mrb[0].mxu0
      %v4723 = vpop.f32.mrb[0].mxu0
      %v4724 = vadd.f32 0.0, %v4723
      %v4725 = vpop.f32.mrb[0].mxu0
      %4726 = vmatprep.mubr.bf16.mxu0 0
      %4727 = vmatmul.mubr.bf16.gmra.mrb[0].mxu0 %v4592
      %v4728 = vpop.f32.mrb[0].mxu0
      %v4729 = vadd.f32 0.0, %v4728
      %v4730 = vpop.f32.mrb[0].mxu0
      %v4731 = vpop.f32.mrb[0].mxu0
      %v4732 = vadd.f32 0.0, %v4731
      %v4733 = vpop.f32.mrb[0].mxu0
      %4734 = vmatprep.mubr.bf16.mxu0 0
      %4735 = vmatmul.mubr.bf16.gmra.mrb[0].mxu0 %v4595
      %v4736 = vpop.f32.mrb[0].mxu0
      %v4737 = vadd.f32 0.0, %v4736
      %v4738 = vpop.f32.mrb[0].mxu0
      %v4739 = vpop.f32.mrb[0].mxu0
      %v4740 = vadd.f32 0.0, %v4739
      %v4741 = vpop.f32.mrb[0].mxu0
      %4742 = vmatprep.mubr.bf16.mxu0 0
      %4743 = vmatmul.mubr.bf16.gmra.mrb[0].mxu0 %v4598
      %v4744 = vpop.f32.mrb[0].mxu0
      %v4745 = vadd.f32 0.0, %v4744
      %v4746 = vpop.f32.mrb[0].mxu0
      %v4747 = vpop.f32.mrb[0].mxu0
      %v4748 = vadd.f32 0.0, %v4747
      %v4749 = vpop.f32.mrb[0].mxu0
      %4750 = vmatprep.mubr.bf16.mxu0 0
      %4751 = vmatmul.mubr.bf16.gmra.mrb[0].mxu0 %v4601
      %v4752 = vpop.f32.mrb[0].mxu0
      %v4753 = vadd.f32 0.0, %v4752
      %v4754 = vpop.f32.mrb[0].mxu0
      %v4755 = vpop.f32.mrb[0].mxu0
      %v4756 = vadd.f32 0.0, %v4755
      %v4757 = vpop.f32.mrb[0].mxu0
      %4758 = vmatprep.mubr.bf16.mxu0 0
      %4759 = vmatmul.mubr.bf16.gmra.mrb[0].mxu0 %v4604
      %v4760 = vpop.f32.mrb[0].mxu0
      %v4761 = vadd.f32 0.0, %v4760
      %v4762 = vpop.f32.mrb[0].mxu0
      %v4763 = vpop.f32.mrb[0].mxu0
      %v4764 = vadd.f32 0.0, %v4763
      %v4765 = vpop.f32.mrb[0].mxu0
      %4766 = vdwg.mxu0
      %v4767 = vadd.f32 %v4293, %v4641
      %v4768 = vadd.f32 %v4294, %v4644
      %v4769 = vadd.f32 %v4295, %v4649
      %v4770 = vadd.f32 %v4296, %v4652
      %v4771 = vadd.f32 %v4297, %v4657
      %v4772 = vadd.f32 %v4298, %v4660
      %v4773 = vadd.f32 %v4299, %v4665
      %v4774 = vadd.f32 %v4300, %v4668
      %v4775 = vadd.f32 %v4301, %v4673
      %v4776 = vadd.f32 %v4302, %v4676
      %v4777 = vadd.f32 %v4303, %v4681
      %v4778 = vadd.f32 %v4304, %v4684
      %v4779 = vadd.f32 %v4305, %v4689
      %v4780 = vadd.f32 %v4306, %v4692
      %v4781 = vadd.f32 %v4307, %v4697
      %v4782 = vadd.f32 %v4308, %v4700
      %v4783 = vadd.f32 %v4309, %v4705
      %v4784 = vadd.f32 %v4310, %v4708
      %v4785 = vadd.f32 %v4311, %v4713
      %v4786 = vadd.f32 %v4312, %v4716
      %v4787 = vadd.f32 %v4313, %v4721
      %v4788 = vadd.f32 %v4314, %v4724
      %v4789 = vadd.f32 %v4315, %v4729
      %v4790 = vadd.f32 %v4316, %v4732
      %v4791 = vadd.f32 %v4317, %v4737
      %v4792 = vadd.f32 %v4318, %v4740
      %v4793 = vadd.f32 %v4319, %v4745
      %v4794 = vadd.f32 %v4320, %v4748
      %v4795 = vadd.f32 %v4321, %v4753
      %v4796 = vadd.f32 %v4322, %v4756
      %v4797 = vadd.f32 %v4323, %v4761
      %v4798 = vadd.f32 %v4324, %v4764
      %v4799 = vld [vmem:[%s2] sm:$0x1]
      %v4801 = vlaneseq
      %v4802 = vshrl.u32 %v4801, 7
      %v4803 = vsub.s32 0, %v4802
      %v4804 = vrot.slane %v4799, %v4803
      %v4806 = vadd.f32 %v4767, %v4804
      %v4807 = vadd.f32 %v4768, %v4804
      %v4808 = vadd.f32 %v4769, %v4804
      %v4809 = vadd.f32 %v4770, %v4804
      %v4810 = vadd.f32 %v4771, %v4804
      %v4811 = vadd.f32 %v4772, %v4804
      %v4812 = vadd.f32 %v4773, %v4804
      %v4813 = vadd.f32 %v4774, %v4804
      %v4814 = vadd.f32 %v4775, %v4804
      %v4815 = vadd.f32 %v4776, %v4804
      %v4816 = vadd.f32 %v4777, %v4804
      %v4817 = vadd.f32 %v4778, %v4804
      %v4818 = vadd.f32 %v4779, %v4804
      %v4819 = vadd.f32 %v4780, %v4804
      %v4820 = vadd.f32 %v4781, %v4804
      %v4821 = vadd.f32 %v4782, %v4804
      %v4822 = vadd.f32 %v4783, %v4804
      %v4823 = vadd.f32 %v4784, %v4804
      %v4824 = vadd.f32 %v4785, %v4804
      %v4825 = vadd.f32 %v4786, %v4804
      %v4826 = vadd.f32 %v4787, %v4804
      %v4827 = vadd.f32 %v4788, %v4804
      %v4828 = vadd.f32 %v4789, %v4804
      %v4829 = vadd.f32 %v4790, %v4804
      %v4830 = vadd.f32 %v4791, %v4804
      %v4831 = vadd.f32 %v4792, %v4804
      %v4832 = vadd.f32 %v4793, %v4804
      %v4833 = vadd.f32 %v4794, %v4804
      %v4834 = vadd.f32 %v4795, %v4804
      %v4835 = vadd.f32 %v4796, %v4804
      %v4836 = vadd.f32 %v4797, %v4804
      %v4837 = vadd.f32 %v4798, %v4804
      %v4838 = vsub.f32 0.0, %v4806
      %v4839 = vsub.f32 0.0, %v4807
      %v4840 = vsub.f32 0.0, %v4808
      %v4841 = vsub.f32 0.0, %v4809
      %v4842 = vsub.f32 0.0, %v4810
      %v4843 = vsub.f32 0.0, %v4811
      %v4844 = vsub.f32 0.0, %v4812
      %v4845 = vsub.f32 0.0, %v4813
      %v4846 = vsub.f32 0.0, %v4814
      %v4847 = vsub.f32 0.0, %v4815
      %v4848 = vsub.f32 0.0, %v4816
      %v4849 = vsub.f32 0.0, %v4817
      %v4850 = vsub.f32 0.0, %v4818
      %v4851 = vsub.f32 0.0, %v4819
      %v4852 = vsub.f32 0.0, %v4820
      %v4853 = vsub.f32 0.0, %v4821
      %v4854 = vsub.f32 0.0, %v4822
      %v4855 = vsub.f32 0.0, %v4823
      %v4856 = vsub.f32 0.0, %v4824
      %v4857 = vsub.f32 0.0, %v4825
      %v4858 = vsub.f32 0.0, %v4826
      %v4859 = vsub.f32 0.0, %v4827
      %v4860 = vsub.f32 0.0, %v4828
      %v4861 = vsub.f32 0.0, %v4829
      %v4862 = vsub.f32 0.0, %v4830
      %v4863 = vsub.f32 0.0, %v4831
      %v4864 = vsub.f32 0.0, %v4832
      %v4865 = vsub.f32 0.0, %v4833
      %v4866 = vsub.f32 0.0, %v4834
      %v4867 = vsub.f32 0.0, %v4835
      %v4868 = vsub.f32 0.0, %v4836
      %v4869 = vsub.f32 0.0, %v4837
      %v4870 = vmul.f32 %v4838, 1.442695
      %v4871 = vpow.pop %v4870
      %v4872 = vmul.f32 %v4839, 1.442695
      %v4873 = vpow.pop %v4872
      %v4874 = vmul.f32 %v4840, 1.442695
      %v4875 = vpow.pop %v4874
      %v4876 = vmul.f32 %v4841, 1.442695
      %v4877 = vpow.pop %v4876
      %v4878 = vmul.f32 %v4842, 1.442695
      %v4879 = vpow.pop %v4878
      %v4880 = vmul.f32 %v4843, 1.442695
      %v4881 = vpow.pop %v4880
      %v4882 = vmul.f32 %v4844, 1.442695
      %v4883 = vpow.pop %v4882
      %v4884 = vmul.f32 %v4845, 1.442695
      %v4885 = vpow.pop %v4884
      %v4886 = vmul.f32 %v4846, 1.442695
      %v4887 = vpow.pop %v4886
      %v4888 = vmul.f32 %v4847, 1.442695
      %v4889 = vpow.pop %v4888
      %v4890 = vmul.f32 %v4848, 1.442695
      %v4891 = vpow.pop %v4890
      %v4892 = vmul.f32 %v4849, 1.442695
      %v4893 = vpow.pop %v4892
      %v4894 = vmul.f32 %v4850, 1.442695
      %v4895 = vpow.pop %v4894
      %v4896 = vmul.f32 %v4851, 1.442695
      %v4897 = vpow.pop %v4896
      %v4898 = vmul.f32 %v4852, 1.442695
      %v4899 = vpow.pop %v4898
      %v4900 = vmul.f32 %v4853, 1.442695
      %v4901 = vpow.pop %v4900
      %v4902 = vmul.f32 %v4854, 1.442695
      %v4903 = vpow.pop %v4902
      %v4904 = vmul.f32 %v4855, 1.442695
      %v4905 = vpow.pop %v4904
      %v4906 = vmul.f32 %v4856, 1.442695
      %v4907 = vpow.pop %v4906
      %v4908 = vmul.f32 %v4857, 1.442695
      %v4909 = vpow.pop %v4908
      %v4910 = vmul.f32 %v4858, 1.442695
      %v4911 = vpow.pop %v4910
      %v4912 = vmul.f32 %v4859, 1.442695
      %v4913 = vpow.pop %v4912
      %v4914 = vmul.f32 %v4860, 1.442695
      %v4915 = vpow.pop %v4914
      %v4916 = vmul.f32 %v4861, 1.442695
      %v4917 = vpow.pop %v4916
      %v4918 = vmul.f32 %v4862, 1.442695
      %v4919 = vpow.pop %v4918
      %v4920 = vmul.f32 %v4863, 1.442695
      %v4921 = vpow.pop %v4920
      %v4922 = vmul.f32 %v4864, 1.442695
      %v4923 = vpow.pop %v4922
      %v4924 = vmul.f32 %v4865, 1.442695
      %v4925 = vpow.pop %v4924
      %v4926 = vmul.f32 %v4866, 1.442695
      %v4927 = vpow.pop %v4926
      %v4928 = vmul.f32 %v4867, 1.442695
      %v4929 = vpow.pop %v4928
      %v4930 = vmul.f32 %v4868, 1.442695
      %v4931 = vpow.pop %v4930
      %v4932 = vmul.f32 %v4869, 1.442695
      %v4933 = vpow.pop %v4932
      %v4934 = vadd.f32 %v4871, 1.0
      %v4935 = vadd.f32 %v4873, 1.0
      %v4936 = vadd.f32 %v4875, 1.0
      %v4937 = vadd.f32 %v4877, 1.0
      %v4938 = vadd.f32 %v4879, 1.0
      %v4939 = vadd.f32 %v4881, 1.0
      %v4940 = vadd.f32 %v4883, 1.0
      %v4941 = vadd.f32 %v4885, 1.0
      %v4942 = vadd.f32 %v4887, 1.0
      %v4943 = vadd.f32 %v4889, 1.0
      %v4944 = vadd.f32 %v4891, 1.0
      %v4945 = vadd.f32 %v4893, 1.0
      %v4946 = vadd.f32 %v4895, 1.0
      %v4947 = vadd.f32 %v4897, 1.0
      %v4948 = vadd.f32 %v4899, 1.0
      %v4949 = vadd.f32 %v4901, 1.0
      %v4950 = vadd.f32 %v4903, 1.0
      %v4951 = vadd.f32 %v4905, 1.0
      %v4952 = vadd.f32 %v4907, 1.0
      %v4953 = vadd.f32 %v4909, 1.0
      %v4954 = vadd.f32 %v4911, 1.0
      %v4955 = vadd.f32 %v4913, 1.0
      %v4956 = vadd.f32 %v4915, 1.0
      %v4957 = vadd.f32 %v4917, 1.0
      %v4958 = vadd.f32 %v4919, 1.0
      %v4959 = vadd.f32 %v4921, 1.0
      %v4960 = vadd.f32 %v4923, 1.0
      %v4961 = vadd.f32 %v4925, 1.0
      %v4962 = vadd.f32 %v4927, 1.0
      %v4963 = vadd.f32 %v4929, 1.0
      %v4964 = vadd.f32 %v4931, 1.0
      %v4965 = vadd.f32 %v4933, 1.0
      %v4966 = vrcp.pop %v4934
      %v4967 = vrcp.pop %v4935
      %v4968 = vrcp.pop %v4936
      %v4969 = vrcp.pop %v4937
      %v4970 = vrcp.pop %v4938
      %v4971 = vrcp.pop %v4939
      %v4972 = vrcp.pop %v4940
      %v4973 = vrcp.pop %v4941
      %v4974 = vrcp.pop %v4942
      %v4975 = vrcp.pop %v4943
      %v4976 = vrcp.pop %v4944
      %v4977 = vrcp.pop %v4945
      %v4978 = vrcp.pop %v4946
      %v4979 = vrcp.pop %v4947
      %v4980 = vrcp.pop %v4948
      %v4981 = vrcp.pop %v4949
      %v4982 = vrcp.pop %v4950
      %v4983 = vrcp.pop %v4951
      %v4984 = vrcp.pop %v4952
      %v4985 = vrcp.pop %v4953
      %v4986 = vrcp.pop %v4954
      %v4987 = vrcp.pop %v4955
      %v4988 = vrcp.pop %v4956
      %v4989 = vrcp.pop %v4957
      %v4990 = vrcp.pop %v4958
      %v4991 = vrcp.pop %v4959
      %v4992 = vrcp.pop %v4960
      %v4993 = vrcp.pop %v4961
      %v4994 = vrcp.pop %v4962
      %v4995 = vrcp.pop %v4963
      %v4996 = vrcp.pop %v4964
      %v4997 = vrcp.pop %v4965
      %v4998 = vmul.f32 %v4806, %v4966
      %v4999 = vmul.f32 %v4807, %v4967
      %v5000 = vmul.f32 %v4808, %v4968
      %v5001 = vmul.f32 %v4809, %v4969
      %v5002 = vmul.f32 %v4810, %v4970
      %v5003 = vmul.f32 %v4811, %v4971
      %v5004 = vmul.f32 %v4812, %v4972
      %v5005 = vmul.f32 %v4813, %v4973
      %v5006 = vmul.f32 %v4814, %v4974
      %v5007 = vmul.f32 %v4815, %v4975
      %v5008 = vmul.f32 %v4816, %v4976
      %v5009 = vmul.f32 %v4817, %v4977
      %v5010 = vmul.f32 %v4818, %v4978
      %v5011 = vmul.f32 %v4819, %v4979
      %v5012 = vmul.f32 %v4820, %v4980
      %v5013 = vmul.f32 %v4821, %v4981
      %v5014 = vmul.f32 %v4822, %v4982
      %v5015 = vmul.f32 %v4823, %v4983
      %v5016 = vmul.f32 %v4824, %v4984
      %v5017 = vmul.f32 %v4825, %v4985
      %v5018 = vmul.f32 %v4826, %v4986
      %v5019 = vmul.f32 %v4827, %v4987
      %v5020 = vmul.f32 %v4828, %v4988
      %v5021 = vmul.f32 %v4829, %v4989
      %v5022 = vmul.f32 %v4830, %v4990
      %v5023 = vmul.f32 %v4831, %v4991
      %v5024 = vmul.f32 %v4832, %v4992
      %v5025 = vmul.f32 %v4833, %v4993
      %v5026 = vmul.f32 %v4834, %v4994
      %v5027 = vmul.f32 %v4835, %v4995
      %v5028 = vmul.f32 %v4836, %v4996
      %v5029 = vmul.f32 %v4837, %v4997
      %5030 = vxpose.xlu0.b32.start [1/16] %v4998, 128
      %5031 = vxpose.xlu0.b32.cont [2/16] %v4999, 128
      %5032 = vxpose.xlu0.b32.cont [3/16] %v5000, 128
      %5033 = vxpose.xlu0.b32.cont [4/16] %v5001, 128
      %5034 = vxpose.xlu0.b32.cont [5/16] %v5002, 128
      %5035 = vxpose.xlu0.b32.cont [6/16] %v5003, 128
      %5036 = vxpose.xlu0.b32.cont [7/16] %v5004, 128
      %5037 = vxpose.xlu0.b32.cont [8/16] %v5005, 128
      %5038 = vxpose.xlu0.b32.cont [9/16] %v5006, 128
      %5039 = vxpose.xlu0.b32.cont [10/16] %v5007, 128
      %5040 = vxpose.xlu0.b32.cont [11/16] %v5008, 128
      %5041 = vxpose.xlu0.b32.cont [12/16] %v5009, 128
      %5042 = vxpose.xlu0.b32.cont [13/16] %v5010, 128
      %5043 = vxpose.xlu0.b32.cont [14/16] %v5011, 128
      %5044 = vxpose.xlu0.b32.cont [15/16] %v5012, 128
      %5045 = vxpose.xlu0.b32.end [16/16] %v5013, 128
      %v5046 = vpop.trf.xlu0
      %v5047 = vpop.trf.xlu0
      %v5048 = vpop.trf.xlu0
      %v5049 = vpop.trf.xlu0
      %v5050 = vpop.trf.xlu0
      %v5051 = vpop.trf.xlu0
      %v5052 = vpop.trf.xlu0
      %v5053 = vpop.trf.xlu0
      %v5054 = vpop.trf.xlu0
      %v5055 = vpop.trf.xlu0
      %v5056 = vpop.trf.xlu0
      %v5057 = vpop.trf.xlu0
      %v5058 = vpop.trf.xlu0
      %v5059 = vpop.trf.xlu0
      %v5060 = vpop.trf.xlu0
      %v5061 = vpop.trf.xlu0
      %5062 = vxpose.xlu0.b32.start [1/16] %v5014, 128
      %5063 = vxpose.xlu0.b32.cont [2/16] %v5015, 128
      %5064 = vxpose.xlu0.b32.cont [3/16] %v5016, 128
      %5065 = vxpose.xlu0.b32.cont [4/16] %v5017, 128
      %5066 = vxpose.xlu0.b32.cont [5/16] %v5018, 128
      %5067 = vxpose.xlu0.b32.cont [6/16] %v5019, 128
      %5068 = vxpose.xlu0.b32.cont [7/16] %v5020, 128
      %5069 = vxpose.xlu0.b32.cont [8/16] %v5021, 128
      %5070 = vxpose.xlu0.b32.cont [9/16] %v5022, 128
      %5071 = vxpose.xlu0.b32.cont [10/16] %v5023, 128
      %5072 = vxpose.xlu0.b32.cont [11/16] %v5024, 128
      %5073 = vxpose.xlu0.b32.cont [12/16] %v5025, 128
      %5074 = vxpose.xlu0.b32.cont [13/16] %v5026, 128
      %5075 = vxpose.xlu0.b32.cont [14/16] %v5027, 128
      %5076 = vxpose.xlu0.b32.cont [15/16] %v5028, 128
      %5077 = vxpose.xlu0.b32.end [16/16] %v5029, 128
      %v5078 = vpop.trf.xlu0
      %v5079 = vpop.trf.xlu0
      %v5080 = vpop.trf.xlu0
      %v5081 = vpop.trf.xlu0
      %v5082 = vpop.trf.xlu0
      %v5083 = vpop.trf.xlu0
      %v5084 = vpop.trf.xlu0
      %v5085 = vpop.trf.xlu0
      %v5086 = vpop.trf.xlu0
      %v5087 = vpop.trf.xlu0
      %v5088 = vpop.trf.xlu0
      %v5089 = vpop.trf.xlu0
      %v5090 = vpop.trf.xlu0
      %v5091 = vpop.trf.xlu0
      %v5092 = vpop.trf.xlu0
      %v5093 = vpop.trf.xlu0
      %5094 = vst [vmem:[%s192] sm:$0xff] %v5046
      %5095 = vst [vmem:[%s192 + $0x8] sm:$0xff] %v5078
      %5096 = vst [vmem:[%s192 + $0x10] sm:$0xff] %v5047
      %5097 = vst [vmem:[%s192 + $0x18] sm:$0xff] %v5079
      %5098 = vst [vmem:[%s192 + $0x20] sm:$0xff] %v5048
      %5099 = vst [vmem:[%s192 + $0x28] sm:$0xff] %v5080
      %5100 = vst [vmem:[%s192 + $0x30] sm:$0xff] %v5049
      %5101 = vst [vmem:[%s192 + $0x38] sm:$0xff] %v5081
      %s5102 = smul.u32 2, %s19
      %p5103 = scmp.lt.s32.totalorder %s18, 1
      %s5104 = scalar_select %p5103, %s18, 1
      %p5105 = scmp.lt.s32.totalorder %s5102, 1
      %s5106 = scalar_select %p5105, %s5102, 1
      %s5107 = smul.addr %s5104, 8
      %s5108 = sadd.s32 %s5106, %s5107
      %s5109 = smul.addr %s5108, 8
      %s5110 = scalar_lea.vmem %s3, %s5109
      // Predicated region
      $region33: #{focus_forward.1} parent=31 // pred_check
        %p5111 = pneg %p114
      $region34: #{focus_forward.1} parent=31 // pred_check_branch
        %5113 = sbr.rel (%p5111) target = $region36
      $region35: #{focus_forward.1} parent=31 // pred_region
        %s5114 = smul.u32 2, %s19
      $region36: #{focus_forward.1} parent=31 // pred_fallthru
        _
    $region32: #{focus_forward.1} parent=5 // pred_fallthru
      _
    %p5115 = scmp.le.s32.totalorder 2, %s9
    // Predicated region
    $region37: #{focus_forward.1} parent=5 // pred_check
      %p5116 = pneg %p5115
    $region38: #{focus_forward.1} parent=5 // pred_check_branch
      %5118 = sbr.rel (%p5116) target = $region40
    $region39: #{focus_forward.1} parent=5 // pred_region
      %s5119 = ssub.s32 %s9, 2
      // Predicated region
      $region41: #{focus_forward.1} parent=39 // pred_check
        %p5120 = pneg %p120
      $region42: #{focus_forward.1} parent=39 // pred_check_branch
        %5122 = sbr.rel (%p5120) target = $region44
      $region43: #{focus_forward.1} parent=39 // pred_region
        %s5123 = smul.u32 2, %s21
        %p5124 = scmp.lt.s32.totalorder %s20, 1
        %s5125 = scalar_select %p5124, %s20, 1
        %p5126 = scmp.lt.s32.totalorder %s5123, 1
        %s5127 = scalar_select %p5126, %s5123, 1
        %s5128 = smul.addr %s5125, 8
        %s5129 = sadd.s32 %s5127, %s5128
        %s5130 = smul.addr %s5129, 8
        %s5131 = scalar_lea.vmem %s3, %s5130
      $region44: #{focus_forward.1} parent=39 // pred_fallthru
        _
    $region40: #{focus_forward.1} parent=5 // pred_fallthru
      _
  $region6: #{focus_forward.1} parent=0 // loop_footer
    %s13 = sadd.s32 1, %s9
  $region7: #{focus_forward.1} parent=0 // loop_footer_branch
    %8 = sbr.rel target = $region3
  $region8: #{focus_forward.1} parent=0 // loop_exit
    _

</llo_original>
